<compile_context>
chip_gen: v6e
topology: v6e:2x2x1
jax: 0.10.0
libtpu: 0.0.40
codegen_flags: <defaults>
</compile_context>

<pallas_src>
import math

import jax
import jax.numpy as jnp
import numpy as np
from jax.experimental import pallas as pl
from jax.experimental.pallas import tpu as pltpu


def _round_up(x, m):
    return ((x + m - 1) // m) * m


# ----------------------------------------------------------------------------
# Pallas kernel: streamed encoder LSTM -> decoder LSTM
#   grid = (batch_shards, time_chunks), dims = ("parallel", "arbitrary")
# ----------------------------------------------------------------------------
def eda_kernel(xs_ref, lens_ref, gz_ref,
               w_ih_e_ref, w_hh_e_ref, b_e_ref, w_hh_d_ref,
               attr_ref,
               h_ref, c_ref, gx_ref):
    Tt, Bs, H = xs_ref.shape          # time-major chunk
    S = gz_ref.shape[0]
    n = pl.program_id(1)
    num_chunks = pl.num_programs(1)

    @pl.when(n == 0)
    def _init():
        h_ref[...] = jnp.zeros_like(h_ref)
        c_ref[...] = jnp.zeros_like(c_ref)

    lens = lens_ref[...]              # (Bs, 1) int32

    def sig(x):                       # sigmoid as a single tanh -> one EUP op
        return 0.5 * (jnp.tanh(0.5 * x) + 1.0)

    def lstm_gates(pre):              # pre: (Bs, 4H) f32 pre-activations, order i,f,g,o
        i = sig(pre[:, 0:H])
        f = sig(pre[:, H:2 * H])
        g = jnp.tanh(pre[:, 2 * H:3 * H])
        o = sig(pre[:, 3 * H:4 * H])
        return i, f, g, o

    # ---- hoisted fused encoder input projection for the whole chunk --------
    # One (Tt*Bs, H) @ (H, 4H) MXU matmul, biases folded, result parked in VMEM
    # scratch so the recurrence below does not keep Tt live values in vregs.
    x2 = xs_ref[...].reshape(Tt * Bs, H)
    gx_ref[...] = (jnp.dot(x2, w_ih_e_ref[...],
                           preferred_element_type=jnp.float32)
                   + b_e_ref[...]).reshape(Tt, Bs, 4 * H)

    # ---- serial encoder recurrence over the chunk ---------------------------
    def enc_step(tt, carry):
        h, c = carry
        pre = gx_ref[tt] + jnp.dot(h, w_hh_e_ref[...],
                                   preferred_element_type=jnp.float32)
        i, f, g, o = lstm_gates(pre)
        c_new = f * c + i * g
        h_new = o * jnp.tanh(c_new)
        keep = (n * Tt + tt) < lens   # pack_padded final-state semantics + T padding
        return jnp.where(keep, h_new, h), jnp.where(keep, c_new, c)

    h, c = jax.lax.fori_loop(0, Tt, enc_step, (h_ref[...], c_ref[...]),
                             unroll=min(8, Tt))
    h_ref[...] = h
    c_ref[...] = c

    # ---- decoder recurrence: only on the last time chunk --------------------
    @pl.when(n == num_chunks - 1)
    def _decode():
        hd, cd = h, c
        for s in range(S):            # S is small -> static unroll, write per step
            pre = gz_ref[s] + jnp.dot(hd, w_hh_d_ref[...],
                                      preferred_element_type=jnp.float32)
            i, f, g, o = lstm_gates(pre)
            cd = f * cd + i * g
            hd = o * jnp.tanh(cd)
            attr_ref[s] = hd


# ----------------------------------------------------------------------------
# Wrapper: padding, layout glue, pallas_call, counter epilogue
# ----------------------------------------------------------------------------
def encoder_decoder_attractor(xs, zeros, params, lens=None, *, time_chunk=32,
                              weights_dtype=jnp.float32):
    """xs: (B, T, H), zeros: (B, S, H). Returns (attractors (B,S,H), probs (B,S,1))."""
    B, T, H = xs.shape
    S = zeros.shape[1]
    if lens is None:
        lens = jnp.full((B,), T, dtype=jnp.int32)
    lens = jnp.asarray(lens, jnp.int32)

    Bs = min(_round_up(B, 8), 128)           # big batch shard: fill MXU rows
    B_pad = _round_up(B, Bs)
    Tt = min(max(T, 1), time_chunk)          # recurrence steps per grid iteration
    T_pad = _round_up(T, Tt)
    n_b = B_pad // Bs
    n_t = T_pad // Tt

    xs_f = xs.astype(jnp.float32)
    if (B_pad, T_pad) != (B, T):
        xs_f = jnp.pad(xs_f, ((0, B_pad - B), (0, T_pad - T), (0, 0)))
    zeros_f = zeros.astype(jnp.float32)
    if B_pad != B:
        zeros_f = jnp.pad(zeros_f, ((0, B_pad - B), (0, 0), (0, 0)))
    lens_p = jnp.pad(lens, (0, B_pad - B)).reshape(B_pad, 1)   # padded rows: len 0

    # Time-major so the kernel only indexes leading dims of its blocks.
    xs_tm = jnp.transpose(xs_f, (1, 0, 2)).astype(weights_dtype)   # (T_pad, B_pad, H)
    zeros_tm = jnp.transpose(zeros_f, (1, 0, 2))                   # (S, B_pad, H)

    # Decoder input projection hoisted to the wrapper (EEND always feeds zeros,
    # so for the module-as-used this is just the broadcast bias; XLA folds it).
    gz = (jnp.einsum('sbh,hk->sbk', zeros_tm,
                     params["w_ih_d"].astype(jnp.float32))
          + params["b_d"].reshape(1, 1, 4 * H)).astype(jnp.float32)

    w_ih_e = params["w_ih_e"].astype(weights_dtype)
    w_hh_e = params["w_hh_e"].astype(weights_dtype)
    w_hh_d = params["w_hh_d"].astype(weights_dtype)
    b_e = params["b_e"].astype(jnp.float32)

    const2 = lambda b, n: (0, 0)

    flops = 16 * H * H * B_pad * (T_pad + S)
    transcendentals = 5 * B_pad * (T_pad + S) * H
    bytes_accessed = 4 * (B_pad * T_pad * H + B_pad * S * (5 * H)
                          + 12 * H * H + 4 * H + B_pad)

    attr_tm = pl.pallas_call(
        eda_kernel,
        out_shape=jax.ShapeDtypeStruct((S, B_pad, H), jnp.float32),
        grid=(n_b, n_t),
        in_specs=[
            pl.BlockSpec((Tt, Bs, H), lambda b, n: (n, b, 0)),       # xs chunk (streamed)
            pl.BlockSpec((Bs, 1), lambda b, n: (b, 0)),              # lens
            pl.BlockSpec((S, Bs, 4 * H), lambda b, n: (0, b, 0)),    # dec pre-projected in
            pl.BlockSpec((H, 4 * H), const2),                        # enc W_ih (fused gates)
            pl.BlockSpec((H, 4 * H), const2),                        # enc W_hh
            pl.BlockSpec((1, 4 * H), const2),                        # enc folded bias
            pl.BlockSpec((H, 4 * H), const2),                        # dec W_hh
        ],
        out_specs=pl.BlockSpec((S, Bs, H), lambda b, n: (0, b, 0)),
        scratch_shapes=[pltpu.VMEM((Bs, H), jnp.float32),            # h carry
                        pltpu.VMEM((Bs, H), jnp.float32),            # c carry
                        pltpu.VMEM((Tt, Bs, 4 * H), jnp.float32)],   # hoisted projection
        compiler_params=pltpu.CompilerParams(
            dimension_semantics=("parallel", "arbitrary"),
            # Explicit limit; size Tt/Bs so the working set stays inside v7x's
            # 64 MiB physical VMEM (Tt=32/Bs=128/H=256 f32 fits; use bf16 weights
            # on v6e/v7x for more headroom / MXU rate).
            vmem_limit_bytes=64 * 1024 * 1024),
        cost_estimate=pl.CostEstimate(flops=flops,
                                      transcendentals=transcendentals,
                                      bytes_accessed=bytes_accessed),
    )(xs_tm, lens_p, gz, w_ih_e, w_hh_e, b_e, w_hh_d)

    attractors = jnp.transpose(attr_tm, (1, 0, 2))[:B]               # (B, S, H)
    # Counter (Linear(H,1) + Sigmoid): tiny epilogue, plain XLA (avoids a masked
    # sub-128-lane output block in the kernel).
    probs = jax.nn.sigmoid(
        jnp.einsum('bsh,ho->bso', attractors, params["w_c"].astype(jnp.float32))
        + params["b_c"].reshape(1, 1, 1))
    return attractors, probs


# ----------------------------------------------------------------------------
# Deterministic parameter init (PyTorch default: U(-1/sqrt(H), 1/sqrt(H))),
# fused-gate layout (H, 4H), gate order i,f,g,o, biases folded (b_ih + b_hh).
# ----------------------------------------------------------------------------
def init_params(key, n_units):
    H = n_units
    bound = 1.0 / math.sqrt(H)
    ks = jax.random.split(key, 10)

    def u(k, shape):
        return jax.random.uniform(k, shape, jnp.float32, -bound, bound)

    def lstm(k0, k1, k2, k3):
        w_ih = u(k0, (4 * H, H))                # PyTorch layout (4H, H)
        w_hh = u(k1, (4 * H, H))
        b = u(k2, (4 * H,)) + u(k3, (4 * H,))   # folded b_ih + b_hh
        return w_ih.T, w_hh.T, b.reshape(1, 4 * H)

    w_ih_e, w_hh_e, b_e = lstm(ks[0], ks[1], ks[2], ks[3])
    w_ih_d, w_hh_d, b_d = lstm(ks[4], ks[5], ks[6], ks[7])
    w_c = u(ks[8], (H, 1))                      # Linear(H, 1)
    b_c = u(ks[9], (1,))
    return dict(w_ih_e=w_ih_e, w_hh_e=w_hh_e, b_e=b_e,
                w_ih_d=w_ih_d, w_hh_d=w_hh_d, b_d=b_d,
                w_c=w_c, b_c=b_c)


# ----------------------------------------------------------------------------
# Pure-JAX reference (same math) for a correctness sanity check
# ----------------------------------------------------------------------------
def reference_forward(xs, zeros, params, lens):
    B, T, H = xs.shape
    S = zeros.shape[1]

    def cell(x, h, c, w_ih, w_hh, b):
        pre = x @ w_ih + h @ w_hh + b           # (B, 4H)
        i = jax.nn.sigmoid(pre[:, 0:H])
        f = jax.nn.sigmoid(pre[:, H:2 * H])
        g = jnp.tanh(pre[:, 2 * H:3 * H])
        o = jax.nn.sigmoid(pre[:, 3 * H:4 * H])
        c = f * c + i * g
        return o * jnp.tanh(c), c

    h = jnp.zeros((B, H), jnp.float32)
    c = jnp.zeros((B, H), jnp.float32)
    for t in range(T):
        hn, cn = cell(xs[:, t, :], h, c,
                      params["w_ih_e"], params["w_hh_e"], params["b_e"])
        m = (t < lens)[:, None]
        h = jnp.where(m, hn, h)
        c = jnp.where(m, cn, c)
    outs, probs = [], []
    for s in range(S):
        h, c = cell(zeros[:, s, :], h, c,
                    params["w_ih_d"], params["w_hh_d"], params["b_d"])
        outs.append(h)
        probs.append(jax.nn.sigmoid(h @ params["w_c"] + params["b_c"].reshape(1, 1)))
    return jnp.stack(outs, 1), jnp.stack(probs, 1)


if __name__ == "__main__":
    B, T, S, H = 2, 24, 4, 128   # batch, input frames, attractor steps, n_units

    key = jax.random.PRNGKey(0)
    k_p, k_x = jax.random.split(key)
    params = init_params(k_p, H)

    xs = jax.random.normal(k_x, (B, T, H), dtype=jnp.float32)
    zeros = jnp.zeros((B, S, H), dtype=jnp.float32)
    lens = jnp.array([T, T - 11], dtype=jnp.int32)   # exercise packed-seq masking

    attractors, probs = encoder_decoder_attractor(xs, zeros, params, lens=lens,
                                                  time_chunk=8)  # 3 time chunks
    jax.block_until_ready((attractors, probs))

    ref_a, ref_p = reference_forward(xs, zeros, params, lens)
    np.testing.assert_allclose(np.asarray(attractors), np.asarray(ref_a),
                               rtol=1e-4, atol=1e-4)
    np.testing.assert_allclose(np.asarray(probs), np.asarray(ref_p),
                               rtol=1e-4, atol=1e-4)

    assert attractors.shape == (B, S, H) and probs.shape == (B, S, 1)
    print("KERNEL_OK")
</pallas_src>

<mosaic_0001>
module attributes {stable_mosaic.version = 11 : i64} {
  func.func @eda_kernel(%arg0: i32, %arg1: i32, %arg2: memref<8x8x128xf32, #tpu.memory_space<vmem>>, %arg3: memref<8x1xi32, #tpu.memory_space<vmem>>, %arg4: memref<4x8x512xf32, #tpu.memory_space<vmem>>, %arg5: memref<128x512xf32, #tpu.memory_space<vmem>>, %arg6: memref<128x512xf32, #tpu.memory_space<vmem>>, %arg7: memref<1x512xf32, #tpu.memory_space<vmem>>, %arg8: memref<128x512xf32, #tpu.memory_space<vmem>>, %arg9: memref<4x8x128xf32, #tpu.memory_space<vmem>>, %arg10: memref<8x128xf32, #tpu.memory_space<vmem>>, %arg11: memref<8x128xf32, #tpu.memory_space<vmem>>, %arg12: memref<8x8x512xf32, #tpu.memory_space<vmem>>) attributes {dimension_semantics = [#tpu.dimension_semantics<parallel>, #tpu.dimension_semantics<arbitrary>], iteration_bounds = array<i64: 1, 3>, scalar_prefetch = 0 : i64, scratch_operands = 3 : i64, tpu.core_type = #tpu.core_type<tc>, window_params = [{transform_indices = @transform_0, window_bounds = array<i64: 8, 8, 128>}, {transform_indices = @transform_1, window_bounds = array<i64: 8, 1>}, {transform_indices = @transform_2, window_bounds = array<i64: 4, 8, 512>}, {pipeline_mode = #tpu.pipeline_mode<synchronous>, transform_indices = @transform_3, window_bounds = array<i64: 128, 512>}, {pipeline_mode = #tpu.pipeline_mode<synchronous>, transform_indices = @transform_4, window_bounds = array<i64: 128, 512>}, {pipeline_mode = #tpu.pipeline_mode<synchronous>, transform_indices = @transform_5, window_bounds = array<i64: 1, 512>}, {pipeline_mode = #tpu.pipeline_mode<synchronous>, transform_indices = @transform_6, window_bounds = array<i64: 128, 512>}, {transform_indices = @transform_7, window_bounds = array<i64: 4, 8, 128>}]} {
    %c0_i32 = arith.constant 0 : i32
    %0 = arith.cmpi eq, %arg1, %c0_i32 : i32
    %1 = arith.extui %0 : i1 to i32
    %c0_i32_0 = arith.constant 0 : i32
    %2 = arith.cmpi ne, %1, %c0_i32_0 : i32
    scf.if %2 {
      %cst_143 = arith.constant 0.000000e+00 : f32
      %396 = vector.broadcast %cst_143 : f32 to vector<8x128xf32>
      %c0_144 = arith.constant 0 : index
      %c0_145 = arith.constant 0 : index
      %397 = vector.load %arg10[%c0_144, %c0_145] : memref<8x128xf32, #tpu.memory_space<vmem>>, vector<8x128xf32>
      tpu.vector_store %arg10[%c0_144, %c0_145], %396 {strides = array<i32>} : memref<8x128xf32, #tpu.memory_space<vmem>>, vector<8x128xf32>,
      %cst_146 = arith.constant 0.000000e+00 : f32
      %398 = vector.broadcast %cst_146 : f32 to vector<8x128xf32>
      %c0_147 = arith.constant 0 : index
      %c0_148 = arith.constant 0 : index
      %399 = vector.load %arg11[%c0_147, %c0_148] : memref<8x128xf32, #tpu.memory_space<vmem>>, vector<8x128xf32>
      tpu.vector_store %arg11[%c0_147, %c0_148], %398 {strides = array<i32>} : memref<8x128xf32, #tpu.memory_space<vmem>>, vector<8x128xf32>,
    } else {
    }
    %c0 = arith.constant 0 : index
    %c0_1 = arith.constant 0 : index
    %3 = vector.load %arg3[%c0, %c0_1] : memref<8x1xi32, #tpu.memory_space<vmem>>, vector<8x1xi32>
    %c0_2 = arith.constant 0 : index
    %c0_3 = arith.constant 0 : index
    %c0_4 = arith.constant 0 : index
    %4 = vector.load %arg2[%c0_2, %c0_3, %c0_4] : memref<8x8x128xf32, #tpu.memory_space<vmem>>, vector<8x8x128xf32>
    %5 = vector.shape_cast %4 : vector<8x8x128xf32> to vector<64x128xf32>
    %c0_5 = arith.constant 0 : index
    %c0_6 = arith.constant 0 : index
    %6 = vector.load %arg5[%c0_5, %c0_6] : memref<128x512xf32, #tpu.memory_space<vmem>>, vector<128x512xf32>
    %cst = arith.constant dense<0.000000e+00> : vector<64x512xf32>
    %7 = tpu.matmul %5, %6, %cst {dimension_numbers = #tpu.dot_dimension_numbers<[1], [0], [0], [1], [0, 0, 1, 1], [], []>} : vector<64x128xf32>, vector<128x512xf32>, vector<64x512xf32> -> vector<64x512xf32>
    %c0_7 = arith.constant 0 : index
    %c0_8 = arith.constant 0 : index
    %8 = vector.load %arg7[%c0_7, %c0_8] : memref<1x512xf32, #tpu.memory_space<vmem>>, vector<1x512xf32>
    %9 = vector.broadcast %8 : vector<1x512xf32> to vector<64x512xf32>
    %10 = arith.addf %7, %9 : vector<64x512xf32>
    %11 = vector.shape_cast %10 : vector<64x512xf32> to vector<8x8x512xf32>
    %c0_9 = arith.constant 0 : index
    %c0_10 = arith.constant 0 : index
    %c0_11 = arith.constant 0 : index
    %12 = vector.load %arg12[%c0_9, %c0_10, %c0_11] : memref<8x8x512xf32, #tpu.memory_space<vmem>>, vector<8x8x512xf32>
    tpu.vector_store %arg12[%c0_9, %c0_10, %c0_11], %11 {strides = array<i32>} : memref<8x8x512xf32, #tpu.memory_space<vmem>>, vector<8x8x512xf32>,
    %c0_12 = arith.constant 0 : index
    %c0_13 = arith.constant 0 : index
    %13 = vector.load %arg10[%c0_12, %c0_13] : memref<8x128xf32, #tpu.memory_space<vmem>>, vector<8x128xf32>
    %c0_14 = arith.constant 0 : index
    %c0_15 = arith.constant 0 : index
    %14 = vector.load %arg11[%c0_14, %c0_15] : memref<8x128xf32, #tpu.memory_space<vmem>>, vector<8x128xf32>
    %c0_i32_16 = arith.constant 0 : i32
    %15 = arith.index_cast %c0_i32_16 : i32 to index
    %c0_17 = arith.constant 0 : index
    %c0_18 = arith.constant 0 : index
    %16 = vector.load %arg12[%15, %c0_17, %c0_18] : memref<8x8x512xf32, #tpu.memory_space<vmem>>, vector<1x8x512xf32>
    %17 = vector.shape_cast %16 : vector<1x8x512xf32> to vector<8x512xf32>
    %c0_19 = arith.constant 0 : index
    %c0_20 = arith.constant 0 : index
    %18 = vector.load %arg6[%c0_19, %c0_20] : memref<128x512xf32, #tpu.memory_space<vmem>>, vector<128x512xf32>
    %cst_21 = arith.constant dense<0.000000e+00> : vector<8x512xf32>
    %19 = tpu.matmul %13, %18, %cst_21 {dimension_numbers = #tpu.dot_dimension_numbers<[1], [0], [0], [1], [0, 0, 1, 1], [], []>} : vector<8x128xf32>, vector<128x512xf32>, vector<8x512xf32> -> vector<8x512xf32>
    %20 = arith.addf %17, %19 : vector<8x512xf32>
    %21 = vector.extract_strided_slice %20 {offsets = [0, 0], sizes = [8, 128], strides = [1, 1]} : vector<8x512xf32> to vector<8x128xf32>
    %cst_22 = arith.constant 5.000000e-01 : f32
    %22 = vector.broadcast %cst_22 : f32 to vector<8x128xf32>
    %23 = arith.mulf %22, %21 : vector<8x128xf32>
    %24 = math.tanh %23 : vector<8x128xf32>
    %cst_23 = arith.constant 1.000000e+00 : f32
    %25 = vector.broadcast %cst_23 : f32 to vector<8x128xf32>
    %26 = arith.addf %24, %25 : vector<8x128xf32>
    %cst_24 = arith.constant 5.000000e-01 : f32
    %27 = vector.broadcast %cst_24 : f32 to vector<8x128xf32>
    %28 = arith.mulf %27, %26 : vector<8x128xf32>
    %29 = vector.extract_strided_slice %20 {offsets = [0, 128], sizes = [8, 128], strides = [1, 1]} : vector<8x512xf32> to vector<8x128xf32>
    %cst_25 = arith.constant 5.000000e-01 : f32
    %30 = vector.broadcast %cst_25 : f32 to vector<8x128xf32>
    %31 = arith.mulf %30, %29 : vector<8x128xf32>
    %32 = math.tanh %31 : vector<8x128xf32>
    %cst_26 = arith.constant 1.000000e+00 : f32
    %33 = vector.broadcast %cst_26 : f32 to vector<8x128xf32>
    %34 = arith.addf %32, %33 : vector<8x128xf32>
    %cst_27 = arith.constant 5.000000e-01 : f32
    %35 = vector.broadcast %cst_27 : f32 to vector<8x128xf32>
    %36 = arith.mulf %35, %34 : vector<8x128xf32>
    %37 = vector.extract_strided_slice %20 {offsets = [0, 256], sizes = [8, 128], strides = [1, 1]} : vector<8x512xf32> to vector<8x128xf32>
    %38 = math.tanh %37 : vector<8x128xf32>
    %39 = vector.extract_strided_slice %20 {offsets = [0, 384], sizes = [8, 128], strides = [1, 1]} : vector<8x512xf32> to vector<8x128xf32>
    %cst_28 = arith.constant 5.000000e-01 : f32
    %40 = vector.broadcast %cst_28 : f32 to vector<8x128xf32>
    %41 = arith.mulf %40, %39 : vector<8x128xf32>
    %42 = math.tanh %41 : vector<8x128xf32>
    %cst_29 = arith.constant 1.000000e+00 : f32
    %43 = vector.broadcast %cst_29 : f32 to vector<8x128xf32>
    %44 = arith.addf %42, %43 : vector<8x128xf32>
    %cst_30 = arith.constant 5.000000e-01 : f32
    %45 = vector.broadcast %cst_30 : f32 to vector<8x128xf32>
    %46 = arith.mulf %45, %44 : vector<8x128xf32>
    %47 = arith.mulf %36, %14 : vector<8x128xf32>
    %48 = arith.mulf %28, %38 : vector<8x128xf32>
    %49 = arith.addf %47, %48 : vector<8x128xf32>
    %50 = math.tanh %49 : vector<8x128xf32>
    %51 = arith.mulf %46, %50 : vector<8x128xf32>
    %c8_i32 = arith.constant 8 : i32
    %52 = arith.muli %arg1, %c8_i32 : i32
    %53 = arith.addi %52, %c0_i32_16 : i32
    %54 = vector.broadcast %53 : i32 to vector<8x1xi32>
    %55 = arith.cmpi slt, %54, %3 : vector<8x1xi32>
    %56 = vector.shape_cast %55 : vector<8x1xi1> to vector<8x1xi1>
    %57 = vector.broadcast %56 : vector<8x1xi1> to vector<8x128xi1>
    %58 = arith.select %57, %51, %13 : vector<8x128xi1>, vector<8x128xf32>
    %59 = vector.shape_cast %55 : vector<8x1xi1> to vector<8x1xi1>
    %60 = vector.broadcast %59 : vector<8x1xi1> to vector<8x128xi1>
    %61 = arith.select %60, %49, %14 : vector<8x128xi1>, vector<8x128xf32>
    %c1_i32 = arith.constant 1 : i32
    %62 = arith.index_cast %c1_i32 : i32 to index
    %c0_31 = arith.constant 0 : index
    %c0_32 = arith.constant 0 : index
    %63 = vector.load %arg12[%62, %c0_31, %c0_32] : memref<8x8x512xf32, #tpu.memory_space<vmem>>, vector<1x8x512xf32>
    %64 = vector.shape_cast %63 : vector<1x8x512xf32> to vector<8x512xf32>
    %c0_33 = arith.constant 0 : index
    %c0_34 = arith.constant 0 : index
    %65 = vector.load %arg6[%c0_33, %c0_34] : memref<128x512xf32, #tpu.memory_space<vmem>>, vector<128x512xf32>
    %cst_35 = arith.constant dense<0.000000e+00> : vector<8x512xf32>
    %66 = tpu.matmul %58, %65, %cst_35 {dimension_numbers = #tpu.dot_dimension_numbers<[1], [0], [0], [1], [0, 0, 1, 1], [], []>} : vector<8x128xf32>, vector<128x512xf32>, vector<8x512xf32> -> vector<8x512xf32>
    %67 = arith.addf %64, %66 : vector<8x512xf32>
    %68 = vector.extract_strided_slice %67 {offsets = [0, 0], sizes = [8, 128], strides = [1, 1]} : vector<8x512xf32> to vector<8x128xf32>
    %cst_36 = arith.constant 5.000000e-01 : f32
    %69 = vector.broadcast %cst_36 : f32 to vector<8x128xf32>
    %70 = arith.mulf %69, %68 : vector<8x128xf32>
    %71 = math.tanh %70 : vector<8x128xf32>
    %cst_37 = arith.constant 1.000000e+00 : f32
    %72 = vector.broadcast %cst_37 : f32 to vector<8x128xf32>
    %73 = arith.addf %71, %72 : vector<8x128xf32>
    %cst_38 = arith.constant 5.000000e-01 : f32
    %74 = vector.broadcast %cst_38 : f32 to vector<8x128xf32>
    %75 = arith.mulf %74, %73 : vector<8x128xf32>
    %76 = vector.extract_strided_slice %67 {offsets = [0, 128], sizes = [8, 128], strides = [1, 1]} : vector<8x512xf32> to vector<8x128xf32>
    %cst_39 = arith.constant 5.000000e-01 : f32
    %77 = vector.broadcast %cst_39 : f32 to vector<8x128xf32>
    %78 = arith.mulf %77, %76 : vector<8x128xf32>
    %79 = math.tanh %78 : vector<8x128xf32>
    %cst_40 = arith.constant 1.000000e+00 : f32
    %80 = vector.broadcast %cst_40 : f32 to vector<8x128xf32>
    %81 = arith.addf %79, %80 : vector<8x128xf32>
    %cst_41 = arith.constant 5.000000e-01 : f32
    %82 = vector.broadcast %cst_41 : f32 to vector<8x128xf32>
    %83 = arith.mulf %82, %81 : vector<8x128xf32>
    %84 = vector.extract_strided_slice %67 {offsets = [0, 256], sizes = [8, 128], strides = [1, 1]} : vector<8x512xf32> to vector<8x128xf32>
    %85 = math.tanh %84 : vector<8x128xf32>
    %86 = vector.extract_strided_slice %67 {offsets = [0, 384], sizes = [8, 128], strides = [1, 1]} : vector<8x512xf32> to vector<8x128xf32>
    %cst_42 = arith.constant 5.000000e-01 : f32
    %87 = vector.broadcast %cst_42 : f32 to vector<8x128xf32>
    %88 = arith.mulf %87, %86 : vector<8x128xf32>
    %89 = math.tanh %88 : vector<8x128xf32>
    %cst_43 = arith.constant 1.000000e+00 : f32
    %90 = vector.broadcast %cst_43 : f32 to vector<8x128xf32>
    %91 = arith.addf %89, %90 : vector<8x128xf32>
    %cst_44 = arith.constant 5.000000e-01 : f32
    %92 = vector.broadcast %cst_44 : f32 to vector<8x128xf32>
    %93 = arith.mulf %92, %91 : vector<8x128xf32>
    %94 = arith.mulf %83, %61 : vector<8x128xf32>
    %95 = arith.mulf %75, %85 : vector<8x128xf32>
    %96 = arith.addf %94, %95 : vector<8x128xf32>
    %97 = math.tanh %96 : vector<8x128xf32>
    %98 = arith.mulf %93, %97 : vector<8x128xf32>
    %c8_i32_45 = arith.constant 8 : i32
    %99 = arith.muli %arg1, %c8_i32_45 : i32
    %100 = arith.addi %99, %c1_i32 : i32
    %101 = vector.broadcast %100 : i32 to vector<8x1xi32>
    %102 = arith.cmpi slt, %101, %3 : vector<8x1xi32>
    %103 = vector.shape_cast %102 : vector<8x1xi1> to vector<8x1xi1>
    %104 = vector.broadcast %103 : vector<8x1xi1> to vector<8x128xi1>
    %105 = arith.select %104, %98, %58 : vector<8x128xi1>, vector<8x128xf32>
    %106 = vector.shape_cast %102 : vector<8x1xi1> to vector<8x1xi1>
    %107 = vector.broadcast %106 : vector<8x1xi1> to vector<8x128xi1>
    %108 = arith.select %107, %96, %61 : vector<8x128xi1>, vector<8x128xf32>
    %c2_i32 = arith.constant 2 : i32
    %109 = arith.index_cast %c2_i32 : i32 to index
    %c0_46 = arith.constant 0 : index
    %c0_47 = arith.constant 0 : index
    %110 = vector.load %arg12[%109, %c0_46, %c0_47] : memref<8x8x512xf32, #tpu.memory_space<vmem>>, vector<1x8x512xf32>
    %111 = vector.shape_cast %110 : vector<1x8x512xf32> to vector<8x512xf32>
    %c0_48 = arith.constant 0 : index
    %c0_49 = arith.constant 0 : index
    %112 = vector.load %arg6[%c0_48, %c0_49] : memref<128x512xf32, #tpu.memory_space<vmem>>, vector<128x512xf32>
    %cst_50 = arith.constant dense<0.000000e+00> : vector<8x512xf32>
    %113 = tpu.matmul %105, %112, %cst_50 {dimension_numbers = #tpu.dot_dimension_numbers<[1], [0], [0], [1], [0, 0, 1, 1], [], []>} : vector<8x128xf32>, vector<128x512xf32>, vector<8x512xf32> -> vector<8x512xf32>
    %114 = arith.addf %111, %113 : vector<8x512xf32>
    %115 = vector.extract_strided_slice %114 {offsets = [0, 0], sizes = [8, 128], strides = [1, 1]} : vector<8x512xf32> to vector<8x128xf32>
    %cst_51 = arith.constant 5.000000e-01 : f32
    %116 = vector.broadcast %cst_51 : f32 to vector<8x128xf32>
    %117 = arith.mulf %116, %115 : vector<8x128xf32>
    %118 = math.tanh %117 : vector<8x128xf32>
    %cst_52 = arith.constant 1.000000e+00 : f32
    %119 = vector.broadcast %cst_52 : f32 to vector<8x128xf32>
    %120 = arith.addf %118, %119 : vector<8x128xf32>
    %cst_53 = arith.constant 5.000000e-01 : f32
    %121 = vector.broadcast %cst_53 : f32 to vector<8x128xf32>
    %122 = arith.mulf %121, %120 : vector<8x128xf32>
    %123 = vector.extract_strided_slice %114 {offsets = [0, 128], sizes = [8, 128], strides = [1, 1]} : vector<8x512xf32> to vector<8x128xf32>
    %cst_54 = arith.constant 5.000000e-01 : f32
    %124 = vector.broadcast %cst_54 : f32 to vector<8x128xf32>
    %125 = arith.mulf %124, %123 : vector<8x128xf32>
    %126 = math.tanh %125 : vector<8x128xf32>
    %cst_55 = arith.constant 1.000000e+00 : f32
    %127 = vector.broadcast %cst_55 : f32 to vector<8x128xf32>
    %128 = arith.addf %126, %127 : vector<8x128xf32>
    %cst_56 = arith.constant 5.000000e-01 : f32
    %129 = vector.broadcast %cst_56 : f32 to vector<8x128xf32>
    %130 = arith.mulf %129, %128 : vector<8x128xf32>
    %131 = vector.extract_strided_slice %114 {offsets = [0, 256], sizes = [8, 128], strides = [1, 1]} : vector<8x512xf32> to vector<8x128xf32>
    %132 = math.tanh %131 : vector<8x128xf32>
    %133 = vector.extract_strided_slice %114 {offsets = [0, 384], sizes = [8, 128], strides = [1, 1]} : vector<8x512xf32> to vector<8x128xf32>
    %cst_57 = arith.constant 5.000000e-01 : f32
    %134 = vector.broadcast %cst_57 : f32 to vector<8x128xf32>
    %135 = arith.mulf %134, %133 : vector<8x128xf32>
    %136 = math.tanh %135 : vector<8x128xf32>
    %cst_58 = arith.constant 1.000000e+00 : f32
    %137 = vector.broadcast %cst_58 : f32 to vector<8x128xf32>
    %138 = arith.addf %136, %137 : vector<8x128xf32>
    %cst_59 = arith.constant 5.000000e-01 : f32
    %139 = vector.broadcast %cst_59 : f32 to vector<8x128xf32>
    %140 = arith.mulf %139, %138 : vector<8x128xf32>
    %141 = arith.mulf %130, %108 : vector<8x128xf32>
    %142 = arith.mulf %122, %132 : vector<8x128xf32>
    %143 = arith.addf %141, %142 : vector<8x128xf32>
    %144 = math.tanh %143 : vector<8x128xf32>
    %145 = arith.mulf %140, %144 : vector<8x128xf32>
    %c8_i32_60 = arith.constant 8 : i32
    %146 = arith.muli %arg1, %c8_i32_60 : i32
    %147 = arith.addi %146, %c2_i32 : i32
    %148 = vector.broadcast %147 : i32 to vector<8x1xi32>
    %149 = arith.cmpi slt, %148, %3 : vector<8x1xi32>
    %150 = vector.shape_cast %149 : vector<8x1xi1> to vector<8x1xi1>
    %151 = vector.broadcast %150 : vector<8x1xi1> to vector<8x128xi1>
    %152 = arith.select %151, %145, %105 : vector<8x128xi1>, vector<8x128xf32>
    %153 = vector.shape_cast %149 : vector<8x1xi1> to vector<8x1xi1>
    %154 = vector.broadcast %153 : vector<8x1xi1> to vector<8x128xi1>
    %155 = arith.select %154, %143, %108 : vector<8x128xi1>, vector<8x128xf32>
    %c3_i32 = arith.constant 3 : i32
    %156 = arith.index_cast %c3_i32 : i32 to index
    %c0_61 = arith.constant 0 : index
    %c0_62 = arith.constant 0 : index
    %157 = vector.load %arg12[%156, %c0_61, %c0_62] : memref<8x8x512xf32, #tpu.memory_space<vmem>>, vector<1x8x512xf32>
    %158 = vector.shape_cast %157 : vector<1x8x512xf32> to vector<8x512xf32>
    %c0_63 = arith.constant 0 : index
    %c0_64 = arith.constant 0 : index
    %159 = vector.load %arg6[%c0_63, %c0_64] : memref<128x512xf32, #tpu.memory_space<vmem>>, vector<128x512xf32>
    %cst_65 = arith.constant dense<0.000000e+00> : vector<8x512xf32>
    %160 = tpu.matmul %152, %159, %cst_65 {dimension_numbers = #tpu.dot_dimension_numbers<[1], [0], [0], [1], [0, 0, 1, 1], [], []>} : vector<8x128xf32>, vector<128x512xf32>, vector<8x512xf32> -> vector<8x512xf32>
    %161 = arith.addf %158, %160 : vector<8x512xf32>
    %162 = vector.extract_strided_slice %161 {offsets = [0, 0], sizes = [8, 128], strides = [1, 1]} : vector<8x512xf32> to vector<8x128xf32>
    %cst_66 = arith.constant 5.000000e-01 : f32
    %163 = vector.broadcast %cst_66 : f32 to vector<8x128xf32>
    %164 = arith.mulf %163, %162 : vector<8x128xf32>
    %165 = math.tanh %164 : vector<8x128xf32>
    %cst_67 = arith.constant 1.000000e+00 : f32
    %166 = vector.broadcast %cst_67 : f32 to vector<8x128xf32>
    %167 = arith.addf %165, %166 : vector<8x128xf32>
    %cst_68 = arith.constant 5.000000e-01 : f32
    %168 = vector.broadcast %cst_68 : f32 to vector<8x128xf32>
    %169 = arith.mulf %168, %167 : vector<8x128xf32>
    %170 = vector.extract_strided_slice %161 {offsets = [0, 128], sizes = [8, 128], strides = [1, 1]} : vector<8x512xf32> to vector<8x128xf32>
    %cst_69 = arith.constant 5.000000e-01 : f32
    %171 = vector.broadcast %cst_69 : f32 to vector<8x128xf32>
    %172 = arith.mulf %171, %170 : vector<8x128xf32>
    %173 = math.tanh %172 : vector<8x128xf32>
    %cst_70 = arith.constant 1.000000e+00 : f32
    %174 = vector.broadcast %cst_70 : f32 to vector<8x128xf32>
    %175 = arith.addf %173, %174 : vector<8x128xf32>
    %cst_71 = arith.constant 5.000000e-01 : f32
    %176 = vector.broadcast %cst_71 : f32 to vector<8x128xf32>
    %177 = arith.mulf %176, %175 : vector<8x128xf32>
    %178 = vector.extract_strided_slice %161 {offsets = [0, 256], sizes = [8, 128], strides = [1, 1]} : vector<8x512xf32> to vector<8x128xf32>
    %179 = math.tanh %178 : vector<8x128xf32>
    %180 = vector.extract_strided_slice %161 {offsets = [0, 384], sizes = [8, 128], strides = [1, 1]} : vector<8x512xf32> to vector<8x128xf32>
    %cst_72 = arith.constant 5.000000e-01 : f32
    %181 = vector.broadcast %cst_72 : f32 to vector<8x128xf32>
    %182 = arith.mulf %181, %180 : vector<8x128xf32>
    %183 = math.tanh %182 : vector<8x128xf32>
    %cst_73 = arith.constant 1.000000e+00 : f32
    %184 = vector.broadcast %cst_73 : f32 to vector<8x128xf32>
    %185 = arith.addf %183, %184 : vector<8x128xf32>
    %cst_74 = arith.constant 5.000000e-01 : f32
    %186 = vector.broadcast %cst_74 : f32 to vector<8x128xf32>
    %187 = arith.mulf %186, %185 : vector<8x128xf32>
    %188 = arith.mulf %177, %155 : vector<8x128xf32>
    %189 = arith.mulf %169, %179 : vector<8x128xf32>
    %190 = arith.addf %188, %189 : vector<8x128xf32>
    %191 = math.tanh %190 : vector<8x128xf32>
    %192 = arith.mulf %187, %191 : vector<8x128xf32>
    %c8_i32_75 = arith.constant 8 : i32
    %193 = arith.muli %arg1, %c8_i32_75 : i32
    %194 = arith.addi %193, %c3_i32 : i32
    %195 = vector.broadcast %194 : i32 to vector<8x1xi32>
    %196 = arith.cmpi slt, %195, %3 : vector<8x1xi32>
    %197 = vector.shape_cast %196 : vector<8x1xi1> to vector<8x1xi1>
    %198 = vector.broadcast %197 : vector<8x1xi1> to vector<8x128xi1>
    %199 = arith.select %198, %192, %152 : vector<8x128xi1>, vector<8x128xf32>
    %200 = vector.shape_cast %196 : vector<8x1xi1> to vector<8x1xi1>
    %201 = vector.broadcast %200 : vector<8x1xi1> to vector<8x128xi1>
    %202 = arith.select %201, %190, %155 : vector<8x128xi1>, vector<8x128xf32>
    %c4_i32 = arith.constant 4 : i32
    %203 = arith.index_cast %c4_i32 : i32 to index
    %c0_76 = arith.constant 0 : index
    %c0_77 = arith.constant 0 : index
    %204 = vector.load %arg12[%203, %c0_76, %c0_77] : memref<8x8x512xf32, #tpu.memory_space<vmem>>, vector<1x8x512xf32>
    %205 = vector.shape_cast %204 : vector<1x8x512xf32> to vector<8x512xf32>
    %c0_78 = arith.constant 0 : index
    %c0_79 = arith.constant 0 : index
    %206 = vector.load %arg6[%c0_78, %c0_79] : memref<128x512xf32, #tpu.memory_space<vmem>>, vector<128x512xf32>
    %cst_80 = arith.constant dense<0.000000e+00> : vector<8x512xf32>
    %207 = tpu.matmul %199, %206, %cst_80 {dimension_numbers = #tpu.dot_dimension_numbers<[1], [0], [0], [1], [0, 0, 1, 1], [], []>} : vector<8x128xf32>, vector<128x512xf32>, vector<8x512xf32> -> vector<8x512xf32>
    %208 = arith.addf %205, %207 : vector<8x512xf32>
    %209 = vector.extract_strided_slice %208 {offsets = [0, 0], sizes = [8, 128], strides = [1, 1]} : vector<8x512xf32> to vector<8x128xf32>
    %cst_81 = arith.constant 5.000000e-01 : f32
    %210 = vector.broadcast %cst_81 : f32 to vector<8x128xf32>
    %211 = arith.mulf %210, %209 : vector<8x128xf32>
    %212 = math.tanh %211 : vector<8x128xf32>
    %cst_82 = arith.constant 1.000000e+00 : f32
    %213 = vector.broadcast %cst_82 : f32 to vector<8x128xf32>
    %214 = arith.addf %212, %213 : vector<8x128xf32>
    %cst_83 = arith.constant 5.000000e-01 : f32
    %215 = vector.broadcast %cst_83 : f32 to vector<8x128xf32>
    %216 = arith.mulf %215, %214 : vector<8x128xf32>
    %217 = vector.extract_strided_slice %208 {offsets = [0, 128], sizes = [8, 128], strides = [1, 1]} : vector<8x512xf32> to vector<8x128xf32>
    %cst_84 = arith.constant 5.000000e-01 : f32
    %218 = vector.broadcast %cst_84 : f32 to vector<8x128xf32>
    %219 = arith.mulf %218, %217 : vector<8x128xf32>
    %220 = math.tanh %219 : vector<8x128xf32>
    %cst_85 = arith.constant 1.000000e+00 : f32
    %221 = vector.broadcast %cst_85 : f32 to vector<8x128xf32>
    %222 = arith.addf %220, %221 : vector<8x128xf32>
    %cst_86 = arith.constant 5.000000e-01 : f32
    %223 = vector.broadcast %cst_86 : f32 to vector<8x128xf32>
    %224 = arith.mulf %223, %222 : vector<8x128xf32>
    %225 = vector.extract_strided_slice %208 {offsets = [0, 256], sizes = [8, 128], strides = [1, 1]} : vector<8x512xf32> to vector<8x128xf32>
    %226 = math.tanh %225 : vector<8x128xf32>
    %227 = vector.extract_strided_slice %208 {offsets = [0, 384], sizes = [8, 128], strides = [1, 1]} : vector<8x512xf32> to vector<8x128xf32>
    %cst_87 = arith.constant 5.000000e-01 : f32
    %228 = vector.broadcast %cst_87 : f32 to vector<8x128xf32>
    %229 = arith.mulf %228, %227 : vector<8x128xf32>
    %230 = math.tanh %229 : vector<8x128xf32>
    %cst_88 = arith.constant 1.000000e+00 : f32
    %231 = vector.broadcast %cst_88 : f32 to vector<8x128xf32>
    %232 = arith.addf %230, %231 : vector<8x128xf32>
    %cst_89 = arith.constant 5.000000e-01 : f32
    %233 = vector.broadcast %cst_89 : f32 to vector<8x128xf32>
    %234 = arith.mulf %233, %232 : vector<8x128xf32>
    %235 = arith.mulf %224, %202 : vector<8x128xf32>
    %236 = arith.mulf %216, %226 : vector<8x128xf32>
    %237 = arith.addf %235, %236 : vector<8x128xf32>
    %238 = math.tanh %237 : vector<8x128xf32>
    %239 = arith.mulf %234, %238 : vector<8x128xf32>
    %c8_i32_90 = arith.constant 8 : i32
    %240 = arith.muli %arg1, %c8_i32_90 : i32
    %241 = arith.addi %240, %c4_i32 : i32
    %242 = vector.broadcast %241 : i32 to vector<8x1xi32>
    %243 = arith.cmpi slt, %242, %3 : vector<8x1xi32>
    %244 = vector.shape_cast %243 : vector<8x1xi1> to vector<8x1xi1>
    %245 = vector.broadcast %244 : vector<8x1xi1> to vector<8x128xi1>
    %246 = arith.select %245, %239, %199 : vector<8x128xi1>, vector<8x128xf32>
    %247 = vector.shape_cast %243 : vector<8x1xi1> to vector<8x1xi1>
    %248 = vector.broadcast %247 : vector<8x1xi1> to vector<8x128xi1>
    %249 = arith.select %248, %237, %202 : vector<8x128xi1>, vector<8x128xf32>
    %c5_i32 = arith.constant 5 : i32
    %250 = arith.index_cast %c5_i32 : i32 to index
    %c0_91 = arith.constant 0 : index
    %c0_92 = arith.constant 0 : index
    %251 = vector.load %arg12[%250, %c0_91, %c0_92] : memref<8x8x512xf32, #tpu.memory_space<vmem>>, vector<1x8x512xf32>
    %252 = vector.shape_cast %251 : vector<1x8x512xf32> to vector<8x512xf32>
    %c0_93 = arith.constant 0 : index
    %c0_94 = arith.constant 0 : index
    %253 = vector.load %arg6[%c0_93, %c0_94] : memref<128x512xf32, #tpu.memory_space<vmem>>, vector<128x512xf32>
    %cst_95 = arith.constant dense<0.000000e+00> : vector<8x512xf32>
    %254 = tpu.matmul %246, %253, %cst_95 {dimension_numbers = #tpu.dot_dimension_numbers<[1], [0], [0], [1], [0, 0, 1, 1], [], []>} : vector<8x128xf32>, vector<128x512xf32>, vector<8x512xf32> -> vector<8x512xf32>
    %255 = arith.addf %252, %254 : vector<8x512xf32>
    %256 = vector.extract_strided_slice %255 {offsets = [0, 0], sizes = [8, 128], strides = [1, 1]} : vector<8x512xf32> to vector<8x128xf32>
    %cst_96 = arith.constant 5.000000e-01 : f32
    %257 = vector.broadcast %cst_96 : f32 to vector<8x128xf32>
    %258 = arith.mulf %257, %256 : vector<8x128xf32>
    %259 = math.tanh %258 : vector<8x128xf32>
    %cst_97 = arith.constant 1.000000e+00 : f32
    %260 = vector.broadcast %cst_97 : f32 to vector<8x128xf32>
    %261 = arith.addf %259, %260 : vector<8x128xf32>
    %cst_98 = arith.constant 5.000000e-01 : f32
    %262 = vector.broadcast %cst_98 : f32 to vector<8x128xf32>
    %263 = arith.mulf %262, %261 : vector<8x128xf32>
    %264 = vector.extract_strided_slice %255 {offsets = [0, 128], sizes = [8, 128], strides = [1, 1]} : vector<8x512xf32> to vector<8x128xf32>
    %cst_99 = arith.constant 5.000000e-01 : f32
    %265 = vector.broadcast %cst_99 : f32 to vector<8x128xf32>
    %266 = arith.mulf %265, %264 : vector<8x128xf32>
    %267 = math.tanh %266 : vector<8x128xf32>
    %cst_100 = arith.constant 1.000000e+00 : f32
    %268 = vector.broadcast %cst_100 : f32 to vector<8x128xf32>
    %269 = arith.addf %267, %268 : vector<8x128xf32>
    %cst_101 = arith.constant 5.000000e-01 : f32
    %270 = vector.broadcast %cst_101 : f32 to vector<8x128xf32>
    %271 = arith.mulf %270, %269 : vector<8x128xf32>
    %272 = vector.extract_strided_slice %255 {offsets = [0, 256], sizes = [8, 128], strides = [1, 1]} : vector<8x512xf32> to vector<8x128xf32>
    %273 = math.tanh %272 : vector<8x128xf32>
    %274 = vector.extract_strided_slice %255 {offsets = [0, 384], sizes = [8, 128], strides = [1, 1]} : vector<8x512xf32> to vector<8x128xf32>
    %cst_102 = arith.constant 5.000000e-01 : f32
    %275 = vector.broadcast %cst_102 : f32 to vector<8x128xf32>
    %276 = arith.mulf %275, %274 : vector<8x128xf32>
    %277 = math.tanh %276 : vector<8x128xf32>
    %cst_103 = arith.constant 1.000000e+00 : f32
    %278 = vector.broadcast %cst_103 : f32 to vector<8x128xf32>
    %279 = arith.addf %277, %278 : vector<8x128xf32>
    %cst_104 = arith.constant 5.000000e-01 : f32
    %280 = vector.broadcast %cst_104 : f32 to vector<8x128xf32>
    %281 = arith.mulf %280, %279 : vector<8x128xf32>
    %282 = arith.mulf %271, %249 : vector<8x128xf32>
    %283 = arith.mulf %263, %273 : vector<8x128xf32>
    %284 = arith.addf %282, %283 : vector<8x128xf32>
    %285 = math.tanh %284 : vector<8x128xf32>
    %286 = arith.mulf %281, %285 : vector<8x128xf32>
    %c8_i32_105 = arith.constant 8 : i32
    %287 = arith.muli %arg1, %c8_i32_105 : i32
    %288 = arith.addi %287, %c5_i32 : i32
    %289 = vector.broadcast %288 : i32 to vector<8x1xi32>
    %290 = arith.cmpi slt, %289, %3 : vector<8x1xi32>
    %291 = vector.shape_cast %290 : vector<8x1xi1> to vector<8x1xi1>
    %292 = vector.broadcast %291 : vector<8x1xi1> to vector<8x128xi1>
    %293 = arith.select %292, %286, %246 : vector<8x128xi1>, vector<8x128xf32>
    %294 = vector.shape_cast %290 : vector<8x1xi1> to vector<8x1xi1>
    %295 = vector.broadcast %294 : vector<8x1xi1> to vector<8x128xi1>
    %296 = arith.select %295, %284, %249 : vector<8x128xi1>, vector<8x128xf32>
    %c6_i32 = arith.constant 6 : i32
    %297 = arith.index_cast %c6_i32 : i32 to index
    %c0_106 = arith.constant 0 : index
    %c0_107 = arith.constant 0 : index
    %298 = vector.load %arg12[%297, %c0_106, %c0_107] : memref<8x8x512xf32, #tpu.memory_space<vmem>>, vector<1x8x512xf32>
    %299 = vector.shape_cast %298 : vector<1x8x512xf32> to vector<8x512xf32>
    %c0_108 = arith.constant 0 : index
    %c0_109 = arith.constant 0 : index
    %300 = vector.load %arg6[%c0_108, %c0_109] : memref<128x512xf32, #tpu.memory_space<vmem>>, vector<128x512xf32>
    %cst_110 = arith.constant dense<0.000000e+00> : vector<8x512xf32>
    %301 = tpu.matmul %293, %300, %cst_110 {dimension_numbers = #tpu.dot_dimension_numbers<[1], [0], [0], [1], [0, 0, 1, 1], [], []>} : vector<8x128xf32>, vector<128x512xf32>, vector<8x512xf32> -> vector<8x512xf32>
    %302 = arith.addf %299, %301 : vector<8x512xf32>
    %303 = vector.extract_strided_slice %302 {offsets = [0, 0], sizes = [8, 128], strides = [1, 1]} : vector<8x512xf32> to vector<8x128xf32>
    %cst_111 = arith.constant 5.000000e-01 : f32
    %304 = vector.broadcast %cst_111 : f32 to vector<8x128xf32>
    %305 = arith.mulf %304, %303 : vector<8x128xf32>
    %306 = math.tanh %305 : vector<8x128xf32>
    %cst_112 = arith.constant 1.000000e+00 : f32
    %307 = vector.broadcast %cst_112 : f32 to vector<8x128xf32>
    %308 = arith.addf %306, %307 : vector<8x128xf32>
    %cst_113 = arith.constant 5.000000e-01 : f32
    %309 = vector.broadcast %cst_113 : f32 to vector<8x128xf32>
    %310 = arith.mulf %309, %308 : vector<8x128xf32>
    %311 = vector.extract_strided_slice %302 {offsets = [0, 128], sizes = [8, 128], strides = [1, 1]} : vector<8x512xf32> to vector<8x128xf32>
    %cst_114 = arith.constant 5.000000e-01 : f32
    %312 = vector.broadcast %cst_114 : f32 to vector<8x128xf32>
    %313 = arith.mulf %312, %311 : vector<8x128xf32>
    %314 = math.tanh %313 : vector<8x128xf32>
    %cst_115 = arith.constant 1.000000e+00 : f32
    %315 = vector.broadcast %cst_115 : f32 to vector<8x128xf32>
    %316 = arith.addf %314, %315 : vector<8x128xf32>
    %cst_116 = arith.constant 5.000000e-01 : f32
    %317 = vector.broadcast %cst_116 : f32 to vector<8x128xf32>
    %318 = arith.mulf %317, %316 : vector<8x128xf32>
    %319 = vector.extract_strided_slice %302 {offsets = [0, 256], sizes = [8, 128], strides = [1, 1]} : vector<8x512xf32> to vector<8x128xf32>
    %320 = math.tanh %319 : vector<8x128xf32>
    %321 = vector.extract_strided_slice %302 {offsets = [0, 384], sizes = [8, 128], strides = [1, 1]} : vector<8x512xf32> to vector<8x128xf32>
    %cst_117 = arith.constant 5.000000e-01 : f32
    %322 = vector.broadcast %cst_117 : f32 to vector<8x128xf32>
    %323 = arith.mulf %322, %321 : vector<8x128xf32>
    %324 = math.tanh %323 : vector<8x128xf32>
    %cst_118 = arith.constant 1.000000e+00 : f32
    %325 = vector.broadcast %cst_118 : f32 to vector<8x128xf32>
    %326 = arith.addf %324, %325 : vector<8x128xf32>
    %cst_119 = arith.constant 5.000000e-01 : f32
    %327 = vector.broadcast %cst_119 : f32 to vector<8x128xf32>
    %328 = arith.mulf %327, %326 : vector<8x128xf32>
    %329 = arith.mulf %318, %296 : vector<8x128xf32>
    %330 = arith.mulf %310, %320 : vector<8x128xf32>
    %331 = arith.addf %329, %330 : vector<8x128xf32>
    %332 = math.tanh %331 : vector<8x128xf32>
    %333 = arith.mulf %328, %332 : vector<8x128xf32>
    %c8_i32_120 = arith.constant 8 : i32
    %334 = arith.muli %arg1, %c8_i32_120 : i32
    %335 = arith.addi %334, %c6_i32 : i32
    %336 = vector.broadcast %335 : i32 to vector<8x1xi32>
    %337 = arith.cmpi slt, %336, %3 : vector<8x1xi32>
    %338 = vector.shape_cast %337 : vector<8x1xi1> to vector<8x1xi1>
    %339 = vector.broadcast %338 : vector<8x1xi1> to vector<8x128xi1>
    %340 = arith.select %339, %333, %293 : vector<8x128xi1>, vector<8x128xf32>
    %341 = vector.shape_cast %337 : vector<8x1xi1> to vector<8x1xi1>
    %342 = vector.broadcast %341 : vector<8x1xi1> to vector<8x128xi1>
    %343 = arith.select %342, %331, %296 : vector<8x128xi1>, vector<8x128xf32>
    %c7_i32 = arith.constant 7 : i32
    %344 = arith.index_cast %c7_i32 : i32 to index
    %c0_121 = arith.constant 0 : index
    %c0_122 = arith.constant 0 : index
    %345 = vector.load %arg12[%344, %c0_121, %c0_122] : memref<8x8x512xf32, #tpu.memory_space<vmem>>, vector<1x8x512xf32>
    %346 = vector.shape_cast %345 : vector<1x8x512xf32> to vector<8x512xf32>
    %c0_123 = arith.constant 0 : index
    %c0_124 = arith.constant 0 : index
    %347 = vector.load %arg6[%c0_123, %c0_124] : memref<128x512xf32, #tpu.memory_space<vmem>>, vector<128x512xf32>
    %cst_125 = arith.constant dense<0.000000e+00> : vector<8x512xf32>
    %348 = tpu.matmul %340, %347, %cst_125 {dimension_numbers = #tpu.dot_dimension_numbers<[1], [0], [0], [1], [0, 0, 1, 1], [], []>} : vector<8x128xf32>, vector<128x512xf32>, vector<8x512xf32> -> vector<8x512xf32>
    %349 = arith.addf %346, %348 : vector<8x512xf32>
    %350 = vector.extract_strided_slice %349 {offsets = [0, 0], sizes = [8, 128], strides = [1, 1]} : vector<8x512xf32> to vector<8x128xf32>
    %cst_126 = arith.constant 5.000000e-01 : f32
    %351 = vector.broadcast %cst_126 : f32 to vector<8x128xf32>
    %352 = arith.mulf %351, %350 : vector<8x128xf32>
    %353 = math.tanh %352 : vector<8x128xf32>
    %cst_127 = arith.constant 1.000000e+00 : f32
    %354 = vector.broadcast %cst_127 : f32 to vector<8x128xf32>
    %355 = arith.addf %353, %354 : vector<8x128xf32>
    %cst_128 = arith.constant 5.000000e-01 : f32
    %356 = vector.broadcast %cst_128 : f32 to vector<8x128xf32>
    %357 = arith.mulf %356, %355 : vector<8x128xf32>
    %358 = vector.extract_strided_slice %349 {offsets = [0, 128], sizes = [8, 128], strides = [1, 1]} : vector<8x512xf32> to vector<8x128xf32>
    %cst_129 = arith.constant 5.000000e-01 : f32
    %359 = vector.broadcast %cst_129 : f32 to vector<8x128xf32>
    %360 = arith.mulf %359, %358 : vector<8x128xf32>
    %361 = math.tanh %360 : vector<8x128xf32>
    %cst_130 = arith.constant 1.000000e+00 : f32
    %362 = vector.broadcast %cst_130 : f32 to vector<8x128xf32>
    %363 = arith.addf %361, %362 : vector<8x128xf32>
    %cst_131 = arith.constant 5.000000e-01 : f32
    %364 = vector.broadcast %cst_131 : f32 to vector<8x128xf32>
    %365 = arith.mulf %364, %363 : vector<8x128xf32>
    %366 = vector.extract_strided_slice %349 {offsets = [0, 256], sizes = [8, 128], strides = [1, 1]} : vector<8x512xf32> to vector<8x128xf32>
    %367 = math.tanh %366 : vector<8x128xf32>
    %368 = vector.extract_strided_slice %349 {offsets = [0, 384], sizes = [8, 128], strides = [1, 1]} : vector<8x512xf32> to vector<8x128xf32>
    %cst_132 = arith.constant 5.000000e-01 : f32
    %369 = vector.broadcast %cst_132 : f32 to vector<8x128xf32>
    %370 = arith.mulf %369, %368 : vector<8x128xf32>
    %371 = math.tanh %370 : vector<8x128xf32>
    %cst_133 = arith.constant 1.000000e+00 : f32
    %372 = vector.broadcast %cst_133 : f32 to vector<8x128xf32>
    %373 = arith.addf %371, %372 : vector<8x128xf32>
    %cst_134 = arith.constant 5.000000e-01 : f32
    %374 = vector.broadcast %cst_134 : f32 to vector<8x128xf32>
    %375 = arith.mulf %374, %373 : vector<8x128xf32>
    %376 = arith.mulf %365, %343 : vector<8x128xf32>
    %377 = arith.mulf %357, %367 : vector<8x128xf32>
    %378 = arith.addf %376, %377 : vector<8x128xf32>
    %379 = math.tanh %378 : vector<8x128xf32>
    %380 = arith.mulf %375, %379 : vector<8x128xf32>
    %c8_i32_135 = arith.constant 8 : i32
    %381 = arith.muli %arg1, %c8_i32_135 : i32
    %382 = arith.addi %381, %c7_i32 : i32
    %383 = vector.broadcast %382 : i32 to vector<8x1xi32>
    %384 = arith.cmpi slt, %383, %3 : vector<8x1xi32>
    %385 = vector.shape_cast %384 : vector<8x1xi1> to vector<8x1xi1>
    %386 = vector.broadcast %385 : vector<8x1xi1> to vector<8x128xi1>
    %387 = arith.select %386, %380, %340 : vector<8x128xi1>, vector<8x128xf32>
    %388 = vector.shape_cast %384 : vector<8x1xi1> to vector<8x1xi1>
    %389 = vector.broadcast %388 : vector<8x1xi1> to vector<8x128xi1>
    %390 = arith.select %389, %378, %343 : vector<8x128xi1>, vector<8x128xf32>
    %c8_i32_136 = arith.constant 8 : i32
    %c0_137 = arith.constant 0 : index
    %c0_138 = arith.constant 0 : index
    %391 = vector.load %arg10[%c0_137, %c0_138] : memref<8x128xf32, #tpu.memory_space<vmem>>, vector<8x128xf32>
    tpu.vector_store %arg10[%c0_137, %c0_138], %387 {strides = array<i32>} : memref<8x128xf32, #tpu.memory_space<vmem>>, vector<8x128xf32>,
    %c0_139 = arith.constant 0 : index
    %c0_140 = arith.constant 0 : index
    %392 = vector.load %arg11[%c0_139, %c0_140] : memref<8x128xf32, #tpu.memory_space<vmem>>, vector<8x128xf32>
    tpu.vector_store %arg11[%c0_139, %c0_140], %390 {strides = array<i32>} : memref<8x128xf32, #tpu.memory_space<vmem>>, vector<8x128xf32>,
    %c2_i32_141 = arith.constant 2 : i32
    %393 = arith.cmpi eq, %arg1, %c2_i32_141 : i32
    %394 = arith.extui %393 : i1 to i32
    %c0_i32_142 = arith.constant 0 : i32
    %395 = arith.cmpi ne, %394, %c0_i32_142 : i32
    scf.if %395 {
      %c0_143 = arith.constant 0 : index
      %c0_144 = arith.constant 0 : index
      %c0_145 = arith.constant 0 : index
      %396 = vector.load %arg4[%c0_143, %c0_144, %c0_145] : memref<4x8x512xf32, #tpu.memory_space<vmem>>, vector<1x8x512xf32>
      %397 = vector.shape_cast %396 : vector<1x8x512xf32> to vector<8x512xf32>
      %c0_146 = arith.constant 0 : index
      %c0_147 = arith.constant 0 : index
      %398 = vector.load %arg8[%c0_146, %c0_147] : memref<128x512xf32, #tpu.memory_space<vmem>>, vector<128x512xf32>
      %cst_148 = arith.constant dense<0.000000e+00> : vector<8x512xf32>
      %399 = tpu.matmul %387, %398, %cst_148 {dimension_numbers = #tpu.dot_dimension_numbers<[1], [0], [0], [1], [0, 0, 1, 1], [], []>} : vector<8x128xf32>, vector<128x512xf32>, vector<8x512xf32> -> vector<8x512xf32>
      %400 = arith.addf %397, %399 : vector<8x512xf32>
      %401 = vector.extract_strided_slice %400 {offsets = [0, 0], sizes = [8, 128], strides = [1, 1]} : vector<8x512xf32> to vector<8x128xf32>
      %cst_149 = arith.constant 5.000000e-01 : f32
      %402 = vector.broadcast %cst_149 : f32 to vector<8x128xf32>
      %403 = arith.mulf %402, %401 : vector<8x128xf32>
      %404 = math.tanh %403 : vector<8x128xf32>
      %cst_150 = arith.constant 1.000000e+00 : f32
      %405 = vector.broadcast %cst_150 : f32 to vector<8x128xf32>
      %406 = arith.addf %404, %405 : vector<8x128xf32>
      %cst_151 = arith.constant 5.000000e-01 : f32
      %407 = vector.broadcast %cst_151 : f32 to vector<8x128xf32>
      %408 = arith.mulf %407, %406 : vector<8x128xf32>
      %409 = vector.extract_strided_slice %400 {offsets = [0, 128], sizes = [8, 128], strides = [1, 1]} : vector<8x512xf32> to vector<8x128xf32>
      %cst_152 = arith.constant 5.000000e-01 : f32
      %410 = vector.broadcast %cst_152 : f32 to vector<8x128xf32>
      %411 = arith.mulf %410, %409 : vector<8x128xf32>
      %412 = math.tanh %411 : vector<8x128xf32>
      %cst_153 = arith.constant 1.000000e+00 : f32
      %413 = vector.broadcast %cst_153 : f32 to vector<8x128xf32>
      %414 = arith.addf %412, %413 : vector<8x128xf32>
      %cst_154 = arith.constant 5.000000e-01 : f32
      %415 = vector.broadcast %cst_154 : f32 to vector<8x128xf32>
      %416 = arith.mulf %415, %414 : vector<8x128xf32>
      %417 = vector.extract_strided_slice %400 {offsets = [0, 256], sizes = [8, 128], strides = [1, 1]} : vector<8x512xf32> to vector<8x128xf32>
      %418 = math.tanh %417 : vector<8x128xf32>
      %419 = vector.extract_strided_slice %400 {offsets = [0, 384], sizes = [8, 128], strides = [1, 1]} : vector<8x512xf32> to vector<8x128xf32>
      %cst_155 = arith.constant 5.000000e-01 : f32
      %420 = vector.broadcast %cst_155 : f32 to vector<8x128xf32>
      %421 = arith.mulf %420, %419 : vector<8x128xf32>
      %422 = math.tanh %421 : vector<8x128xf32>
      %cst_156 = arith.constant 1.000000e+00 : f32
      %423 = vector.broadcast %cst_156 : f32 to vector<8x128xf32>
      %424 = arith.addf %422, %423 : vector<8x128xf32>
      %cst_157 = arith.constant 5.000000e-01 : f32
      %425 = vector.broadcast %cst_157 : f32 to vector<8x128xf32>
      %426 = arith.mulf %425, %424 : vector<8x128xf32>
      %427 = arith.mulf %416, %390 : vector<8x128xf32>
      %428 = arith.mulf %408, %418 : vector<8x128xf32>
      %429 = arith.addf %427, %428 : vector<8x128xf32>
      %430 = math.tanh %429 : vector<8x128xf32>
      %431 = arith.mulf %426, %430 : vector<8x128xf32>
      %c0_158 = arith.constant 0 : index
      %c0_159 = arith.constant 0 : index
      %c0_160 = arith.constant 0 : index
      %432 = vector.load %arg9[%c0_158, %c0_159, %c0_160] : memref<4x8x128xf32, #tpu.memory_space<vmem>>, vector<1x8x128xf32>
      %433 = vector.shape_cast %432 : vector<1x8x128xf32> to vector<8x128xf32>
      %434 = vector.shape_cast %431 : vector<8x128xf32> to vector<1x8x128xf32>
      tpu.vector_store %arg9[%c0_158, %c0_159, %c0_160], %434 {strides = array<i32>} : memref<4x8x128xf32, #tpu.memory_space<vmem>>, vector<1x8x128xf32>,
      %c1 = arith.constant 1 : index
      %c0_161 = arith.constant 0 : index
      %c0_162 = arith.constant 0 : index
      %435 = vector.load %arg4[%c1, %c0_161, %c0_162] : memref<4x8x512xf32, #tpu.memory_space<vmem>>, vector<1x8x512xf32>
      %436 = vector.shape_cast %435 : vector<1x8x512xf32> to vector<8x512xf32>
      %c0_163 = arith.constant 0 : index
      %c0_164 = arith.constant 0 : index
      %437 = vector.load %arg8[%c0_163, %c0_164] : memref<128x512xf32, #tpu.memory_space<vmem>>, vector<128x512xf32>
      %cst_165 = arith.constant dense<0.000000e+00> : vector<8x512xf32>
      %438 = tpu.matmul %431, %437, %cst_165 {dimension_numbers = #tpu.dot_dimension_numbers<[1], [0], [0], [1], [0, 0, 1, 1], [], []>} : vector<8x128xf32>, vector<128x512xf32>, vector<8x512xf32> -> vector<8x512xf32>
      %439 = arith.addf %436, %438 : vector<8x512xf32>
      %440 = vector.extract_strided_slice %439 {offsets = [0, 0], sizes = [8, 128], strides = [1, 1]} : vector<8x512xf32> to vector<8x128xf32>
      %cst_166 = arith.constant 5.000000e-01 : f32
      %441 = vector.broadcast %cst_166 : f32 to vector<8x128xf32>
      %442 = arith.mulf %441, %440 : vector<8x128xf32>
      %443 = math.tanh %442 : vector<8x128xf32>
      %cst_167 = arith.constant 1.000000e+00 : f32
      %444 = vector.broadcast %cst_167 : f32 to vector<8x128xf32>
      %445 = arith.addf %443, %444 : vector<8x128xf32>
      %cst_168 = arith.constant 5.000000e-01 : f32
      %446 = vector.broadcast %cst_168 : f32 to vector<8x128xf32>
      %447 = arith.mulf %446, %445 : vector<8x128xf32>
      %448 = vector.extract_strided_slice %439 {offsets = [0, 128], sizes = [8, 128], strides = [1, 1]} : vector<8x512xf32> to vector<8x128xf32>
      %cst_169 = arith.constant 5.000000e-01 : f32
      %449 = vector.broadcast %cst_169 : f32 to vector<8x128xf32>
      %450 = arith.mulf %449, %448 : vector<8x128xf32>
      %451 = math.tanh %450 : vector<8x128xf32>
      %cst_170 = arith.constant 1.000000e+00 : f32
      %452 = vector.broadcast %cst_170 : f32 to vector<8x128xf32>
      %453 = arith.addf %451, %452 : vector<8x128xf32>
      %cst_171 = arith.constant 5.000000e-01 : f32
      %454 = vector.broadcast %cst_171 : f32 to vector<8x128xf32>
      %455 = arith.mulf %454, %453 : vector<8x128xf32>
      %456 = vector.extract_strided_slice %439 {offsets = [0, 256], sizes = [8, 128], strides = [1, 1]} : vector<8x512xf32> to vector<8x128xf32>
      %457 = math.tanh %456 : vector<8x128xf32>
      %458 = vector.extract_strided_slice %439 {offsets = [0, 384], sizes = [8, 128], strides = [1, 1]} : vector<8x512xf32> to vector<8x128xf32>
      %cst_172 = arith.constant 5.000000e-01 : f32
      %459 = vector.broadcast %cst_172 : f32 to vector<8x128xf32>
      %460 = arith.mulf %459, %458 : vector<8x128xf32>
      %461 = math.tanh %460 : vector<8x128xf32>
      %cst_173 = arith.constant 1.000000e+00 : f32
      %462 = vector.broadcast %cst_173 : f32 to vector<8x128xf32>
      %463 = arith.addf %461, %462 : vector<8x128xf32>
      %cst_174 = arith.constant 5.000000e-01 : f32
      %464 = vector.broadcast %cst_174 : f32 to vector<8x128xf32>
      %465 = arith.mulf %464, %463 : vector<8x128xf32>
      %466 = arith.mulf %455, %429 : vector<8x128xf32>
      %467 = arith.mulf %447, %457 : vector<8x128xf32>
      %468 = arith.addf %466, %467 : vector<8x128xf32>
      %469 = math.tanh %468 : vector<8x128xf32>
      %470 = arith.mulf %465, %469 : vector<8x128xf32>
      %c1_175 = arith.constant 1 : index
      %c0_176 = arith.constant 0 : index
      %c0_177 = arith.constant 0 : index
      %471 = vector.load %arg9[%c1_175, %c0_176, %c0_177] : memref<4x8x128xf32, #tpu.memory_space<vmem>>, vector<1x8x128xf32>
      %472 = vector.shape_cast %471 : vector<1x8x128xf32> to vector<8x128xf32>
      %473 = vector.shape_cast %470 : vector<8x128xf32> to vector<1x8x128xf32>
      tpu.vector_store %arg9[%c1_175, %c0_176, %c0_177], %473 {strides = array<i32>} : memref<4x8x128xf32, #tpu.memory_space<vmem>>, vector<1x8x128xf32>,
      %c2 = arith.constant 2 : index
      %c0_178 = arith.constant 0 : index
      %c0_179 = arith.constant 0 : index
      %474 = vector.load %arg4[%c2, %c0_178, %c0_179] : memref<4x8x512xf32, #tpu.memory_space<vmem>>, vector<1x8x512xf32>
      %475 = vector.shape_cast %474 : vector<1x8x512xf32> to vector<8x512xf32>
      %c0_180 = arith.constant 0 : index
      %c0_181 = arith.constant 0 : index
      %476 = vector.load %arg8[%c0_180, %c0_181] : memref<128x512xf32, #tpu.memory_space<vmem>>, vector<128x512xf32>
      %cst_182 = arith.constant dense<0.000000e+00> : vector<8x512xf32>
      %477 = tpu.matmul %470, %476, %cst_182 {dimension_numbers = #tpu.dot_dimension_numbers<[1], [0], [0], [1], [0, 0, 1, 1], [], []>} : vector<8x128xf32>, vector<128x512xf32>, vector<8x512xf32> -> vector<8x512xf32>
      %478 = arith.addf %475, %477 : vector<8x512xf32>
      %479 = vector.extract_strided_slice %478 {offsets = [0, 0], sizes = [8, 128], strides = [1, 1]} : vector<8x512xf32> to vector<8x128xf32>
      %cst_183 = arith.constant 5.000000e-01 : f32
      %480 = vector.broadcast %cst_183 : f32 to vector<8x128xf32>
      %481 = arith.mulf %480, %479 : vector<8x128xf32>
      %482 = math.tanh %481 : vector<8x128xf32>
      %cst_184 = arith.constant 1.000000e+00 : f32
      %483 = vector.broadcast %cst_184 : f32 to vector<8x128xf32>
      %484 = arith.addf %482, %483 : vector<8x128xf32>
      %cst_185 = arith.constant 5.000000e-01 : f32
      %485 = vector.broadcast %cst_185 : f32 to vector<8x128xf32>
      %486 = arith.mulf %485, %484 : vector<8x128xf32>
      %487 = vector.extract_strided_slice %478 {offsets = [0, 128], sizes = [8, 128], strides = [1, 1]} : vector<8x512xf32> to vector<8x128xf32>
      %cst_186 = arith.constant 5.000000e-01 : f32
      %488 = vector.broadcast %cst_186 : f32 to vector<8x128xf32>
      %489 = arith.mulf %488, %487 : vector<8x128xf32>
      %490 = math.tanh %489 : vector<8x128xf32>
      %cst_187 = arith.constant 1.000000e+00 : f32
      %491 = vector.broadcast %cst_187 : f32 to vector<8x128xf32>
      %492 = arith.addf %490, %491 : vector<8x128xf32>
      %cst_188 = arith.constant 5.000000e-01 : f32
      %493 = vector.broadcast %cst_188 : f32 to vector<8x128xf32>
      %494 = arith.mulf %493, %492 : vector<8x128xf32>
      %495 = vector.extract_strided_slice %478 {offsets = [0, 256], sizes = [8, 128], strides = [1, 1]} : vector<8x512xf32> to vector<8x128xf32>
      %496 = math.tanh %495 : vector<8x128xf32>
      %497 = vector.extract_strided_slice %478 {offsets = [0, 384], sizes = [8, 128], strides = [1, 1]} : vector<8x512xf32> to vector<8x128xf32>
      %cst_189 = arith.constant 5.000000e-01 : f32
      %498 = vector.broadcast %cst_189 : f32 to vector<8x128xf32>
      %499 = arith.mulf %498, %497 : vector<8x128xf32>
      %500 = math.tanh %499 : vector<8x128xf32>
      %cst_190 = arith.constant 1.000000e+00 : f32
      %501 = vector.broadcast %cst_190 : f32 to vector<8x128xf32>
      %502 = arith.addf %500, %501 : vector<8x128xf32>
      %cst_191 = arith.constant 5.000000e-01 : f32
      %503 = vector.broadcast %cst_191 : f32 to vector<8x128xf32>
      %504 = arith.mulf %503, %502 : vector<8x128xf32>
      %505 = arith.mulf %494, %468 : vector<8x128xf32>
      %506 = arith.mulf %486, %496 : vector<8x128xf32>
      %507 = arith.addf %505, %506 : vector<8x128xf32>
      %508 = math.tanh %507 : vector<8x128xf32>
      %509 = arith.mulf %504, %508 : vector<8x128xf32>
      %c2_192 = arith.constant 2 : index
      %c0_193 = arith.constant 0 : index
      %c0_194 = arith.constant 0 : index
      %510 = vector.load %arg9[%c2_192, %c0_193, %c0_194] : memref<4x8x128xf32, #tpu.memory_space<vmem>>, vector<1x8x128xf32>
      %511 = vector.shape_cast %510 : vector<1x8x128xf32> to vector<8x128xf32>
      %512 = vector.shape_cast %509 : vector<8x128xf32> to vector<1x8x128xf32>
      tpu.vector_store %arg9[%c2_192, %c0_193, %c0_194], %512 {strides = array<i32>} : memref<4x8x128xf32, #tpu.memory_space<vmem>>, vector<1x8x128xf32>,
      %c3 = arith.constant 3 : index
      %c0_195 = arith.constant 0 : index
      %c0_196 = arith.constant 0 : index
      %513 = vector.load %arg4[%c3, %c0_195, %c0_196] : memref<4x8x512xf32, #tpu.memory_space<vmem>>, vector<1x8x512xf32>
      %514 = vector.shape_cast %513 : vector<1x8x512xf32> to vector<8x512xf32>
      %c0_197 = arith.constant 0 : index
      %c0_198 = arith.constant 0 : index
      %515 = vector.load %arg8[%c0_197, %c0_198] : memref<128x512xf32, #tpu.memory_space<vmem>>, vector<128x512xf32>
      %cst_199 = arith.constant dense<0.000000e+00> : vector<8x512xf32>
      %516 = tpu.matmul %509, %515, %cst_199 {dimension_numbers = #tpu.dot_dimension_numbers<[1], [0], [0], [1], [0, 0, 1, 1], [], []>} : vector<8x128xf32>, vector<128x512xf32>, vector<8x512xf32> -> vector<8x512xf32>
      %517 = arith.addf %514, %516 : vector<8x512xf32>
      %518 = vector.extract_strided_slice %517 {offsets = [0, 0], sizes = [8, 128], strides = [1, 1]} : vector<8x512xf32> to vector<8x128xf32>
      %cst_200 = arith.constant 5.000000e-01 : f32
      %519 = vector.broadcast %cst_200 : f32 to vector<8x128xf32>
      %520 = arith.mulf %519, %518 : vector<8x128xf32>
      %521 = math.tanh %520 : vector<8x128xf32>
      %cst_201 = arith.constant 1.000000e+00 : f32
      %522 = vector.broadcast %cst_201 : f32 to vector<8x128xf32>
      %523 = arith.addf %521, %522 : vector<8x128xf32>
      %cst_202 = arith.constant 5.000000e-01 : f32
      %524 = vector.broadcast %cst_202 : f32 to vector<8x128xf32>
      %525 = arith.mulf %524, %523 : vector<8x128xf32>
      %526 = vector.extract_strided_slice %517 {offsets = [0, 128], sizes = [8, 128], strides = [1, 1]} : vector<8x512xf32> to vector<8x128xf32>
      %cst_203 = arith.constant 5.000000e-01 : f32
      %527 = vector.broadcast %cst_203 : f32 to vector<8x128xf32>
      %528 = arith.mulf %527, %526 : vector<8x128xf32>
      %529 = math.tanh %528 : vector<8x128xf32>
      %cst_204 = arith.constant 1.000000e+00 : f32
      %530 = vector.broadcast %cst_204 : f32 to vector<8x128xf32>
      %531 = arith.addf %529, %530 : vector<8x128xf32>
      %cst_205 = arith.constant 5.000000e-01 : f32
      %532 = vector.broadcast %cst_205 : f32 to vector<8x128xf32>
      %533 = arith.mulf %532, %531 : vector<8x128xf32>
      %534 = vector.extract_strided_slice %517 {offsets = [0, 256], sizes = [8, 128], strides = [1, 1]} : vector<8x512xf32> to vector<8x128xf32>
      %535 = math.tanh %534 : vector<8x128xf32>
      %536 = vector.extract_strided_slice %517 {offsets = [0, 384], sizes = [8, 128], strides = [1, 1]} : vector<8x512xf32> to vector<8x128xf32>
      %cst_206 = arith.constant 5.000000e-01 : f32
      %537 = vector.broadcast %cst_206 : f32 to vector<8x128xf32>
      %538 = arith.mulf %537, %536 : vector<8x128xf32>
      %539 = math.tanh %538 : vector<8x128xf32>
      %cst_207 = arith.constant 1.000000e+00 : f32
      %540 = vector.broadcast %cst_207 : f32 to vector<8x128xf32>
      %541 = arith.addf %539, %540 : vector<8x128xf32>
      %cst_208 = arith.constant 5.000000e-01 : f32
      %542 = vector.broadcast %cst_208 : f32 to vector<8x128xf32>
      %543 = arith.mulf %542, %541 : vector<8x128xf32>
      %544 = arith.mulf %533, %507 : vector<8x128xf32>
      %545 = arith.mulf %525, %535 : vector<8x128xf32>
      %546 = arith.addf %544, %545 : vector<8x128xf32>
      %547 = math.tanh %546 : vector<8x128xf32>
      %548 = arith.mulf %543, %547 : vector<8x128xf32>
      %c3_209 = arith.constant 3 : index
      %c0_210 = arith.constant 0 : index
      %c0_211 = arith.constant 0 : index
      %549 = vector.load %arg9[%c3_209, %c0_210, %c0_211] : memref<4x8x128xf32, #tpu.memory_space<vmem>>, vector<1x8x128xf32>
      %550 = vector.shape_cast %549 : vector<1x8x128xf32> to vector<8x128xf32>
      %551 = vector.shape_cast %548 : vector<8x128xf32> to vector<1x8x128xf32>
      tpu.vector_store %arg9[%c3_209, %c0_210, %c0_211], %551 {strides = array<i32>} : memref<4x8x128xf32, #tpu.memory_space<vmem>>, vector<1x8x128xf32>,
    } else {
    }
    return
  }
  func.func @transform_0(%arg0: i32, %arg1: i32) -> (i32, i32, i32) {
    %c0_i32 = arith.constant 0 : i32
    %c0_i32_0 = arith.constant 0 : i32
    return %arg1, %arg0, %c0_i32 : i32, i32, i32
  }
  func.func @transform_1(%arg0: i32, %arg1: i32) -> (i32, i32) {
    %c0_i32 = arith.constant 0 : i32
    %c0_i32_0 = arith.constant 0 : i32
    return %arg0, %c0_i32 : i32, i32
  }
  func.func @transform_2(%arg0: i32, %arg1: i32) -> (i32, i32, i32) {
    %c0_i32 = arith.constant 0 : i32
    %c0_i32_0 = arith.constant 0 : i32
    %c0_i32_1 = arith.constant 0 : i32
    return %c0_i32, %arg0, %c0_i32_0 : i32, i32, i32
  }
  func.func @transform_3(%arg0: i32, %arg1: i32) -> (i32, i32) {
    %c0_i32 = arith.constant 0 : i32
    %c0_i32_0 = arith.constant 0 : i32
    %c0_i32_1 = arith.constant 0 : i32
    return %c0_i32, %c0_i32_0 : i32, i32
  }
  func.func @transform_4(%arg0: i32, %arg1: i32) -> (i32, i32) {
    %c0_i32 = arith.constant 0 : i32
    %c0_i32_0 = arith.constant 0 : i32
    %c0_i32_1 = arith.constant 0 : i32
    return %c0_i32, %c0_i32_0 : i32, i32
  }
  func.func @transform_5(%arg0: i32, %arg1: i32) -> (i32, i32) {
    %c0_i32 = arith.constant 0 : i32
    %c0_i32_0 = arith.constant 0 : i32
    %c0_i32_1 = arith.constant 0 : i32
    return %c0_i32, %c0_i32_0 : i32, i32
  }
  func.func @transform_6(%arg0: i32, %arg1: i32) -> (i32, i32) {
    %c0_i32 = arith.constant 0 : i32
    %c0_i32_0 = arith.constant 0 : i32
    %c0_i32_1 = arith.constant 0 : i32
    return %c0_i32, %c0_i32_0 : i32, i32
  }
  func.func @transform_7(%arg0: i32, %arg1: i32) -> (i32, i32, i32) {
    %c0_i32 = arith.constant 0 : i32
    %c0_i32_0 = arith.constant 0 : i32
    %c0_i32_1 = arith.constant 0 : i32
    return %c0_i32, %arg0, %c0_i32_0 : i32, i32, i32
  }
}

</mosaic_0001>

<llo_original>
// kernel: tpu_custom_call.1
$region0: #{tpu_custom_call.1}
  #allocation0 [shape = 'u32[]', space=smem, size = 0x4, offset = 0x4, fixed_abs, tag = 'smem constant byte address 0x4 - core index']
  #allocation1 [shape = 'u32[144,128]{1,0:T(1,128)}', space=vmem, size = 0x12000, scoped, tag = 'internal scratch']
  #allocation2 [shape = 'f32[8,128]{1,0:T(8,128)}', space=vmem, size = 0x1000, scoped, tag = 'scratch operand']
  #allocation3 [shape = 'f32[8,128]{1,0:T(8,128)}', space=vmem, size = 0x1000, scoped, tag = 'scratch operand']
  #allocation4 [shape = 'f32[8,8,512]{2,1,0:T(8,128)}', space=vmem, size = 0x20000, scoped, tag = 'scratch operand']
  %s0 = inlined_call_operand.hbm [shape: f32[24,8,128], index: 0, kind: input, shape index: {}]
  %s1 = inlined_call_operand.vmem [shape: s32[8,1], index: 1, kind: input, shape index: {}]
  %s2 = inlined_call_operand.hbm [shape: f32[4,8,512], index: 2, kind: input, shape index: {}]
  %s3 = inlined_call_operand.hbm [shape: f32[128,512], index: 3, kind: input, shape index: {}]
  %s4 = inlined_call_operand.hbm [shape: f32[128,512], index: 4, kind: input, shape index: {}]
  %s5 = inlined_call_operand.vmem [shape: f32[1,512], index: 5, kind: input, shape index: {}]
  %s6 = inlined_call_operand.hbm [shape: f32[128,512], index: 6, kind: input, shape index: {}]
  %s7 = inlined_call_operand.hbm [shape: f32[4,8,128], index: 7, kind: output, shape index: {}]
  %s8 = sld [smem:[#allocation0]]
  $region89: #{tpu_custom_call.1} parent=0
    _
  %s10 = ssub.s32 1, %s8
  %s11 = scalar_select 0, %s10, %s8
  $region1: #{tpu_custom_call.1} parent=0
    #allocation5 [shape = 'u8[65536]{0}', space=vmem, size = 0x10000, scoped, tag = 'input window, operand 0']
    #allocation6 [shape = 's32[2]{0}', space=sflag, size = 0x8, scoped, tag = 'scoped memory for tpu_custom_call.1']
    #allocation7 [shape = 's32[2]{0}', space=sflag, size = 0x8, scoped, tag = 'scoped memory for tpu_custom_call.1']
    #allocation8 [shape = 'u8[65536]{0}', space=vmem, size = 0x10000, scoped, tag = 'input window, operand 2, single buffered']
    #allocation9 [shape = 's32[1]{0}', space=sflag, size = 0x4, scoped, tag = 'scoped memory for tpu_custom_call.1']
    #allocation10 [shape = 'u8[262144]{0}', space=vmem, size = 0x40000, scoped, tag = 'input window, operand 3, single buffered']
    #allocation11 [shape = 'u8[262144]{0}', space=vmem, size = 0x40000, scoped, tag = 'input window, operand 4, single buffered']
    #allocation12 [shape = 's32[1]{0}', space=sflag, size = 0x4, scoped, tag = 'scoped memory for tpu_custom_call.1']
    #allocation13 [shape = 'u8[262144]{0}', space=vmem, size = 0x40000, scoped, tag = 'input window, operand 6, single buffered']
    #allocation14 [shape = 'u8[16384]{0}', space=vmem, size = 0x4000, scoped, tag = 'output window, operand 0, single buffered']
    %12 = vsyncpa [#allocation6], 0
    %s13 = scalar_lea.sflag [#allocation6], 1
    %14 = vsyncpa %s13, 0
    %15 = vsyncpa [#allocation9], 0
    %16 = vsyncpa [#allocation12], 0
    %17 = vsyncpa [#allocation7], 0
    loop: start=0, step=1, limit=5
    $region2: #{tpu_custom_call.1} parent=1 // loop_pre_header
      _
    $region3: #{tpu_custom_call.1} parent=1 // loop_header
      %s19 = sphi 0, %s23
      %p20 = scmp.ge.s32.totalorder %s19, 5
      %s26 = sphi 0, %s38
      %s27 = sphi 0, %s34
      %s28 = sphi 0, %s26
      %s29 = sphi 0, %s27
      %s30 = sphi 0, %s28
      %s31 = sphi 0, %s29
      %s43 = sphi 0, %s45
      %s46 = sphi 0, %s43
      %s47 = sphi 0, %s46
      %s63 = sphi 0, %s47
      %s69 = sphi 0, %s71
      %s72 = sphi 0, %s69
      %s73 = sphi 0, %s72
      %s89 = sphi 0, %s73
      %s95 = sphi 0, %s97
      %s98 = sphi 0, %s95
      %s99 = sphi 0, %s98
      %s115 = sphi 0, %s99
      %s119 = sphi 0, %s119
      %s121 = sphi 0, %s119
      %s122 = sphi 0, %s121
      %s136 = sphi 0, %s122
      %s140 = sphi 0, %s140
      %s142 = sphi 0, %s140
      %s143 = sphi 0, %s142
      %s157 = sphi 0, %s143
      %s161 = sphi 0, %s161
      %s163 = sphi 0, %s161
      %s164 = sphi 0, %s163
      %s178 = sphi 0, %s164
      %s182 = sphi 0, %s182
      %s184 = sphi 0, %s182
      %s185 = sphi 0, %s184
      %s199 = sphi 0, %s185
      %s205 = sphi 0, %s207
      %s208 = sphi 0, %s205
      %s209 = sphi 0, %s208
      %s225 = sphi 0, %s209
    $region4: #{tpu_custom_call.1} parent=1 // loop_header_branch
      %22 = sbr.rel (%p20) target = $region8
    $region5: #{tpu_custom_call.1} parent=1 // loop_body
      %s24 = ssub.s32 %s19, 1
      %s25 = ssub.s32 %s19, 2
      %s32 = sadd.s32 1, %s27
      %p33 = scmp.ge.s32.totalorder %s32, 3
      %s34 = scalar_select %p33, 0, %s32
      %s35 = sadd.s32 1, %s26
      %s36 = scalar_select %p33, %s35, %s26
      %p37 = scmp.ge.s32.totalorder %s36, 1
      %s38 = scalar_select %p37, 0, %s36
      %s39 = ssub.s32 %s27, %s34
      %s40 = ssub.s32 %s26, %s38
      %s41 = sor.u32 %s39, %s40
      %p42 = scmp.eq.s32.totalorder %s41, 0
      %s44 = sadd.s32 %s43, 1
      %s45 = scalar_select %p42, %s43, %s44
      %p48 = pneg %p42
      %p49 = scmp.eq.s32.totalorder %s19, 2
      %p50 = por %p48, %p49
      %p51 = scmp.ne.s32.totalorder %s43, %s46
      %p52 = scmp.eq.s32.totalorder %s19, 0
      %p53 = por %p51, %p52
      %p54 = scmp.ne.s32.totalorder %s43, %s46
      %p55 = scmp.eq.s32.totalorder %s24, 2
      %p56 = por %p54, %p55
      %p57 = scmp.ne.s32.totalorder %s46, %s47
      %p58 = scmp.eq.s32.totalorder %s24, 0
      %p59 = por %p57, %p58
      %p60 = scmp.ne.s32.totalorder %s46, %s47
      %p61 = scmp.eq.s32.totalorder %s25, 2
      %p62 = por %p60, %p61
      %p64 = scmp.ne.s32.totalorder %s47, %s63
      %p65 = scmp.eq.s32.totalorder %s25, 0
      %p66 = por %p64, %p65
      %s67 = ssub.s32 %s26, %s38
      %p68 = scmp.eq.s32.totalorder %s67, 0
      %s70 = sadd.s32 %s69, 1
      %s71 = scalar_select %p68, %s69, %s70
      %p74 = pneg %p68
      %p75 = scmp.eq.s32.totalorder %s19, 2
      %p76 = por %p74, %p75
      %p77 = scmp.ne.s32.totalorder %s69, %s72
      %p78 = scmp.eq.s32.totalorder %s19, 0
      %p79 = por %p77, %p78
      %p80 = scmp.ne.s32.totalorder %s69, %s72
      %p81 = scmp.eq.s32.totalorder %s24, 2
      %p82 = por %p80, %p81
      %p83 = scmp.ne.s32.totalorder %s72, %s73
      %p84 = scmp.eq.s32.totalorder %s24, 0
      %p85 = por %p83, %p84
      %p86 = scmp.ne.s32.totalorder %s72, %s73
      %p87 = scmp.eq.s32.totalorder %s25, 2
      %p88 = por %p86, %p87
      %p90 = scmp.ne.s32.totalorder %s73, %s89
      %p91 = scmp.eq.s32.totalorder %s25, 0
      %p92 = por %p90, %p91
      %s93 = ssub.s32 %s26, %s38
      %p94 = scmp.eq.s32.totalorder %s93, 0
      %s96 = sadd.s32 %s95, 1
      %s97 = scalar_select %p94, %s95, %s96
      %p100 = pneg %p94
      %p101 = scmp.eq.s32.totalorder %s19, 2
      %p102 = por %p100, %p101
      %p103 = scmp.ne.s32.totalorder %s95, %s98
      %p104 = scmp.eq.s32.totalorder %s19, 0
      %p105 = por %p103, %p104
      %p106 = scmp.ne.s32.totalorder %s95, %s98
      %p107 = scmp.eq.s32.totalorder %s24, 2
      %p108 = por %p106, %p107
      %p109 = scmp.ne.s32.totalorder %s98, %s99
      %p110 = scmp.eq.s32.totalorder %s24, 0
      %p111 = por %p109, %p110
      %p112 = scmp.ne.s32.totalorder %s98, %s99
      %p113 = scmp.eq.s32.totalorder %s25, 2
      %p114 = por %p112, %p113
      %p116 = scmp.ne.s32.totalorder %s99, %s115
      %p117 = scmp.eq.s32.totalorder %s25, 0
      %p118 = por %p116, %p117
      %s120 = sadd.s32 %s119, 1
      %p123 = scmp.eq.s32.totalorder %s19, 2
      %p124 = scmp.ne.s32.totalorder %s119, %s121
      %p125 = scmp.eq.s32.totalorder %s19, 0
      %p126 = por %p124, %p125
      %p127 = scmp.ne.s32.totalorder %s119, %s121
      %p128 = scmp.eq.s32.totalorder %s24, 2
      %p129 = por %p127, %p128
      %p130 = scmp.ne.s32.totalorder %s121, %s122
      %p131 = scmp.eq.s32.totalorder %s24, 0
      %p132 = por %p130, %p131
      %p133 = scmp.ne.s32.totalorder %s121, %s122
      %p134 = scmp.eq.s32.totalorder %s25, 2
      %p135 = por %p133, %p134
      %p137 = scmp.ne.s32.totalorder %s122, %s136
      %p138 = scmp.eq.s32.totalorder %s25, 0
      %p139 = por %p137, %p138
      %s141 = sadd.s32 %s140, 1
      %p144 = scmp.eq.s32.totalorder %s19, 2
      %p145 = scmp.ne.s32.totalorder %s140, %s142
      %p146 = scmp.eq.s32.totalorder %s19, 0
      %p147 = por %p145, %p146
      %p148 = scmp.ne.s32.totalorder %s140, %s142
      %p149 = scmp.eq.s32.totalorder %s24, 2
      %p150 = por %p148, %p149
      %p151 = scmp.ne.s32.totalorder %s142, %s143
      %p152 = scmp.eq.s32.totalorder %s24, 0
      %p153 = por %p151, %p152
      %p154 = scmp.ne.s32.totalorder %s142, %s143
      %p155 = scmp.eq.s32.totalorder %s25, 2
      %p156 = por %p154, %p155
      %p158 = scmp.ne.s32.totalorder %s143, %s157
      %p159 = scmp.eq.s32.totalorder %s25, 0
      %p160 = por %p158, %p159
      %s162 = sadd.s32 %s161, 1
      %p165 = scmp.eq.s32.totalorder %s19, 2
      %p166 = scmp.ne.s32.totalorder %s161, %s163
      %p167 = scmp.eq.s32.totalorder %s19, 0
      %p168 = por %p166, %p167
      %p169 = scmp.ne.s32.totalorder %s161, %s163
      %p170 = scmp.eq.s32.totalorder %s24, 2
      %p171 = por %p169, %p170
      %p172 = scmp.ne.s32.totalorder %s163, %s164
      %p173 = scmp.eq.s32.totalorder %s24, 0
      %p174 = por %p172, %p173
      %p175 = scmp.ne.s32.totalorder %s163, %s164
      %p176 = scmp.eq.s32.totalorder %s25, 2
      %p177 = por %p175, %p176
      %p179 = scmp.ne.s32.totalorder %s164, %s178
      %p180 = scmp.eq.s32.totalorder %s25, 0
      %p181 = por %p179, %p180
      %s183 = sadd.s32 %s182, 1
      %p186 = scmp.eq.s32.totalorder %s19, 2
      %p187 = scmp.ne.s32.totalorder %s182, %s184
      %p188 = scmp.eq.s32.totalorder %s19, 0
      %p189 = por %p187, %p188
      %p190 = scmp.ne.s32.totalorder %s182, %s184
      %p191 = scmp.eq.s32.totalorder %s24, 2
      %p192 = por %p190, %p191
      %p193 = scmp.ne.s32.totalorder %s184, %s185
      %p194 = scmp.eq.s32.totalorder %s24, 0
      %p195 = por %p193, %p194
      %p196 = scmp.ne.s32.totalorder %s184, %s185
      %p197 = scmp.eq.s32.totalorder %s25, 2
      %p198 = por %p196, %p197
      %p200 = scmp.ne.s32.totalorder %s185, %s199
      %p201 = scmp.eq.s32.totalorder %s25, 0
      %p202 = por %p200, %p201
      %s203 = ssub.s32 %s26, %s38
      %p204 = scmp.eq.s32.totalorder %s203, 0
      %s206 = sadd.s32 %s205, 1
      %s207 = scalar_select %p204, %s205, %s206
      %p210 = pneg %p204
      %p211 = scmp.eq.s32.totalorder %s19, 2
      %p212 = por %p210, %p211
      %p213 = scmp.ne.s32.totalorder %s205, %s208
      %p214 = scmp.eq.s32.totalorder %s19, 0
      %p215 = por %p213, %p214
      %p216 = scmp.ne.s32.totalorder %s205, %s208
      %p217 = scmp.eq.s32.totalorder %s24, 2
      %p218 = por %p216, %p217
      %p219 = scmp.ne.s32.totalorder %s208, %s209
      %p220 = scmp.eq.s32.totalorder %s24, 0
      %p221 = por %p219, %p220
      %p222 = scmp.ne.s32.totalorder %s208, %s209
      %p223 = scmp.eq.s32.totalorder %s25, 2
      %p224 = por %p222, %p223
      %p226 = scmp.ne.s32.totalorder %s209, %s225
      %p227 = scmp.eq.s32.totalorder %s25, 0
      %p228 = por %p226, %p227
      %p229 = scmp.le.s32.totalorder 1, %s19
      %p230 = scmp.lt.s32.totalorder %s19, 4
      %p231 = pnand %p229, %p230
      %p232 = pneg %p231
      // Predicated region
      $region9: #{tpu_custom_call.1} parent=5 // pred_check
        _
      $region10: #{tpu_custom_call.1} parent=5 // pred_check_branch
        %234 = sbr.rel (%p231) target = $region12
      $region11: #{tpu_custom_call.1} parent=5 // pred_region
        %s235 = ssub.s32 %s19, 1
        // Predicated region
        $region13: #{tpu_custom_call.1} parent=11 // pred_check
          %p236 = pneg %p85
        $region14: #{tpu_custom_call.1} parent=11 // pred_check_branch
          %238 = sbr.rel (%p236) target = $region16
        $region15: #{tpu_custom_call.1} parent=11 // pred_region
          %p239 = scmp.lt.s32.totalorder %s28, 0
          %s240 = scalar_select %p239, %s28, 0
          %s241 = smul.addr %s240, 8
          %s242 = scalar_lea.vmem %s1, %s241
        $region16: #{tpu_custom_call.1} parent=11 // pred_fallthru
          _
        // Predicated region
        $region17: #{tpu_custom_call.1} parent=11 // pred_check
          %p243 = pneg %p111
        $region18: #{tpu_custom_call.1} parent=11 // pred_check_branch
          %245 = sbr.rel (%p243) target = $region20
        $region19: #{tpu_custom_call.1} parent=11 // pred_region
          %s247 = ssub.s32 2048, 2048
          %248 = vsyncadd [#allocation9], %s247
          %s249 = smul.addr %s28, 4
          %s250 = smul.addr %s249, 128
          %s251 = scalar_lea.hbm %s2, %s250
          %s252 = sshll.u32 [#allocation8], 4
          %s253 = int_to_ptr.vmem [resolvable:$true] %s252
          %258 = dma.hbm_to_vmem [thread:$0]  %s251, 2048, %s253, [#allocation9], 512, 512, 32
        $region20: #{tpu_custom_call.1} parent=11 // pred_fallthru
          _
        // Predicated region
        $region21: #{tpu_custom_call.1} parent=11 // pred_check
          %p259 = pneg %p132
        $region22: #{tpu_custom_call.1} parent=11 // pred_check_branch
          %261 = sbr.rel (%p259) target = $region24
        $region23: #{tpu_custom_call.1} parent=11 // pred_region
          %s263 = ssub.s32 8192, 8192
          %264 = vsyncadd [#allocation9], %s263
          %s265 = sshll.u32 [#allocation10], 4
          %s266 = int_to_ptr.vmem [resolvable:$true] %s265
          %271 = dma.hbm_to_vmem [thread:$0]  %s3, 8192, %s266, [#allocation9], 512, 512, 32
        $region24: #{tpu_custom_call.1} parent=11 // pred_fallthru
          _
        // Predicated region
        $region25: #{tpu_custom_call.1} parent=11 // pred_check
          %p272 = pneg %p153
        $region26: #{tpu_custom_call.1} parent=11 // pred_check_branch
          %274 = sbr.rel (%p272) target = $region28
        $region27: #{tpu_custom_call.1} parent=11 // pred_region
          %s276 = ssub.s32 8192, 8192
          %277 = vsyncadd [#allocation12], %s276
          %s278 = sshll.u32 [#allocation11], 4
          %s279 = int_to_ptr.vmem [resolvable:$true] %s278
          %284 = dma.hbm_to_vmem [thread:$0]  %s4, 8192, %s279, [#allocation12], 512, 512, 32
        $region28: #{tpu_custom_call.1} parent=11 // pred_fallthru
          _
        // Predicated region
        $region29: #{tpu_custom_call.1} parent=11 // pred_check
          %p285 = pneg %p174
        $region30: #{tpu_custom_call.1} parent=11 // pred_check_branch
          %287 = sbr.rel (%p285) target = $region32
        $region31: #{tpu_custom_call.1} parent=11 // pred_region
          _
        $region32: #{tpu_custom_call.1} parent=11 // pred_fallthru
          _
        // Predicated region
        $region33: #{tpu_custom_call.1} parent=11 // pred_check
          %p288 = pneg %p195
        $region34: #{tpu_custom_call.1} parent=11 // pred_check_branch
          %290 = sbr.rel (%p288) target = $region36
        $region35: #{tpu_custom_call.1} parent=11 // pred_region
          %s292 = ssub.s32 8192, 8192
          %293 = vsyncadd [#allocation12], %s292
          %s294 = sshll.u32 [#allocation13], 4
          %s295 = int_to_ptr.vmem [resolvable:$true] %s294
          %300 = dma.hbm_to_vmem [thread:$0]  %s6, 8192, %s295, [#allocation12], 512, 512, 32
        $region36: #{tpu_custom_call.1} parent=11 // pred_fallthru
          _
      $region12: #{tpu_custom_call.1} parent=5 // pred_fallthru
        _
      %p301 = scmp.lt.s32.totalorder %s19, 3
      // Predicated region
      $region37: #{tpu_custom_call.1} parent=5 // pred_check
        %p302 = pneg %p301
      $region38: #{tpu_custom_call.1} parent=5 // pred_check_branch
        %304 = sbr.rel (%p302) target = $region40
      $region39: #{tpu_custom_call.1} parent=5 // pred_region
        // Predicated region
        $region41: #{tpu_custom_call.1} parent=39 // pred_check
          %p305 = pneg %p53
        $region42: #{tpu_custom_call.1} parent=39 // pred_check_branch
          %307 = sbr.rel (%p305) target = $region44
        $region43: #{tpu_custom_call.1} parent=39 // pred_region
          %s308 = sand.u32 %s43, 1
          %s309 = scalar_lea.sflag [#allocation6], %s308
          %s310 = sand.u32 %s43, 1
          %s311 = smul.addr %s310, 64
          %s312 = scalar_lea.vmem [#allocation5], %s311
          %s313 = smul.u32 8, %s27
          %s315 = ssub.s32 1024, 1024
          %316 = vsyncadd %s309, %s315
          %s317 = sadd.s32 %s26, %s313
          %s318 = smul.addr %s317, 128
          %s319 = scalar_lea.hbm %s0, %s318
          %s320 = sshll.u32 %s312, 4
          %s321 = int_to_ptr.vmem [resolvable:$true] %s320
          %326 = dma.hbm_to_vmem [thread:$0]  %s319, 1024, %s321, %s309, 128, 128, 8
        $region44: #{tpu_custom_call.1} parent=39 // pred_fallthru
          _
      $region40: #{tpu_custom_call.1} parent=5 // pred_fallthru
        _
      %p327 = scmp.le.s32.totalorder 1, %s19
      %p328 = scmp.lt.s32.totalorder %s19, 4
      %p329 = pnand %p327, %p328
      %p330 = pneg %p329
      // Predicated region
      $region45: #{tpu_custom_call.1} parent=5 // pred_check
        _
      $region46: #{tpu_custom_call.1} parent=5 // pred_check_branch
        %332 = sbr.rel (%p329) target = $region48
      $region47: #{tpu_custom_call.1} parent=5 // pred_region
        %s333 = ssub.s32 %s19, 1
        %s334 = sand.u32 %s46, 1
        %s335 = scalar_lea.sflag [#allocation6], %s334
        %s336 = sand.u32 %s46, 1
        %s337 = smul.addr %s336, 64
        %s338 = scalar_lea.vmem [#allocation5], %s337
        // Predicated region
        $region49: #{tpu_custom_call.1} parent=47 // pred_check
          %p339 = pneg %p59
        $region50: #{tpu_custom_call.1} parent=47 // pred_check_branch
          %341 = sbr.rel (%p339) target = $region52
        $region51: #{tpu_custom_call.1} parent=47 // pred_region
          %342 = dma.done %s335, 1024
        $region52: #{tpu_custom_call.1} parent=47 // pred_fallthru
          _
        // Predicated region
        $region53: #{tpu_custom_call.1} parent=47 // pred_check
          %p343 = pneg %p111
        $region54: #{tpu_custom_call.1} parent=47 // pred_check_branch
          %345 = sbr.rel (%p343) target = $region56
        $region55: #{tpu_custom_call.1} parent=47 // pred_region
          %346 = dma.done [#allocation9], 2048
        $region56: #{tpu_custom_call.1} parent=47 // pred_fallthru
          _
        // Predicated region
        $region57: #{tpu_custom_call.1} parent=47 // pred_check
          %p347 = pneg %p132
        $region58: #{tpu_custom_call.1} parent=47 // pred_check_branch
          %349 = sbr.rel (%p347) target = $region60
        $region59: #{tpu_custom_call.1} parent=47 // pred_region
          %350 = dma.done [#allocation9], 8192
        $region60: #{tpu_custom_call.1} parent=47 // pred_fallthru
          _
        // Predicated region
        $region61: #{tpu_custom_call.1} parent=47 // pred_check
          %p351 = pneg %p153
        $region62: #{tpu_custom_call.1} parent=47 // pred_check_branch
          %353 = sbr.rel (%p351) target = $region64
        $region63: #{tpu_custom_call.1} parent=47 // pred_region
          %354 = dma.done [#allocation12], 8192
        $region64: #{tpu_custom_call.1} parent=47 // pred_fallthru
          _
        // Predicated region
        $region65: #{tpu_custom_call.1} parent=47 // pred_check
          %p355 = pneg %p195
        $region66: #{tpu_custom_call.1} parent=47 // pred_check_branch
          %357 = sbr.rel (%p355) target = $region68
        $region67: #{tpu_custom_call.1} parent=47 // pred_region
          %358 = dma.done [#allocation12], 8192
        $region68: #{tpu_custom_call.1} parent=47 // pred_fallthru
          _
        %s359 = sand.u32 %s46, 1
        %s360 = scalar_lea.sflag [#allocation6], %s359
        %s361 = sand.u32 %s46, 1
        %s362 = smul.addr %s361, 64
        %s363 = scalar_lea.vmem [#allocation5], %s362
        %p364 = pneg %p59
        %p365 = pneg %p56
        %p366 = scmp.lt.s32.totalorder %s28, 0
        %s367 = scalar_select %p366, %s28, 0
        %s368 = smul.addr %s367, 8
        %s369 = scalar_lea.vmem %s1, %s368
        %p370 = pneg %p85
        %p371 = pneg %p82
        %p372 = pneg %p111
        %p373 = pneg %p108
        %p374 = pneg %p132
        %p375 = pneg %p129
        %p376 = pneg %p153
        %p377 = pneg %p150
        %p378 = pneg %p174
        %p379 = pneg %p171
        %p380 = pneg %p195
        %p381 = pneg %p192
        %p382 = pneg %p221
        %p383 = pneg %p218
        %s384 = smul.u32 8, %s29
        %p385 = scmp.lt.s32.totalorder %s28, 0
        %s386 = scalar_select %p385, %s28, 0
        %s387 = smul.addr %s386, 8
        %s388 = scalar_lea.vmem %s1, %s387
        %p389 = scmp.eq.s32.totalorder %s29, 0
        // Predicated region
        $region69: #{tpu_custom_call.1} parent=47 // pred_check
          %p390 = pneg %p389
        $region70: #{tpu_custom_call.1} parent=47 // pred_check_branch
          %392 = sbr.rel (%p390) target = $region72
        $region71: #{tpu_custom_call.1} parent=47 // pred_region
          %393 = vst [vmem:[#allocation2] sm:$0xff] 0.0
          %394 = vst [vmem:[#allocation3] sm:$0xff] 0.0
        $region72: #{tpu_custom_call.1} parent=47 // pred_fallthru
          _
        %v395 = vld [vmem:[%s388] sm:$0xff]
        %v396 = vld [vmem:[%s338] sm:$0xff]
        %v397 = vld [vmem:[%s338 + $0x8] sm:$0xff]
        %v398 = vld [vmem:[%s338 + $0x10] sm:$0xff]
        %v399 = vld [vmem:[%s338 + $0x18] sm:$0xff]
        %v400 = vld [vmem:[%s338 + $0x20] sm:$0xff]
        %v401 = vld [vmem:[%s338 + $0x28] sm:$0xff]
        %v402 = vld [vmem:[%s338 + $0x30] sm:$0xff]
        %v403 = vld [vmem:[%s338 + $0x38] sm:$0xff]
        %v404 = vld [vmem:[#allocation10] sm:$0xff]
        %v405 = vld [vmem:[#allocation10 + $0x8] sm:$0xff]
        %v406 = vld [vmem:[#allocation10 + $0x10] sm:$0xff]
        %v407 = vld [vmem:[#allocation10 + $0x18] sm:$0xff]
        %v408 = vld [vmem:[#allocation10 + $0x20] sm:$0xff]
        %v409 = vld [vmem:[#allocation10 + $0x28] sm:$0xff]
        %v410 = vld [vmem:[#allocation10 + $0x30] sm:$0xff]
        %v411 = vld [vmem:[#allocation10 + $0x38] sm:$0xff]
        %v412 = vld [vmem:[#allocation10 + $0x40] sm:$0xff]
        %v413 = vld [vmem:[#allocation10 + $0x48] sm:$0xff]
        %v414 = vld [vmem:[#allocation10 + $0x50] sm:$0xff]
        %v415 = vld [vmem:[#allocation10 + $0x58] sm:$0xff]
        %v416 = vld [vmem:[#allocation10 + $0x60] sm:$0xff]
        %v417 = vld [vmem:[#allocation10 + $0x68] sm:$0xff]
        %v418 = vld [vmem:[#allocation10 + $0x70] sm:$0xff]
        %v419 = vld [vmem:[#allocation10 + $0x78] sm:$0xff]
        %v420 = vld [vmem:[#allocation10 + $0x80] sm:$0xff]
        %v421 = vld [vmem:[#allocation10 + $0x88] sm:$0xff]
        %v422 = vld [vmem:[#allocation10 + $0x90] sm:$0xff]
        %v423 = vld [vmem:[#allocation10 + $0x98] sm:$0xff]
        %v424 = vld [vmem:[#allocation10 + $0xa0] sm:$0xff]
        %v425 = vld [vmem:[#allocation10 + $0xa8] sm:$0xff]
        %v426 = vld [vmem:[#allocation10 + $0xb0] sm:$0xff]
        %v427 = vld [vmem:[#allocation10 + $0xb8] sm:$0xff]
        %v428 = vld [vmem:[#allocation10 + $0xc0] sm:$0xff]
        %v429 = vld [vmem:[#allocation10 + $0xc8] sm:$0xff]
        %v430 = vld [vmem:[#allocation10 + $0xd0] sm:$0xff]
        %v431 = vld [vmem:[#allocation10 + $0xd8] sm:$0xff]
        %v432 = vld [vmem:[#allocation10 + $0xe0] sm:$0xff]
        %v433 = vld [vmem:[#allocation10 + $0xe8] sm:$0xff]
        %v434 = vld [vmem:[#allocation10 + $0xf0] sm:$0xff]
        %v435 = vld [vmem:[#allocation10 + $0xf8] sm:$0xff]
        %v436 = vld [vmem:[#allocation10 + $0x100] sm:$0xff]
        %v437 = vld [vmem:[#allocation10 + $0x108] sm:$0xff]
        %v438 = vld [vmem:[#allocation10 + $0x110] sm:$0xff]
        %v439 = vld [vmem:[#allocation10 + $0x118] sm:$0xff]
        %v440 = vld [vmem:[#allocation10 + $0x120] sm:$0xff]
        %v441 = vld [vmem:[#allocation10 + $0x128] sm:$0xff]
        %v442 = vld [vmem:[#allocation10 + $0x130] sm:$0xff]
        %v443 = vld [vmem:[#allocation10 + $0x138] sm:$0xff]
        %v444 = vld [vmem:[#allocation10 + $0x140] sm:$0xff]
        %v445 = vld [vmem:[#allocation10 + $0x148] sm:$0xff]
        %v446 = vld [vmem:[#allocation10 + $0x150] sm:$0xff]
        %v447 = vld [vmem:[#allocation10 + $0x158] sm:$0xff]
        %v448 = vld [vmem:[#allocation10 + $0x160] sm:$0xff]
        %v449 = vld [vmem:[#allocation10 + $0x168] sm:$0xff]
        %v450 = vld [vmem:[#allocation10 + $0x170] sm:$0xff]
        %v451 = vld [vmem:[#allocation10 + $0x178] sm:$0xff]
        %v452 = vld [vmem:[#allocation10 + $0x180] sm:$0xff]
        %v453 = vld [vmem:[#allocation10 + $0x188] sm:$0xff]
        %v454 = vld [vmem:[#allocation10 + $0x190] sm:$0xff]
        %v455 = vld [vmem:[#allocation10 + $0x198] sm:$0xff]
        %v456 = vld [vmem:[#allocation10 + $0x1a0] sm:$0xff]
        %v457 = vld [vmem:[#allocation10 + $0x1a8] sm:$0xff]
        %v458 = vld [vmem:[#allocation10 + $0x1b0] sm:$0xff]
        %v459 = vld [vmem:[#allocation10 + $0x1b8] sm:$0xff]
        %v460 = vld [vmem:[#allocation10 + $0x1c0] sm:$0xff]
        %v461 = vld [vmem:[#allocation10 + $0x1c8] sm:$0xff]
        %v462 = vld [vmem:[#allocation10 + $0x1d0] sm:$0xff]
        %v463 = vld [vmem:[#allocation10 + $0x1d8] sm:$0xff]
        %v464 = vld [vmem:[#allocation10 + $0x1e0] sm:$0xff]
        %v465 = vld [vmem:[#allocation10 + $0x1e8] sm:$0xff]
        %v466 = vld [vmem:[#allocation10 + $0x1f0] sm:$0xff]
        %v467 = vld [vmem:[#allocation10 + $0x1f8] sm:$0xff]
        %v468 = vld [vmem:[%s5] sm:$0xf]
        %v470 = vlaneseq
        %v471 = vshrl.u32 %v470, 7
        %v472 = vsub.s32 0, %v471
        %v473 = vrot.slane %v468, %v472
        %v474 = vlaneseq
        %v475 = vshrl.u32 %v474, 7
        %v476 = vsub.s32 1, %v475
        %v477 = vrot.slane %v468, %v476
        %v478 = vlaneseq
        %v479 = vshrl.u32 %v478, 7
        %v480 = vsub.s32 2, %v479
        %v481 = vrot.slane %v468, %v480
        %v482 = vlaneseq
        %v483 = vshrl.u32 %v482, 7
        %v484 = vsub.s32 3, %v483
        %v485 = vrot.slane %v468, %v484
        %490 = vmatprep.subr.mxu0 %v465
        %491 = vmatpush1.msra.mxu0 %v464
        %492 = vmatprep.subr.mxu0 %v461
        %493 = vmatpush1.msra.mxu0 %v460
        %494 = vmatprep.subr.mxu0 %v457
        %495 = vmatpush1.msra.mxu0 %v456
        %496 = vmatprep.subr.mxu0 %v453
        %497 = vmatpush1.msra.mxu0 %v452
        %498 = vmatprep.subr.mxu0 %v449
        %499 = vmatpush1.msra.mxu0 %v448
        %500 = vmatprep.subr.mxu0 %v445
        %501 = vmatpush1.msra.mxu0 %v444
        %502 = vmatprep.subr.mxu0 %v441
        %503 = vmatpush1.msra.mxu0 %v440
        %504 = vmatprep.subr.mxu0 %v437
        %505 = vmatpush1.msra.mxu0 %v436
        %506 = vmatprep.subr.mxu0 %v433
        %507 = vmatpush1.msra.mxu0 %v432
        %508 = vmatprep.subr.mxu0 %v429
        %509 = vmatpush1.msra.mxu0 %v428
        %510 = vmatprep.subr.mxu0 %v425
        %511 = vmatpush1.msra.mxu0 %v424
        %512 = vmatprep.subr.mxu0 %v421
        %513 = vmatpush1.msra.mxu0 %v420
        %514 = vmatprep.subr.mxu0 %v417
        %515 = vmatpush1.msra.mxu0 %v416
        %516 = vmatprep.subr.mxu0 %v413
        %517 = vmatpush1.msra.mxu0 %v412
        %518 = vmatprep.subr.mxu0 %v409
        %519 = vmatpush1.msra.mxu0 %v408
        %520 = vmatprep.subr.mxu0 %v405
        %521 = vmatpush1.msra.mxu0 %v404
        %522 = vmatprep.subr.mxu0 0.0
        %523 = vmatpush2.msra.mxu0 0.0
        %524 = vmatprep.subr.mxu0 0.0
        %525 = vmatpush2.msra.mxu0 0.0
        %526 = vmatprep.subr.mxu0 0.0
        %527 = vmatpush2.msra.mxu0 0.0
        %528 = vmatprep.subr.mxu0 0.0
        %529 = vmatpush2.msra.mxu0 0.0
        %530 = vmatprep.subr.mxu0 0.0
        %531 = vmatpush2.msra.mxu0 0.0
        %532 = vmatprep.subr.mxu0 0.0
        %533 = vmatpush2.msra.mxu0 0.0
        %534 = vmatprep.subr.mxu0 0.0
        %535 = vmatpush2.msra.mxu0 0.0
        %536 = vmatprep.subr.mxu0 0.0
        %537 = vmatpush2.msra.mxu0 0.0
        %538 = vmatprep.subr.mxu0 0.0
        %539 = vmatpush2.msra.mxu0 0.0
        %540 = vmatprep.subr.mxu0 0.0
        %541 = vmatpush2.msra.mxu0 0.0
        %542 = vmatprep.subr.mxu0 0.0
        %543 = vmatpush2.msra.mxu0 0.0
        %544 = vmatprep.subr.mxu0 0.0
        %545 = vmatpush2.msra.mxu0 0.0
        %546 = vmatprep.subr.mxu0 0.0
        %547 = vmatpush2.msra.mxu0 0.0
        %548 = vmatprep.subr.mxu0 0.0
        %549 = vmatpush2.msra.mxu0 0.0
        %550 = vmatprep.subr.mxu0 0.0
        %551 = vmatpush2.msra.mxu0 0.0
        %552 = vmatprep.subr.mxu0 0.0
        %553 = vmatpush2.msra.mxu0 0.0
        %554 = vmatprep.mubr.f32.mxu0 0.0
        %555 = vmatmul.mubr.f32.gmra.mxu0 %v396
        %v556 = vpop.f32.mrf.mxu0
        %v557 = vadd.f32 %v473, %v556
        %v558 = vpop.f32.mrf.mxu0
        %v559 = vadd.f32 %v477, %v558
        %560 = vmatprep.mubr.f32.mxu0 0.0
        %561 = vmatmul.mubr.f32.gmra.mxu0 %v397
        %v562 = vpop.f32.mrf.mxu0
        %v563 = vadd.f32 %v473, %v562
        %v564 = vpop.f32.mrf.mxu0
        %v565 = vadd.f32 %v477, %v564
        %566 = vmatprep.mubr.f32.mxu0 0.0
        %567 = vmatmul.mubr.f32.gmra.mxu0 %v398
        %v568 = vpop.f32.mrf.mxu0
        %v569 = vadd.f32 %v473, %v568
        %v570 = vpop.f32.mrf.mxu0
        %v571 = vadd.f32 %v477, %v570
        %572 = vmatprep.mubr.f32.mxu0 0.0
        %573 = vmatmul.mubr.f32.gmra.mxu0 %v399
        %v574 = vpop.f32.mrf.mxu0
        %v575 = vadd.f32 %v473, %v574
        %v576 = vpop.f32.mrf.mxu0
        %v577 = vadd.f32 %v477, %v576
        %578 = vmatprep.mubr.f32.mxu0 0.0
        %579 = vmatmul.mubr.f32.gmra.mxu0 %v400
        %v580 = vpop.f32.mrf.mxu0
        %v581 = vadd.f32 %v473, %v580
        %v582 = vpop.f32.mrf.mxu0
        %v583 = vadd.f32 %v477, %v582
        %584 = vmatprep.mubr.f32.mxu0 0.0
        %585 = vmatmul.mubr.f32.gmra.mxu0 %v401
        %v586 = vpop.f32.mrf.mxu0
        %v587 = vadd.f32 %v473, %v586
        %v588 = vpop.f32.mrf.mxu0
        %v589 = vadd.f32 %v477, %v588
        %590 = vmatprep.mubr.f32.mxu0 0.0
        %591 = vmatmul.mubr.f32.gmra.mxu0 %v402
        %v592 = vpop.f32.mrf.mxu0
        %v593 = vadd.f32 %v473, %v592
        %v594 = vpop.f32.mrf.mxu0
        %v595 = vadd.f32 %v477, %v594
        %596 = vmatprep.mubr.f32.mxu0 0.0
        %597 = vmatmul.mubr.f32.gmra.mxu0 %v403
        %v598 = vpop.f32.mrf.mxu0
        %v599 = vadd.f32 %v473, %v598
        %v600 = vpop.f32.mrf.mxu0
        %v601 = vadd.f32 %v477, %v600
        %602 = vdwg.mxu0
        %603 = vmatprep.subr.mxu0 %v467
        %604 = vmatpush1.msra.mxu0 %v466
        %605 = vmatprep.subr.mxu0 %v463
        %606 = vmatpush1.msra.mxu0 %v462
        %607 = vmatprep.subr.mxu0 %v459
        %608 = vmatpush1.msra.mxu0 %v458
        %609 = vmatprep.subr.mxu0 %v455
        %610 = vmatpush1.msra.mxu0 %v454
        %611 = vmatprep.subr.mxu0 %v451
        %612 = vmatpush1.msra.mxu0 %v450
        %613 = vmatprep.subr.mxu0 %v447
        %614 = vmatpush1.msra.mxu0 %v446
        %615 = vmatprep.subr.mxu0 %v443
        %616 = vmatpush1.msra.mxu0 %v442
        %617 = vmatprep.subr.mxu0 %v439
        %618 = vmatpush1.msra.mxu0 %v438
        %619 = vmatprep.subr.mxu0 %v435
        %620 = vmatpush1.msra.mxu0 %v434
        %621 = vmatprep.subr.mxu0 %v431
        %622 = vmatpush1.msra.mxu0 %v430
        %623 = vmatprep.subr.mxu0 %v427
        %624 = vmatpush1.msra.mxu0 %v426
        %625 = vmatprep.subr.mxu0 %v423
        %626 = vmatpush1.msra.mxu0 %v422
        %627 = vmatprep.subr.mxu0 %v419
        %628 = vmatpush1.msra.mxu0 %v418
        %629 = vmatprep.subr.mxu0 %v415
        %630 = vmatpush1.msra.mxu0 %v414
        %631 = vmatprep.subr.mxu0 %v411
        %632 = vmatpush1.msra.mxu0 %v410
        %633 = vmatprep.subr.mxu0 %v407
        %634 = vmatpush1.msra.mxu0 %v406
        %635 = vmatprep.subr.mxu0 0.0
        %636 = vmatpush2.msra.mxu0 0.0
        %637 = vmatprep.subr.mxu0 0.0
        %638 = vmatpush2.msra.mxu0 0.0
        %639 = vmatprep.subr.mxu0 0.0
        %640 = vmatpush2.msra.mxu0 0.0
        %641 = vmatprep.subr.mxu0 0.0
        %642 = vmatpush2.msra.mxu0 0.0
        %643 = vmatprep.subr.mxu0 0.0
        %644 = vmatpush2.msra.mxu0 0.0
        %645 = vmatprep.subr.mxu0 0.0
        %646 = vmatpush2.msra.mxu0 0.0
        %647 = vmatprep.subr.mxu0 0.0
        %648 = vmatpush2.msra.mxu0 0.0
        %649 = vmatprep.subr.mxu0 0.0
        %650 = vmatpush2.msra.mxu0 0.0
        %651 = vmatprep.subr.mxu0 0.0
        %652 = vmatpush2.msra.mxu0 0.0
        %653 = vmatprep.subr.mxu0 0.0
        %654 = vmatpush2.msra.mxu0 0.0
        %655 = vmatprep.subr.mxu0 0.0
        %656 = vmatpush2.msra.mxu0 0.0
        %657 = vmatprep.subr.mxu0 0.0
        %658 = vmatpush2.msra.mxu0 0.0
        %659 = vmatprep.subr.mxu0 0.0
        %660 = vmatpush2.msra.mxu0 0.0
        %661 = vmatprep.subr.mxu0 0.0
        %662 = vmatpush2.msra.mxu0 0.0
        %663 = vmatprep.subr.mxu0 0.0
        %664 = vmatpush2.msra.mxu0 0.0
        %665 = vmatprep.subr.mxu0 0.0
        %666 = vmatpush2.msra.mxu0 0.0
        %667 = vmatprep.mubr.f32.mxu0 0.0
        %668 = vmatmul.mubr.f32.gmra.mxu0 %v396
        %v669 = vpop.f32.mrf.mxu0
        %v670 = vadd.f32 %v481, %v669
        %v671 = vpop.f32.mrf.mxu0
        %v672 = vadd.f32 %v485, %v671
        %673 = vmatprep.mubr.f32.mxu0 0.0
        %674 = vmatmul.mubr.f32.gmra.mxu0 %v397
        %v675 = vpop.f32.mrf.mxu0
        %v676 = vadd.f32 %v481, %v675
        %v677 = vpop.f32.mrf.mxu0
        %v678 = vadd.f32 %v485, %v677
        %679 = vmatprep.mubr.f32.mxu0 0.0
        %680 = vmatmul.mubr.f32.gmra.mxu0 %v398
        %v681 = vpop.f32.mrf.mxu0
        %v682 = vadd.f32 %v481, %v681
        %v683 = vpop.f32.mrf.mxu0
        %v684 = vadd.f32 %v485, %v683
        %685 = vmatprep.mubr.f32.mxu0 0.0
        %686 = vmatmul.mubr.f32.gmra.mxu0 %v399
        %v687 = vpop.f32.mrf.mxu0
        %v688 = vadd.f32 %v481, %v687
        %v689 = vpop.f32.mrf.mxu0
        %v690 = vadd.f32 %v485, %v689
        %691 = vmatprep.mubr.f32.mxu0 0.0
        %692 = vmatmul.mubr.f32.gmra.mxu0 %v400
        %v693 = vpop.f32.mrf.mxu0
        %v694 = vadd.f32 %v481, %v693
        %v695 = vpop.f32.mrf.mxu0
        %v696 = vadd.f32 %v485, %v695
        %697 = vmatprep.mubr.f32.mxu0 0.0
        %698 = vmatmul.mubr.f32.gmra.mxu0 %v401
        %v699 = vpop.f32.mrf.mxu0
        %v700 = vadd.f32 %v481, %v699
        %v701 = vpop.f32.mrf.mxu0
        %v702 = vadd.f32 %v485, %v701
        %703 = vmatprep.mubr.f32.mxu0 0.0
        %704 = vmatmul.mubr.f32.gmra.mxu0 %v402
        %v705 = vpop.f32.mrf.mxu0
        %v706 = vadd.f32 %v481, %v705
        %v707 = vpop.f32.mrf.mxu0
        %v708 = vadd.f32 %v485, %v707
        %709 = vmatprep.mubr.f32.mxu0 0.0
        %710 = vmatmul.mubr.f32.gmra.mxu0 %v403
        %v711 = vpop.f32.mrf.mxu0
        %v712 = vadd.f32 %v481, %v711
        %v713 = vpop.f32.mrf.mxu0
        %v714 = vadd.f32 %v485, %v713
        %715 = vdwg.mxu0
        %716 = vst [vmem:[#allocation4] sm:$0xff] %v557
        %717 = vst [vmem:[#allocation4 + $0x8] sm:$0xff] %v559
        %718 = vst [vmem:[#allocation4 + $0x10] sm:$0xff] %v670
        %719 = vst [vmem:[#allocation4 + $0x18] sm:$0xff] %v672
        %720 = vst [vmem:[#allocation4 + $0x20] sm:$0xff] %v563
        %721 = vst [vmem:[#allocation4 + $0x28] sm:$0xff] %v565
        %722 = vst [vmem:[#allocation4 + $0x30] sm:$0xff] %v676
        %723 = vst [vmem:[#allocation4 + $0x38] sm:$0xff] %v678
        %724 = vst [vmem:[#allocation4 + $0x40] sm:$0xff] %v569
        %725 = vst [vmem:[#allocation4 + $0x48] sm:$0xff] %v571
        %726 = vst [vmem:[#allocation4 + $0x50] sm:$0xff] %v682
        %727 = vst [vmem:[#allocation4 + $0x58] sm:$0xff] %v684
        %728 = vst [vmem:[#allocation4 + $0x60] sm:$0xff] %v575
        %729 = vst [vmem:[#allocation4 + $0x68] sm:$0xff] %v577
        %730 = vst [vmem:[#allocation4 + $0x70] sm:$0xff] %v688
        %731 = vst [vmem:[#allocation4 + $0x78] sm:$0xff] %v690
        %732 = vst [vmem:[#allocation4 + $0x80] sm:$0xff] %v581
        %733 = vst [vmem:[#allocation4 + $0x88] sm:$0xff] %v583
        %734 = vst [vmem:[#allocation4 + $0x90] sm:$0xff] %v694
        %735 = vst [vmem:[#allocation4 + $0x98] sm:$0xff] %v696
        %736 = vst [vmem:[#allocation4 + $0xa0] sm:$0xff] %v587
        %737 = vst [vmem:[#allocation4 + $0xa8] sm:$0xff] %v589
        %738 = vst [vmem:[#allocation4 + $0xb0] sm:$0xff] %v700
        %739 = vst [vmem:[#allocation4 + $0xb8] sm:$0xff] %v702
        %740 = vst [vmem:[#allocation4 + $0xc0] sm:$0xff] %v593
        %741 = vst [vmem:[#allocation4 + $0xc8] sm:$0xff] %v595
        %742 = vst [vmem:[#allocation4 + $0xd0] sm:$0xff] %v706
        %743 = vst [vmem:[#allocation4 + $0xd8] sm:$0xff] %v708
        %744 = vst [vmem:[#allocation4 + $0xe0] sm:$0xff] %v599
        %745 = vst [vmem:[#allocation4 + $0xe8] sm:$0xff] %v601
        %746 = vst [vmem:[#allocation4 + $0xf0] sm:$0xff] %v712
        %747 = vst [vmem:[#allocation4 + $0xf8] sm:$0xff] %v714
        %v748 = vld [vmem:[#allocation2] sm:$0xff]
        %v749 = vld [vmem:[#allocation3] sm:$0xff]
        %v750 = vld [vmem:[#allocation4] sm:$0xff]
        %v751 = vld [vmem:[#allocation4 + $0x8] sm:$0xff]
        %v752 = vld [vmem:[#allocation4 + $0x10] sm:$0xff]
        %v753 = vld [vmem:[#allocation4 + $0x18] sm:$0xff]
        %v754 = vld [vmem:[#allocation11] sm:$0xff]
        %v755 = vld [vmem:[#allocation11 + $0x8] sm:$0xff]
        %v756 = vld [vmem:[#allocation11 + $0x10] sm:$0xff]
        %v757 = vld [vmem:[#allocation11 + $0x18] sm:$0xff]
        %v758 = vld [vmem:[#allocation11 + $0x20] sm:$0xff]
        %v759 = vld [vmem:[#allocation11 + $0x28] sm:$0xff]
        %v760 = vld [vmem:[#allocation11 + $0x30] sm:$0xff]
        %v761 = vld [vmem:[#allocation11 + $0x38] sm:$0xff]
        %v762 = vld [vmem:[#allocation11 + $0x40] sm:$0xff]
        %v763 = vld [vmem:[#allocation11 + $0x48] sm:$0xff]
        %v764 = vld [vmem:[#allocation11 + $0x50] sm:$0xff]
        %v765 = vld [vmem:[#allocation11 + $0x58] sm:$0xff]
        %v766 = vld [vmem:[#allocation11 + $0x60] sm:$0xff]
        %v767 = vld [vmem:[#allocation11 + $0x68] sm:$0xff]
        %v768 = vld [vmem:[#allocation11 + $0x70] sm:$0xff]
        %v769 = vld [vmem:[#allocation11 + $0x78] sm:$0xff]
        %v770 = vld [vmem:[#allocation11 + $0x80] sm:$0xff]
        %v771 = vld [vmem:[#allocation11 + $0x88] sm:$0xff]
        %v772 = vld [vmem:[#allocation11 + $0x90] sm:$0xff]
        %v773 = vld [vmem:[#allocation11 + $0x98] sm:$0xff]
        %v774 = vld [vmem:[#allocation11 + $0xa0] sm:$0xff]
        %v775 = vld [vmem:[#allocation11 + $0xa8] sm:$0xff]
        %v776 = vld [vmem:[#allocation11 + $0xb0] sm:$0xff]
        %v777 = vld [vmem:[#allocation11 + $0xb8] sm:$0xff]
        %v778 = vld [vmem:[#allocation11 + $0xc0] sm:$0xff]
        %v779 = vld [vmem:[#allocation11 + $0xc8] sm:$0xff]
        %v780 = vld [vmem:[#allocation11 + $0xd0] sm:$0xff]
        %v781 = vld [vmem:[#allocation11 + $0xd8] sm:$0xff]
        %v782 = vld [vmem:[#allocation11 + $0xe0] sm:$0xff]
        %v783 = vld [vmem:[#allocation11 + $0xe8] sm:$0xff]
        %v784 = vld [vmem:[#allocation11 + $0xf0] sm:$0xff]
        %v785 = vld [vmem:[#allocation11 + $0xf8] sm:$0xff]
        %v786 = vld [vmem:[#allocation11 + $0x100] sm:$0xff]
        %v787 = vld [vmem:[#allocation11 + $0x108] sm:$0xff]
        %v788 = vld [vmem:[#allocation11 + $0x110] sm:$0xff]
        %v789 = vld [vmem:[#allocation11 + $0x118] sm:$0xff]
        %v790 = vld [vmem:[#allocation11 + $0x120] sm:$0xff]
        %v791 = vld [vmem:[#allocation11 + $0x128] sm:$0xff]
        %v792 = vld [vmem:[#allocation11 + $0x130] sm:$0xff]
        %v793 = vld [vmem:[#allocation11 + $0x138] sm:$0xff]
        %v794 = vld [vmem:[#allocation11 + $0x140] sm:$0xff]
        %v795 = vld [vmem:[#allocation11 + $0x148] sm:$0xff]
        %v796 = vld [vmem:[#allocation11 + $0x150] sm:$0xff]
        %v797 = vld [vmem:[#allocation11 + $0x158] sm:$0xff]
        %v798 = vld [vmem:[#allocation11 + $0x160] sm:$0xff]
        %v799 = vld [vmem:[#allocation11 + $0x168] sm:$0xff]
        %v800 = vld [vmem:[#allocation11 + $0x170] sm:$0xff]
        %v801 = vld [vmem:[#allocation11 + $0x178] sm:$0xff]
        %v802 = vld [vmem:[#allocation11 + $0x180] sm:$0xff]
        %v803 = vld [vmem:[#allocation11 + $0x188] sm:$0xff]
        %v804 = vld [vmem:[#allocation11 + $0x190] sm:$0xff]
        %v805 = vld [vmem:[#allocation11 + $0x198] sm:$0xff]
        %v806 = vld [vmem:[#allocation11 + $0x1a0] sm:$0xff]
        %v807 = vld [vmem:[#allocation11 + $0x1a8] sm:$0xff]
        %v808 = vld [vmem:[#allocation11 + $0x1b0] sm:$0xff]
        %v809 = vld [vmem:[#allocation11 + $0x1b8] sm:$0xff]
        %v810 = vld [vmem:[#allocation11 + $0x1c0] sm:$0xff]
        %v811 = vld [vmem:[#allocation11 + $0x1c8] sm:$0xff]
        %v812 = vld [vmem:[#allocation11 + $0x1d0] sm:$0xff]
        %v813 = vld [vmem:[#allocation11 + $0x1d8] sm:$0xff]
        %v814 = vld [vmem:[#allocation11 + $0x1e0] sm:$0xff]
        %v815 = vld [vmem:[#allocation11 + $0x1e8] sm:$0xff]
        %v816 = vld [vmem:[#allocation11 + $0x1f0] sm:$0xff]
        %v817 = vld [vmem:[#allocation11 + $0x1f8] sm:$0xff]
        %818 = vmatprep.subr.mxu0 %v815
        %819 = vmatpush1.msra.mxu0 %v814
        %820 = vmatprep.subr.mxu0 %v811
        %821 = vmatpush1.msra.mxu0 %v810
        %822 = vmatprep.subr.mxu0 %v807
        %823 = vmatpush1.msra.mxu0 %v806
        %824 = vmatprep.subr.mxu0 %v803
        %825 = vmatpush1.msra.mxu0 %v802
        %826 = vmatprep.subr.mxu0 %v799
        %827 = vmatpush1.msra.mxu0 %v798
        %828 = vmatprep.subr.mxu0 %v795
        %829 = vmatpush1.msra.mxu0 %v794
        %830 = vmatprep.subr.mxu0 %v791
        %831 = vmatpush1.msra.mxu0 %v790
        %832 = vmatprep.subr.mxu0 %v787
        %833 = vmatpush1.msra.mxu0 %v786
        %834 = vmatprep.subr.mxu0 %v783
        %835 = vmatpush1.msra.mxu0 %v782
        %836 = vmatprep.subr.mxu0 %v779
        %837 = vmatpush1.msra.mxu0 %v778
        %838 = vmatprep.subr.mxu0 %v775
        %839 = vmatpush1.msra.mxu0 %v774
        %840 = vmatprep.subr.mxu0 %v771
        %841 = vmatpush1.msra.mxu0 %v770
        %842 = vmatprep.subr.mxu0 %v767
        %843 = vmatpush1.msra.mxu0 %v766
        %844 = vmatprep.subr.mxu0 %v763
        %845 = vmatpush1.msra.mxu0 %v762
        %846 = vmatprep.subr.mxu0 %v759
        %847 = vmatpush1.msra.mxu0 %v758
        %848 = vmatprep.subr.mxu0 %v755
        %849 = vmatpush1.msra.mxu0 %v754
        %850 = vmatprep.subr.mxu0 0.0
        %851 = vmatpush2.msra.mxu0 0.0
        %852 = vmatprep.subr.mxu0 0.0
        %853 = vmatpush2.msra.mxu0 0.0
        %854 = vmatprep.subr.mxu0 0.0
        %855 = vmatpush2.msra.mxu0 0.0
        %856 = vmatprep.subr.mxu0 0.0
        %857 = vmatpush2.msra.mxu0 0.0
        %858 = vmatprep.subr.mxu0 0.0
        %859 = vmatpush2.msra.mxu0 0.0
        %860 = vmatprep.subr.mxu0 0.0
        %861 = vmatpush2.msra.mxu0 0.0
        %862 = vmatprep.subr.mxu0 0.0
        %863 = vmatpush2.msra.mxu0 0.0
        %864 = vmatprep.subr.mxu0 0.0
        %865 = vmatpush2.msra.mxu0 0.0
        %866 = vmatprep.subr.mxu0 0.0
        %867 = vmatpush2.msra.mxu0 0.0
        %868 = vmatprep.subr.mxu0 0.0
        %869 = vmatpush2.msra.mxu0 0.0
        %870 = vmatprep.subr.mxu0 0.0
        %871 = vmatpush2.msra.mxu0 0.0
        %872 = vmatprep.subr.mxu0 0.0
        %873 = vmatpush2.msra.mxu0 0.0
        %874 = vmatprep.subr.mxu0 0.0
        %875 = vmatpush2.msra.mxu0 0.0
        %876 = vmatprep.subr.mxu0 0.0
        %877 = vmatpush2.msra.mxu0 0.0
        %878 = vmatprep.subr.mxu0 0.0
        %879 = vmatpush2.msra.mxu0 0.0
        %880 = vmatprep.subr.mxu0 0.0
        %881 = vmatpush2.msra.mxu0 0.0
        %882 = vmatprep.mubr.f32.mxu0 0.0
        %883 = vmatmul.mubr.f32.gmra.mxu0 %v748
        %v884 = vpop.f32.mrf.mxu0
        %v885 = vadd.f32 0.0, %v884
        %v886 = vpop.f32.mrf.mxu0
        %v887 = vadd.f32 0.0, %v886
        %888 = vdwg.mxu0
        %889 = vmatprep.subr.mxu0 %v817
        %890 = vmatpush1.msra.mxu0 %v816
        %891 = vmatprep.subr.mxu0 %v813
        %892 = vmatpush1.msra.mxu0 %v812
        %893 = vmatprep.subr.mxu0 %v809
        %894 = vmatpush1.msra.mxu0 %v808
        %895 = vmatprep.subr.mxu0 %v805
        %896 = vmatpush1.msra.mxu0 %v804
        %897 = vmatprep.subr.mxu0 %v801
        %898 = vmatpush1.msra.mxu0 %v800
        %899 = vmatprep.subr.mxu0 %v797
        %900 = vmatpush1.msra.mxu0 %v796
        %901 = vmatprep.subr.mxu0 %v793
        %902 = vmatpush1.msra.mxu0 %v792
        %903 = vmatprep.subr.mxu0 %v789
        %904 = vmatpush1.msra.mxu0 %v788
        %905 = vmatprep.subr.mxu0 %v785
        %906 = vmatpush1.msra.mxu0 %v784
        %907 = vmatprep.subr.mxu0 %v781
        %908 = vmatpush1.msra.mxu0 %v780
        %909 = vmatprep.subr.mxu0 %v777
        %910 = vmatpush1.msra.mxu0 %v776
        %911 = vmatprep.subr.mxu0 %v773
        %912 = vmatpush1.msra.mxu0 %v772
        %913 = vmatprep.subr.mxu0 %v769
        %914 = vmatpush1.msra.mxu0 %v768
        %915 = vmatprep.subr.mxu0 %v765
        %916 = vmatpush1.msra.mxu0 %v764
        %917 = vmatprep.subr.mxu0 %v761
        %918 = vmatpush1.msra.mxu0 %v760
        %919 = vmatprep.subr.mxu0 %v757
        %920 = vmatpush1.msra.mxu0 %v756
        %921 = vmatprep.subr.mxu0 0.0
        %922 = vmatpush2.msra.mxu0 0.0
        %923 = vmatprep.subr.mxu0 0.0
        %924 = vmatpush2.msra.mxu0 0.0
        %925 = vmatprep.subr.mxu0 0.0
        %926 = vmatpush2.msra.mxu0 0.0
        %927 = vmatprep.subr.mxu0 0.0
        %928 = vmatpush2.msra.mxu0 0.0
        %929 = vmatprep.subr.mxu0 0.0
        %930 = vmatpush2.msra.mxu0 0.0
        %931 = vmatprep.subr.mxu0 0.0
        %932 = vmatpush2.msra.mxu0 0.0
        %933 = vmatprep.subr.mxu0 0.0
        %934 = vmatpush2.msra.mxu0 0.0
        %935 = vmatprep.subr.mxu0 0.0
        %936 = vmatpush2.msra.mxu0 0.0
        %937 = vmatprep.subr.mxu0 0.0
        %938 = vmatpush2.msra.mxu0 0.0
        %939 = vmatprep.subr.mxu0 0.0
        %940 = vmatpush2.msra.mxu0 0.0
        %941 = vmatprep.subr.mxu0 0.0
        %942 = vmatpush2.msra.mxu0 0.0
        %943 = vmatprep.subr.mxu0 0.0
        %944 = vmatpush2.msra.mxu0 0.0
        %945 = vmatprep.subr.mxu0 0.0
        %946 = vmatpush2.msra.mxu0 0.0
        %947 = vmatprep.subr.mxu0 0.0
        %948 = vmatpush2.msra.mxu0 0.0
        %949 = vmatprep.subr.mxu0 0.0
        %950 = vmatpush2.msra.mxu0 0.0
        %951 = vmatprep.subr.mxu0 0.0
        %952 = vmatpush2.msra.mxu0 0.0
        %953 = vmatprep.mubr.f32.mxu0 0.0
        %954 = vmatmul.mubr.f32.gmra.mxu0 %v748
        %v955 = vpop.f32.mrf.mxu0
        %v956 = vadd.f32 0.0, %v955
        %v957 = vpop.f32.mrf.mxu0
        %v958 = vadd.f32 0.0, %v957
        %959 = vdwg.mxu0
        %v960 = vadd.f32 %v750, %v885
        %v961 = vadd.f32 %v751, %v887
        %v962 = vadd.f32 %v752, %v956
        %v963 = vadd.f32 %v753, %v958
        %v964 = vmul.f32 %v960, 0.5
        %v965 = vtanh.pop %v964
        %v966 = vadd.f32 %v965, 1.0
        %v967 = vmul.f32 %v966, 0.5
        %v968 = vmul.f32 %v961, 0.5
        %v969 = vtanh.pop %v968
        %v970 = vadd.f32 %v969, 1.0
        %v971 = vmul.f32 %v970, 0.5
        %v972 = vtanh.pop %v962
        %v973 = vmul.f32 %v963, 0.5
        %v974 = vtanh.pop %v973
        %v975 = vadd.f32 %v974, 1.0
        %v976 = vmul.f32 %v975, 0.5
        %v977 = vmul.f32 %v971, %v749
        %v978 = vmul.f32 %v967, %v972
        %v979 = vadd.f32 %v977, %v978
        %v980 = vtanh.pop %v979
        %v981 = vmul.f32 %v976, %v980
        %s982 = smul.u32 %s29, 8
        %v983 = vstv %s982
        %vm984 = vcmp.lt.s32.totalorder %v983, %v395
        %v985 = vsel %vm984, 1, 0
        %986 = vset.pattern.permute.xlu0 0
        %987 = vperm.xlu0 %986, %v985
        %v988 = vpop.permute.xlu0 %987
        %vm989 = vcmp.eq.s32.totalorder %v988, 1
        %v990 = vsel %vm989, %v981, %v748
        %v991 = vsel %vm989, %v979, %v749
        %s992 = scalar_lea.vmem [#allocation4], 32
        %v993 = vld [vmem:[%s992] sm:$0xff]
        %v994 = vld [vmem:[%s992 + $0x8] sm:$0xff]
        %v995 = vld [vmem:[%s992 + $0x10] sm:$0xff]
        %v996 = vld [vmem:[%s992 + $0x18] sm:$0xff]
        %997 = vmatprep.subr.mxu0 %v815
        %998 = vmatpush1.msra.mxu0 %v814
        %999 = vmatprep.subr.mxu0 %v811
        %1000 = vmatpush1.msra.mxu0 %v810
        %1001 = vmatprep.subr.mxu0 %v807
        %1002 = vmatpush1.msra.mxu0 %v806
        %1003 = vmatprep.subr.mxu0 %v803
        %1004 = vmatpush1.msra.mxu0 %v802
        %1005 = vmatprep.subr.mxu0 %v799
        %1006 = vmatpush1.msra.mxu0 %v798
        %1007 = vmatprep.subr.mxu0 %v795
        %1008 = vmatpush1.msra.mxu0 %v794
        %1009 = vmatprep.subr.mxu0 %v791
        %1010 = vmatpush1.msra.mxu0 %v790
        %1011 = vmatprep.subr.mxu0 %v787
        %1012 = vmatpush1.msra.mxu0 %v786
        %1013 = vmatprep.subr.mxu0 %v783
        %1014 = vmatpush1.msra.mxu0 %v782
        %1015 = vmatprep.subr.mxu0 %v779
        %1016 = vmatpush1.msra.mxu0 %v778
        %1017 = vmatprep.subr.mxu0 %v775
        %1018 = vmatpush1.msra.mxu0 %v774
        %1019 = vmatprep.subr.mxu0 %v771
        %1020 = vmatpush1.msra.mxu0 %v770
        %1021 = vmatprep.subr.mxu0 %v767
        %1022 = vmatpush1.msra.mxu0 %v766
        %1023 = vmatprep.subr.mxu0 %v763
        %1024 = vmatpush1.msra.mxu0 %v762
        %1025 = vmatprep.subr.mxu0 %v759
        %1026 = vmatpush1.msra.mxu0 %v758
        %1027 = vmatprep.subr.mxu0 %v755
        %1028 = vmatpush1.msra.mxu0 %v754
        %1029 = vmatprep.subr.mxu0 0.0
        %1030 = vmatpush2.msra.mxu0 0.0
        %1031 = vmatprep.subr.mxu0 0.0
        %1032 = vmatpush2.msra.mxu0 0.0
        %1033 = vmatprep.subr.mxu0 0.0
        %1034 = vmatpush2.msra.mxu0 0.0
        %1035 = vmatprep.subr.mxu0 0.0
        %1036 = vmatpush2.msra.mxu0 0.0
        %1037 = vmatprep.subr.mxu0 0.0
        %1038 = vmatpush2.msra.mxu0 0.0
        %1039 = vmatprep.subr.mxu0 0.0
        %1040 = vmatpush2.msra.mxu0 0.0
        %1041 = vmatprep.subr.mxu0 0.0
        %1042 = vmatpush2.msra.mxu0 0.0
        %1043 = vmatprep.subr.mxu0 0.0
        %1044 = vmatpush2.msra.mxu0 0.0
        %1045 = vmatprep.subr.mxu0 0.0
        %1046 = vmatpush2.msra.mxu0 0.0
        %1047 = vmatprep.subr.mxu0 0.0
        %1048 = vmatpush2.msra.mxu0 0.0
        %1049 = vmatprep.subr.mxu0 0.0
        %1050 = vmatpush2.msra.mxu0 0.0
        %1051 = vmatprep.subr.mxu0 0.0
        %1052 = vmatpush2.msra.mxu0 0.0
        %1053 = vmatprep.subr.mxu0 0.0
        %1054 = vmatpush2.msra.mxu0 0.0
        %1055 = vmatprep.subr.mxu0 0.0
        %1056 = vmatpush2.msra.mxu0 0.0
        %1057 = vmatprep.subr.mxu0 0.0
        %1058 = vmatpush2.msra.mxu0 0.0
        %1059 = vmatprep.subr.mxu0 0.0
        %1060 = vmatpush2.msra.mxu0 0.0
        %1061 = vmatprep.mubr.f32.mxu0 0.0
        %1062 = vmatmul.mubr.f32.gmra.mxu0 %v990
        %v1063 = vpop.f32.mrf.mxu0
        %v1064 = vadd.f32 0.0, %v1063
        %v1065 = vpop.f32.mrf.mxu0
        %v1066 = vadd.f32 0.0, %v1065
        %1067 = vdwg.mxu0
        %1068 = vmatprep.subr.mxu0 %v817
        %1069 = vmatpush1.msra.mxu0 %v816
        %1070 = vmatprep.subr.mxu0 %v813
        %1071 = vmatpush1.msra.mxu0 %v812
        %1072 = vmatprep.subr.mxu0 %v809
        %1073 = vmatpush1.msra.mxu0 %v808
        %1074 = vmatprep.subr.mxu0 %v805
        %1075 = vmatpush1.msra.mxu0 %v804
        %1076 = vmatprep.subr.mxu0 %v801
        %1077 = vmatpush1.msra.mxu0 %v800
        %1078 = vmatprep.subr.mxu0 %v797
        %1079 = vmatpush1.msra.mxu0 %v796
        %1080 = vmatprep.subr.mxu0 %v793
        %1081 = vmatpush1.msra.mxu0 %v792
        %1082 = vmatprep.subr.mxu0 %v789
        %1083 = vmatpush1.msra.mxu0 %v788
        %1084 = vmatprep.subr.mxu0 %v785
        %1085 = vmatpush1.msra.mxu0 %v784
        %1086 = vmatprep.subr.mxu0 %v781
        %1087 = vmatpush1.msra.mxu0 %v780
        %1088 = vmatprep.subr.mxu0 %v777
        %1089 = vmatpush1.msra.mxu0 %v776
        %1090 = vmatprep.subr.mxu0 %v773
        %1091 = vmatpush1.msra.mxu0 %v772
        %1092 = vmatprep.subr.mxu0 %v769
        %1093 = vmatpush1.msra.mxu0 %v768
        %1094 = vmatprep.subr.mxu0 %v765
        %1095 = vmatpush1.msra.mxu0 %v764
        %1096 = vmatprep.subr.mxu0 %v761
        %1097 = vmatpush1.msra.mxu0 %v760
        %1098 = vmatprep.subr.mxu0 %v757
        %1099 = vmatpush1.msra.mxu0 %v756
        %1100 = vmatprep.subr.mxu0 0.0
        %1101 = vmatpush2.msra.mxu0 0.0
        %1102 = vmatprep.subr.mxu0 0.0
        %1103 = vmatpush2.msra.mxu0 0.0
        %1104 = vmatprep.subr.mxu0 0.0
        %1105 = vmatpush2.msra.mxu0 0.0
        %1106 = vmatprep.subr.mxu0 0.0
        %1107 = vmatpush2.msra.mxu0 0.0
        %1108 = vmatprep.subr.mxu0 0.0
        %1109 = vmatpush2.msra.mxu0 0.0
        %1110 = vmatprep.subr.mxu0 0.0
        %1111 = vmatpush2.msra.mxu0 0.0
        %1112 = vmatprep.subr.mxu0 0.0
        %1113 = vmatpush2.msra.mxu0 0.0
        %1114 = vmatprep.subr.mxu0 0.0
        %1115 = vmatpush2.msra.mxu0 0.0
        %1116 = vmatprep.subr.mxu0 0.0
        %1117 = vmatpush2.msra.mxu0 0.0
        %1118 = vmatprep.subr.mxu0 0.0
        %1119 = vmatpush2.msra.mxu0 0.0
        %1120 = vmatprep.subr.mxu0 0.0
        %1121 = vmatpush2.msra.mxu0 0.0
        %1122 = vmatprep.subr.mxu0 0.0
        %1123 = vmatpush2.msra.mxu0 0.0
        %1124 = vmatprep.subr.mxu0 0.0
        %1125 = vmatpush2.msra.mxu0 0.0
        %1126 = vmatprep.subr.mxu0 0.0
        %1127 = vmatpush2.msra.mxu0 0.0
        %1128 = vmatprep.subr.mxu0 0.0
        %1129 = vmatpush2.msra.mxu0 0.0
        %1130 = vmatprep.subr.mxu0 0.0
        %1131 = vmatpush2.msra.mxu0 0.0
        %1132 = vmatprep.mubr.f32.mxu0 0.0
        %1133 = vmatmul.mubr.f32.gmra.mxu0 %v990
        %v1134 = vpop.f32.mrf.mxu0
        %v1135 = vadd.f32 0.0, %v1134
        %v1136 = vpop.f32.mrf.mxu0
        %v1137 = vadd.f32 0.0, %v1136
        %1138 = vdwg.mxu0
        %v1139 = vadd.f32 %v993, %v1064
        %v1140 = vadd.f32 %v994, %v1066
        %v1141 = vadd.f32 %v995, %v1135
        %v1142 = vadd.f32 %v996, %v1137
        %v1143 = vmul.f32 %v1139, 0.5
        %v1144 = vtanh.pop %v1143
        %v1145 = vadd.f32 %v1144, 1.0
        %v1146 = vmul.f32 %v1145, 0.5
        %v1147 = vmul.f32 %v1140, 0.5
        %v1148 = vtanh.pop %v1147
        %v1149 = vadd.f32 %v1148, 1.0
        %v1150 = vmul.f32 %v1149, 0.5
        %v1151 = vtanh.pop %v1141
        %v1152 = vmul.f32 %v1142, 0.5
        %v1153 = vtanh.pop %v1152
        %v1154 = vadd.f32 %v1153, 1.0
        %v1155 = vmul.f32 %v1154, 0.5
        %v1156 = vmul.f32 %v1150, %v991
        %v1157 = vmul.f32 %v1146, %v1151
        %v1158 = vadd.f32 %v1156, %v1157
        %v1159 = vtanh.pop %v1158
        %v1160 = vmul.f32 %v1155, %v1159
        %s1161 = sadd.s32 %s982, 1
        %v1162 = vstv %s1161
        %vm1163 = vcmp.lt.s32.totalorder %v1162, %v395
        %v1164 = vsel %vm1163, 1, 0
        %1165 = vset.pattern.permute.xlu0 0
        %1166 = vperm.xlu0 %1165, %v1164
        %v1167 = vpop.permute.xlu0 %1166
        %vm1168 = vcmp.eq.s32.totalorder %v1167, 1
        %v1169 = vsel %vm1168, %v1160, %v990
        %v1170 = vsel %vm1168, %v1158, %v991
        %s1171 = scalar_lea.vmem [#allocation4], 64
        %v1172 = vld [vmem:[%s1171] sm:$0xff]
        %v1173 = vld [vmem:[%s1171 + $0x8] sm:$0xff]
        %v1174 = vld [vmem:[%s1171 + $0x10] sm:$0xff]
        %v1175 = vld [vmem:[%s1171 + $0x18] sm:$0xff]
        %1176 = vmatprep.subr.mxu0 %v815
        %1177 = vmatpush1.msra.mxu0 %v814
        %1178 = vmatprep.subr.mxu0 %v811
        %1179 = vmatpush1.msra.mxu0 %v810
        %1180 = vmatprep.subr.mxu0 %v807
        %1181 = vmatpush1.msra.mxu0 %v806
        %1182 = vmatprep.subr.mxu0 %v803
        %1183 = vmatpush1.msra.mxu0 %v802
        %1184 = vmatprep.subr.mxu0 %v799
        %1185 = vmatpush1.msra.mxu0 %v798
        %1186 = vmatprep.subr.mxu0 %v795
        %1187 = vmatpush1.msra.mxu0 %v794
        %1188 = vmatprep.subr.mxu0 %v791
        %1189 = vmatpush1.msra.mxu0 %v790
        %1190 = vmatprep.subr.mxu0 %v787
        %1191 = vmatpush1.msra.mxu0 %v786
        %1192 = vmatprep.subr.mxu0 %v783
        %1193 = vmatpush1.msra.mxu0 %v782
        %1194 = vmatprep.subr.mxu0 %v779
        %1195 = vmatpush1.msra.mxu0 %v778
        %1196 = vmatprep.subr.mxu0 %v775
        %1197 = vmatpush1.msra.mxu0 %v774
        %1198 = vmatprep.subr.mxu0 %v771
        %1199 = vmatpush1.msra.mxu0 %v770
        %1200 = vmatprep.subr.mxu0 %v767
        %1201 = vmatpush1.msra.mxu0 %v766
        %1202 = vmatprep.subr.mxu0 %v763
        %1203 = vmatpush1.msra.mxu0 %v762
        %1204 = vmatprep.subr.mxu0 %v759
        %1205 = vmatpush1.msra.mxu0 %v758
        %1206 = vmatprep.subr.mxu0 %v755
        %1207 = vmatpush1.msra.mxu0 %v754
        %1208 = vmatprep.subr.mxu0 0.0
        %1209 = vmatpush2.msra.mxu0 0.0
        %1210 = vmatprep.subr.mxu0 0.0
        %1211 = vmatpush2.msra.mxu0 0.0
        %1212 = vmatprep.subr.mxu0 0.0
        %1213 = vmatpush2.msra.mxu0 0.0
        %1214 = vmatprep.subr.mxu0 0.0
        %1215 = vmatpush2.msra.mxu0 0.0
        %1216 = vmatprep.subr.mxu0 0.0
        %1217 = vmatpush2.msra.mxu0 0.0
        %1218 = vmatprep.subr.mxu0 0.0
        %1219 = vmatpush2.msra.mxu0 0.0
        %1220 = vmatprep.subr.mxu0 0.0
        %1221 = vmatpush2.msra.mxu0 0.0
        %1222 = vmatprep.subr.mxu0 0.0
        %1223 = vmatpush2.msra.mxu0 0.0
        %1224 = vmatprep.subr.mxu0 0.0
        %1225 = vmatpush2.msra.mxu0 0.0
        %1226 = vmatprep.subr.mxu0 0.0
        %1227 = vmatpush2.msra.mxu0 0.0
        %1228 = vmatprep.subr.mxu0 0.0
        %1229 = vmatpush2.msra.mxu0 0.0
        %1230 = vmatprep.subr.mxu0 0.0
        %1231 = vmatpush2.msra.mxu0 0.0
        %1232 = vmatprep.subr.mxu0 0.0
        %1233 = vmatpush2.msra.mxu0 0.0
        %1234 = vmatprep.subr.mxu0 0.0
        %1235 = vmatpush2.msra.mxu0 0.0
        %1236 = vmatprep.subr.mxu0 0.0
        %1237 = vmatpush2.msra.mxu0 0.0
        %1238 = vmatprep.subr.mxu0 0.0
        %1239 = vmatpush2.msra.mxu0 0.0
        %1240 = vmatprep.mubr.f32.mxu0 0.0
        %1241 = vmatmul.mubr.f32.gmra.mxu0 %v1169
        %v1242 = vpop.f32.mrf.mxu0
        %v1243 = vadd.f32 0.0, %v1242
        %v1244 = vpop.f32.mrf.mxu0
        %v1245 = vadd.f32 0.0, %v1244
        %1246 = vdwg.mxu0
        %1247 = vmatprep.subr.mxu0 %v817
        %1248 = vmatpush1.msra.mxu0 %v816
        %1249 = vmatprep.subr.mxu0 %v813
        %1250 = vmatpush1.msra.mxu0 %v812
        %1251 = vmatprep.subr.mxu0 %v809
        %1252 = vmatpush1.msra.mxu0 %v808
        %1253 = vmatprep.subr.mxu0 %v805
        %1254 = vmatpush1.msra.mxu0 %v804
        %1255 = vmatprep.subr.mxu0 %v801
        %1256 = vmatpush1.msra.mxu0 %v800
        %1257 = vmatprep.subr.mxu0 %v797
        %1258 = vmatpush1.msra.mxu0 %v796
        %1259 = vmatprep.subr.mxu0 %v793
        %1260 = vmatpush1.msra.mxu0 %v792
        %1261 = vmatprep.subr.mxu0 %v789
        %1262 = vmatpush1.msra.mxu0 %v788
        %1263 = vmatprep.subr.mxu0 %v785
        %1264 = vmatpush1.msra.mxu0 %v784
        %1265 = vmatprep.subr.mxu0 %v781
        %1266 = vmatpush1.msra.mxu0 %v780
        %1267 = vmatprep.subr.mxu0 %v777
        %1268 = vmatpush1.msra.mxu0 %v776
        %1269 = vmatprep.subr.mxu0 %v773
        %1270 = vmatpush1.msra.mxu0 %v772
        %1271 = vmatprep.subr.mxu0 %v769
        %1272 = vmatpush1.msra.mxu0 %v768
        %1273 = vmatprep.subr.mxu0 %v765
        %1274 = vmatpush1.msra.mxu0 %v764
        %1275 = vmatprep.subr.mxu0 %v761
        %1276 = vmatpush1.msra.mxu0 %v760
        %1277 = vmatprep.subr.mxu0 %v757
        %1278 = vmatpush1.msra.mxu0 %v756
        %1279 = vmatprep.subr.mxu0 0.0
        %1280 = vmatpush2.msra.mxu0 0.0
        %1281 = vmatprep.subr.mxu0 0.0
        %1282 = vmatpush2.msra.mxu0 0.0
        %1283 = vmatprep.subr.mxu0 0.0
        %1284 = vmatpush2.msra.mxu0 0.0
        %1285 = vmatprep.subr.mxu0 0.0
        %1286 = vmatpush2.msra.mxu0 0.0
        %1287 = vmatprep.subr.mxu0 0.0
        %1288 = vmatpush2.msra.mxu0 0.0
        %1289 = vmatprep.subr.mxu0 0.0
        %1290 = vmatpush2.msra.mxu0 0.0
        %1291 = vmatprep.subr.mxu0 0.0
        %1292 = vmatpush2.msra.mxu0 0.0
        %1293 = vmatprep.subr.mxu0 0.0
        %1294 = vmatpush2.msra.mxu0 0.0
        %1295 = vmatprep.subr.mxu0 0.0
        %1296 = vmatpush2.msra.mxu0 0.0
        %1297 = vmatprep.subr.mxu0 0.0
        %1298 = vmatpush2.msra.mxu0 0.0
        %1299 = vmatprep.subr.mxu0 0.0
        %1300 = vmatpush2.msra.mxu0 0.0
        %1301 = vmatprep.subr.mxu0 0.0
        %1302 = vmatpush2.msra.mxu0 0.0
        %1303 = vmatprep.subr.mxu0 0.0
        %1304 = vmatpush2.msra.mxu0 0.0
        %1305 = vmatprep.subr.mxu0 0.0
        %1306 = vmatpush2.msra.mxu0 0.0
        %1307 = vmatprep.subr.mxu0 0.0
        %1308 = vmatpush2.msra.mxu0 0.0
        %1309 = vmatprep.subr.mxu0 0.0
        %1310 = vmatpush2.msra.mxu0 0.0
        %1311 = vmatprep.mubr.f32.mxu0 0.0
        %1312 = vmatmul.mubr.f32.gmra.mxu0 %v1169
        %v1313 = vpop.f32.mrf.mxu0
        %v1314 = vadd.f32 0.0, %v1313
        %v1315 = vpop.f32.mrf.mxu0
        %v1316 = vadd.f32 0.0, %v1315
        %1317 = vdwg.mxu0
        %v1318 = vadd.f32 %v1172, %v1243
        %v1319 = vadd.f32 %v1173, %v1245
        %v1320 = vadd.f32 %v1174, %v1314
        %v1321 = vadd.f32 %v1175, %v1316
        %v1322 = vmul.f32 %v1318, 0.5
        %v1323 = vtanh.pop %v1322
        %v1324 = vadd.f32 %v1323, 1.0
        %v1325 = vmul.f32 %v1324, 0.5
        %v1326 = vmul.f32 %v1319, 0.5
        %v1327 = vtanh.pop %v1326
        %v1328 = vadd.f32 %v1327, 1.0
        %v1329 = vmul.f32 %v1328, 0.5
        %v1330 = vtanh.pop %v1320
        %v1331 = vmul.f32 %v1321, 0.5
        %v1332 = vtanh.pop %v1331
        %v1333 = vadd.f32 %v1332, 1.0
        %v1334 = vmul.f32 %v1333, 0.5
        %v1335 = vmul.f32 %v1329, %v1170
        %v1336 = vmul.f32 %v1325, %v1330
        %v1337 = vadd.f32 %v1335, %v1336
        %v1338 = vtanh.pop %v1337
        %v1339 = vmul.f32 %v1334, %v1338
        %s1340 = sadd.s32 %s982, 2
        %v1341 = vstv %s1340
        %vm1342 = vcmp.lt.s32.totalorder %v1341, %v395
        %v1343 = vsel %vm1342, 1, 0
        %1344 = vset.pattern.permute.xlu0 0
        %1345 = vperm.xlu0 %1344, %v1343
        %v1346 = vpop.permute.xlu0 %1345
        %vm1347 = vcmp.eq.s32.totalorder %v1346, 1
        %v1348 = vsel %vm1347, %v1339, %v1169
        %v1349 = vsel %vm1347, %v1337, %v1170
        %s1350 = scalar_lea.vmem [#allocation4], 96
        %v1351 = vld [vmem:[%s1350] sm:$0xff]
        %v1352 = vld [vmem:[%s1350 + $0x8] sm:$0xff]
        %v1353 = vld [vmem:[%s1350 + $0x10] sm:$0xff]
        %v1354 = vld [vmem:[%s1350 + $0x18] sm:$0xff]
        %1355 = vmatprep.subr.mxu0 %v815
        %1356 = vmatpush1.msra.mxu0 %v814
        %1357 = vmatprep.subr.mxu0 %v811
        %1358 = vmatpush1.msra.mxu0 %v810
        %1359 = vmatprep.subr.mxu0 %v807
        %1360 = vmatpush1.msra.mxu0 %v806
        %1361 = vmatprep.subr.mxu0 %v803
        %1362 = vmatpush1.msra.mxu0 %v802
        %1363 = vmatprep.subr.mxu0 %v799
        %1364 = vmatpush1.msra.mxu0 %v798
        %1365 = vmatprep.subr.mxu0 %v795
        %1366 = vmatpush1.msra.mxu0 %v794
        %1367 = vmatprep.subr.mxu0 %v791
        %1368 = vmatpush1.msra.mxu0 %v790
        %1369 = vmatprep.subr.mxu0 %v787
        %1370 = vmatpush1.msra.mxu0 %v786
        %1371 = vmatprep.subr.mxu0 %v783
        %1372 = vmatpush1.msra.mxu0 %v782
        %1373 = vmatprep.subr.mxu0 %v779
        %1374 = vmatpush1.msra.mxu0 %v778
        %1375 = vmatprep.subr.mxu0 %v775
        %1376 = vmatpush1.msra.mxu0 %v774
        %1377 = vmatprep.subr.mxu0 %v771
        %1378 = vmatpush1.msra.mxu0 %v770
        %1379 = vmatprep.subr.mxu0 %v767
        %1380 = vmatpush1.msra.mxu0 %v766
        %1381 = vmatprep.subr.mxu0 %v763
        %1382 = vmatpush1.msra.mxu0 %v762
        %1383 = vmatprep.subr.mxu0 %v759
        %1384 = vmatpush1.msra.mxu0 %v758
        %1385 = vmatprep.subr.mxu0 %v755
        %1386 = vmatpush1.msra.mxu0 %v754
        %1387 = vmatprep.subr.mxu0 0.0
        %1388 = vmatpush2.msra.mxu0 0.0
        %1389 = vmatprep.subr.mxu0 0.0
        %1390 = vmatpush2.msra.mxu0 0.0
        %1391 = vmatprep.subr.mxu0 0.0
        %1392 = vmatpush2.msra.mxu0 0.0
        %1393 = vmatprep.subr.mxu0 0.0
        %1394 = vmatpush2.msra.mxu0 0.0
        %1395 = vmatprep.subr.mxu0 0.0
        %1396 = vmatpush2.msra.mxu0 0.0
        %1397 = vmatprep.subr.mxu0 0.0
        %1398 = vmatpush2.msra.mxu0 0.0
        %1399 = vmatprep.subr.mxu0 0.0
        %1400 = vmatpush2.msra.mxu0 0.0
        %1401 = vmatprep.subr.mxu0 0.0
        %1402 = vmatpush2.msra.mxu0 0.0
        %1403 = vmatprep.subr.mxu0 0.0
        %1404 = vmatpush2.msra.mxu0 0.0
        %1405 = vmatprep.subr.mxu0 0.0
        %1406 = vmatpush2.msra.mxu0 0.0
        %1407 = vmatprep.subr.mxu0 0.0
        %1408 = vmatpush2.msra.mxu0 0.0
        %1409 = vmatprep.subr.mxu0 0.0
        %1410 = vmatpush2.msra.mxu0 0.0
        %1411 = vmatprep.subr.mxu0 0.0
        %1412 = vmatpush2.msra.mxu0 0.0
        %1413 = vmatprep.subr.mxu0 0.0
        %1414 = vmatpush2.msra.mxu0 0.0
        %1415 = vmatprep.subr.mxu0 0.0
        %1416 = vmatpush2.msra.mxu0 0.0
        %1417 = vmatprep.subr.mxu0 0.0
        %1418 = vmatpush2.msra.mxu0 0.0
        %1419 = vmatprep.mubr.f32.mxu0 0.0
        %1420 = vmatmul.mubr.f32.gmra.mxu0 %v1348
        %v1421 = vpop.f32.mrf.mxu0
        %v1422 = vadd.f32 0.0, %v1421
        %v1423 = vpop.f32.mrf.mxu0
        %v1424 = vadd.f32 0.0, %v1423
        %1425 = vdwg.mxu0
        %1426 = vmatprep.subr.mxu0 %v817
        %1427 = vmatpush1.msra.mxu0 %v816
        %1428 = vmatprep.subr.mxu0 %v813
        %1429 = vmatpush1.msra.mxu0 %v812
        %1430 = vmatprep.subr.mxu0 %v809
        %1431 = vmatpush1.msra.mxu0 %v808
        %1432 = vmatprep.subr.mxu0 %v805
        %1433 = vmatpush1.msra.mxu0 %v804
        %1434 = vmatprep.subr.mxu0 %v801
        %1435 = vmatpush1.msra.mxu0 %v800
        %1436 = vmatprep.subr.mxu0 %v797
        %1437 = vmatpush1.msra.mxu0 %v796
        %1438 = vmatprep.subr.mxu0 %v793
        %1439 = vmatpush1.msra.mxu0 %v792
        %1440 = vmatprep.subr.mxu0 %v789
        %1441 = vmatpush1.msra.mxu0 %v788
        %1442 = vmatprep.subr.mxu0 %v785
        %1443 = vmatpush1.msra.mxu0 %v784
        %1444 = vmatprep.subr.mxu0 %v781
        %1445 = vmatpush1.msra.mxu0 %v780
        %1446 = vmatprep.subr.mxu0 %v777
        %1447 = vmatpush1.msra.mxu0 %v776
        %1448 = vmatprep.subr.mxu0 %v773
        %1449 = vmatpush1.msra.mxu0 %v772
        %1450 = vmatprep.subr.mxu0 %v769
        %1451 = vmatpush1.msra.mxu0 %v768
        %1452 = vmatprep.subr.mxu0 %v765
        %1453 = vmatpush1.msra.mxu0 %v764
        %1454 = vmatprep.subr.mxu0 %v761
        %1455 = vmatpush1.msra.mxu0 %v760
        %1456 = vmatprep.subr.mxu0 %v757
        %1457 = vmatpush1.msra.mxu0 %v756
        %1458 = vmatprep.subr.mxu0 0.0
        %1459 = vmatpush2.msra.mxu0 0.0
        %1460 = vmatprep.subr.mxu0 0.0
        %1461 = vmatpush2.msra.mxu0 0.0
        %1462 = vmatprep.subr.mxu0 0.0
        %1463 = vmatpush2.msra.mxu0 0.0
        %1464 = vmatprep.subr.mxu0 0.0
        %1465 = vmatpush2.msra.mxu0 0.0
        %1466 = vmatprep.subr.mxu0 0.0
        %1467 = vmatpush2.msra.mxu0 0.0
        %1468 = vmatprep.subr.mxu0 0.0
        %1469 = vmatpush2.msra.mxu0 0.0
        %1470 = vmatprep.subr.mxu0 0.0
        %1471 = vmatpush2.msra.mxu0 0.0
        %1472 = vmatprep.subr.mxu0 0.0
        %1473 = vmatpush2.msra.mxu0 0.0
        %1474 = vmatprep.subr.mxu0 0.0
        %1475 = vmatpush2.msra.mxu0 0.0
        %1476 = vmatprep.subr.mxu0 0.0
        %1477 = vmatpush2.msra.mxu0 0.0
        %1478 = vmatprep.subr.mxu0 0.0
        %1479 = vmatpush2.msra.mxu0 0.0
        %1480 = vmatprep.subr.mxu0 0.0
        %1481 = vmatpush2.msra.mxu0 0.0
        %1482 = vmatprep.subr.mxu0 0.0
        %1483 = vmatpush2.msra.mxu0 0.0
        %1484 = vmatprep.subr.mxu0 0.0
        %1485 = vmatpush2.msra.mxu0 0.0
        %1486 = vmatprep.subr.mxu0 0.0
        %1487 = vmatpush2.msra.mxu0 0.0
        %1488 = vmatprep.subr.mxu0 0.0
        %1489 = vmatpush2.msra.mxu0 0.0
        %1490 = vmatprep.mubr.f32.mxu0 0.0
        %1491 = vmatmul.mubr.f32.gmra.mxu0 %v1348
        %v1492 = vpop.f32.mrf.mxu0
        %v1493 = vadd.f32 0.0, %v1492
        %v1494 = vpop.f32.mrf.mxu0
        %v1495 = vadd.f32 0.0, %v1494
        %1496 = vdwg.mxu0
        %v1497 = vadd.f32 %v1351, %v1422
        %v1498 = vadd.f32 %v1352, %v1424
        %v1499 = vadd.f32 %v1353, %v1493
        %v1500 = vadd.f32 %v1354, %v1495
        %v1501 = vmul.f32 %v1497, 0.5
        %v1502 = vtanh.pop %v1501
        %v1503 = vadd.f32 %v1502, 1.0
        %v1504 = vmul.f32 %v1503, 0.5
        %v1505 = vmul.f32 %v1498, 0.5
        %v1506 = vtanh.pop %v1505
        %v1507 = vadd.f32 %v1506, 1.0
        %v1508 = vmul.f32 %v1507, 0.5
        %v1509 = vtanh.pop %v1499
        %v1510 = vmul.f32 %v1500, 0.5
        %v1511 = vtanh.pop %v1510
        %v1512 = vadd.f32 %v1511, 1.0
        %v1513 = vmul.f32 %v1512, 0.5
        %v1514 = vmul.f32 %v1508, %v1349
        %v1515 = vmul.f32 %v1504, %v1509
        %v1516 = vadd.f32 %v1514, %v1515
        %v1517 = vtanh.pop %v1516
        %v1518 = vmul.f32 %v1513, %v1517
        %s1519 = sadd.s32 %s982, 3
        %v1520 = vstv %s1519
        %vm1521 = vcmp.lt.s32.totalorder %v1520, %v395
        %v1522 = vsel %vm1521, 1, 0
        %1523 = vset.pattern.permute.xlu0 0
        %1524 = vperm.xlu0 %1523, %v1522
        %v1525 = vpop.permute.xlu0 %1524
        %vm1526 = vcmp.eq.s32.totalorder %v1525, 1
        %v1527 = vsel %vm1526, %v1518, %v1348
        %v1528 = vsel %vm1526, %v1516, %v1349
        %s1529 = scalar_lea.vmem [#allocation4], 128
        %v1530 = vld [vmem:[%s1529] sm:$0xff]
        %v1531 = vld [vmem:[%s1529 + $0x8] sm:$0xff]
        %v1532 = vld [vmem:[%s1529 + $0x10] sm:$0xff]
        %v1533 = vld [vmem:[%s1529 + $0x18] sm:$0xff]
        %1534 = vmatprep.subr.mxu0 %v815
        %1535 = vmatpush1.msra.mxu0 %v814
        %1536 = vmatprep.subr.mxu0 %v811
        %1537 = vmatpush1.msra.mxu0 %v810
        %1538 = vmatprep.subr.mxu0 %v807
        %1539 = vmatpush1.msra.mxu0 %v806
        %1540 = vmatprep.subr.mxu0 %v803
        %1541 = vmatpush1.msra.mxu0 %v802
        %1542 = vmatprep.subr.mxu0 %v799
        %1543 = vmatpush1.msra.mxu0 %v798
        %1544 = vmatprep.subr.mxu0 %v795
        %1545 = vmatpush1.msra.mxu0 %v794
        %1546 = vmatprep.subr.mxu0 %v791
        %1547 = vmatpush1.msra.mxu0 %v790
        %1548 = vmatprep.subr.mxu0 %v787
        %1549 = vmatpush1.msra.mxu0 %v786
        %1550 = vmatprep.subr.mxu0 %v783
        %1551 = vmatpush1.msra.mxu0 %v782
        %1552 = vmatprep.subr.mxu0 %v779
        %1553 = vmatpush1.msra.mxu0 %v778
        %1554 = vmatprep.subr.mxu0 %v775
        %1555 = vmatpush1.msra.mxu0 %v774
        %1556 = vmatprep.subr.mxu0 %v771
        %1557 = vmatpush1.msra.mxu0 %v770
        %1558 = vmatprep.subr.mxu0 %v767
        %1559 = vmatpush1.msra.mxu0 %v766
        %1560 = vmatprep.subr.mxu0 %v763
        %1561 = vmatpush1.msra.mxu0 %v762
        %1562 = vmatprep.subr.mxu0 %v759
        %1563 = vmatpush1.msra.mxu0 %v758
        %1564 = vmatprep.subr.mxu0 %v755
        %1565 = vmatpush1.msra.mxu0 %v754
        %1566 = vmatprep.subr.mxu0 0.0
        %1567 = vmatpush2.msra.mxu0 0.0
        %1568 = vmatprep.subr.mxu0 0.0
        %1569 = vmatpush2.msra.mxu0 0.0
        %1570 = vmatprep.subr.mxu0 0.0
        %1571 = vmatpush2.msra.mxu0 0.0
        %1572 = vmatprep.subr.mxu0 0.0
        %1573 = vmatpush2.msra.mxu0 0.0
        %1574 = vmatprep.subr.mxu0 0.0
        %1575 = vmatpush2.msra.mxu0 0.0
        %1576 = vmatprep.subr.mxu0 0.0
        %1577 = vmatpush2.msra.mxu0 0.0
        %1578 = vmatprep.subr.mxu0 0.0
        %1579 = vmatpush2.msra.mxu0 0.0
        %1580 = vmatprep.subr.mxu0 0.0
        %1581 = vmatpush2.msra.mxu0 0.0
        %1582 = vmatprep.subr.mxu0 0.0
        %1583 = vmatpush2.msra.mxu0 0.0
        %1584 = vmatprep.subr.mxu0 0.0
        %1585 = vmatpush2.msra.mxu0 0.0
        %1586 = vmatprep.subr.mxu0 0.0
        %1587 = vmatpush2.msra.mxu0 0.0
        %1588 = vmatprep.subr.mxu0 0.0
        %1589 = vmatpush2.msra.mxu0 0.0
        %1590 = vmatprep.subr.mxu0 0.0
        %1591 = vmatpush2.msra.mxu0 0.0
        %1592 = vmatprep.subr.mxu0 0.0
        %1593 = vmatpush2.msra.mxu0 0.0
        %1594 = vmatprep.subr.mxu0 0.0
        %1595 = vmatpush2.msra.mxu0 0.0
        %1596 = vmatprep.subr.mxu0 0.0
        %1597 = vmatpush2.msra.mxu0 0.0
        %1598 = vmatprep.mubr.f32.mxu0 0.0
        %1599 = vmatmul.mubr.f32.gmra.mxu0 %v1527
        %v1600 = vpop.f32.mrf.mxu0
        %v1601 = vadd.f32 0.0, %v1600
        %v1602 = vpop.f32.mrf.mxu0
        %v1603 = vadd.f32 0.0, %v1602
        %1604 = vdwg.mxu0
        %1605 = vmatprep.subr.mxu0 %v817
        %1606 = vmatpush1.msra.mxu0 %v816
        %1607 = vmatprep.subr.mxu0 %v813
        %1608 = vmatpush1.msra.mxu0 %v812
        %1609 = vmatprep.subr.mxu0 %v809
        %1610 = vmatpush1.msra.mxu0 %v808
        %1611 = vmatprep.subr.mxu0 %v805
        %1612 = vmatpush1.msra.mxu0 %v804
        %1613 = vmatprep.subr.mxu0 %v801
        %1614 = vmatpush1.msra.mxu0 %v800
        %1615 = vmatprep.subr.mxu0 %v797
        %1616 = vmatpush1.msra.mxu0 %v796
        %1617 = vmatprep.subr.mxu0 %v793
        %1618 = vmatpush1.msra.mxu0 %v792
        %1619 = vmatprep.subr.mxu0 %v789
        %1620 = vmatpush1.msra.mxu0 %v788
        %1621 = vmatprep.subr.mxu0 %v785
        %1622 = vmatpush1.msra.mxu0 %v784
        %1623 = vmatprep.subr.mxu0 %v781
        %1624 = vmatpush1.msra.mxu0 %v780
        %1625 = vmatprep.subr.mxu0 %v777
        %1626 = vmatpush1.msra.mxu0 %v776
        %1627 = vmatprep.subr.mxu0 %v773
        %1628 = vmatpush1.msra.mxu0 %v772
        %1629 = vmatprep.subr.mxu0 %v769
        %1630 = vmatpush1.msra.mxu0 %v768
        %1631 = vmatprep.subr.mxu0 %v765
        %1632 = vmatpush1.msra.mxu0 %v764
        %1633 = vmatprep.subr.mxu0 %v761
        %1634 = vmatpush1.msra.mxu0 %v760
        %1635 = vmatprep.subr.mxu0 %v757
        %1636 = vmatpush1.msra.mxu0 %v756
        %1637 = vmatprep.subr.mxu0 0.0
        %1638 = vmatpush2.msra.mxu0 0.0
        %1639 = vmatprep.subr.mxu0 0.0
        %1640 = vmatpush2.msra.mxu0 0.0
        %1641 = vmatprep.subr.mxu0 0.0
        %1642 = vmatpush2.msra.mxu0 0.0
        %1643 = vmatprep.subr.mxu0 0.0
        %1644 = vmatpush2.msra.mxu0 0.0
        %1645 = vmatprep.subr.mxu0 0.0
        %1646 = vmatpush2.msra.mxu0 0.0
        %1647 = vmatprep.subr.mxu0 0.0
        %1648 = vmatpush2.msra.mxu0 0.0
        %1649 = vmatprep.subr.mxu0 0.0
        %1650 = vmatpush2.msra.mxu0 0.0
        %1651 = vmatprep.subr.mxu0 0.0
        %1652 = vmatpush2.msra.mxu0 0.0
        %1653 = vmatprep.subr.mxu0 0.0
        %1654 = vmatpush2.msra.mxu0 0.0
        %1655 = vmatprep.subr.mxu0 0.0
        %1656 = vmatpush2.msra.mxu0 0.0
        %1657 = vmatprep.subr.mxu0 0.0
        %1658 = vmatpush2.msra.mxu0 0.0
        %1659 = vmatprep.subr.mxu0 0.0
        %1660 = vmatpush2.msra.mxu0 0.0
        %1661 = vmatprep.subr.mxu0 0.0
        %1662 = vmatpush2.msra.mxu0 0.0
        %1663 = vmatprep.subr.mxu0 0.0
        %1664 = vmatpush2.msra.mxu0 0.0
        %1665 = vmatprep.subr.mxu0 0.0
        %1666 = vmatpush2.msra.mxu0 0.0
        %1667 = vmatprep.subr.mxu0 0.0
        %1668 = vmatpush2.msra.mxu0 0.0
        %1669 = vmatprep.mubr.f32.mxu0 0.0
        %1670 = vmatmul.mubr.f32.gmra.mxu0 %v1527
        %v1671 = vpop.f32.mrf.mxu0
        %v1672 = vadd.f32 0.0, %v1671
        %v1673 = vpop.f32.mrf.mxu0
        %v1674 = vadd.f32 0.0, %v1673
        %1675 = vdwg.mxu0
        %v1676 = vadd.f32 %v1530, %v1601
        %v1677 = vadd.f32 %v1531, %v1603
        %v1678 = vadd.f32 %v1532, %v1672
        %v1679 = vadd.f32 %v1533, %v1674
        %v1680 = vmul.f32 %v1676, 0.5
        %v1681 = vtanh.pop %v1680
        %v1682 = vadd.f32 %v1681, 1.0
        %v1683 = vmul.f32 %v1682, 0.5
        %v1684 = vmul.f32 %v1677, 0.5
        %v1685 = vtanh.pop %v1684
        %v1686 = vadd.f32 %v1685, 1.0
        %v1687 = vmul.f32 %v1686, 0.5
        %v1688 = vtanh.pop %v1678
        %v1689 = vmul.f32 %v1679, 0.5
        %v1690 = vtanh.pop %v1689
        %v1691 = vadd.f32 %v1690, 1.0
        %v1692 = vmul.f32 %v1691, 0.5
        %v1693 = vmul.f32 %v1687, %v1528
        %v1694 = vmul.f32 %v1683, %v1688
        %v1695 = vadd.f32 %v1693, %v1694
        %v1696 = vtanh.pop %v1695
        %v1697 = vmul.f32 %v1692, %v1696
        %s1698 = sadd.s32 %s982, 4
        %v1699 = vstv %s1698
        %vm1700 = vcmp.lt.s32.totalorder %v1699, %v395
        %v1701 = vsel %vm1700, 1, 0
        %1702 = vset.pattern.permute.xlu0 0
        %1703 = vperm.xlu0 %1702, %v1701
        %v1704 = vpop.permute.xlu0 %1703
        %vm1705 = vcmp.eq.s32.totalorder %v1704, 1
        %v1706 = vsel %vm1705, %v1697, %v1527
        %v1707 = vsel %vm1705, %v1695, %v1528
        %s1708 = scalar_lea.vmem [#allocation4], 160
        %v1709 = vld [vmem:[%s1708] sm:$0xff]
        %v1710 = vld [vmem:[%s1708 + $0x8] sm:$0xff]
        %v1711 = vld [vmem:[%s1708 + $0x10] sm:$0xff]
        %v1712 = vld [vmem:[%s1708 + $0x18] sm:$0xff]
        %1713 = vmatprep.subr.mxu0 %v815
        %1714 = vmatpush1.msra.mxu0 %v814
        %1715 = vmatprep.subr.mxu0 %v811
        %1716 = vmatpush1.msra.mxu0 %v810
        %1717 = vmatprep.subr.mxu0 %v807
        %1718 = vmatpush1.msra.mxu0 %v806
        %1719 = vmatprep.subr.mxu0 %v803
        %1720 = vmatpush1.msra.mxu0 %v802
        %1721 = vmatprep.subr.mxu0 %v799
        %1722 = vmatpush1.msra.mxu0 %v798
        %1723 = vmatprep.subr.mxu0 %v795
        %1724 = vmatpush1.msra.mxu0 %v794
        %1725 = vmatprep.subr.mxu0 %v791
        %1726 = vmatpush1.msra.mxu0 %v790
        %1727 = vmatprep.subr.mxu0 %v787
        %1728 = vmatpush1.msra.mxu0 %v786
        %1729 = vmatprep.subr.mxu0 %v783
        %1730 = vmatpush1.msra.mxu0 %v782
        %1731 = vmatprep.subr.mxu0 %v779
        %1732 = vmatpush1.msra.mxu0 %v778
        %1733 = vmatprep.subr.mxu0 %v775
        %1734 = vmatpush1.msra.mxu0 %v774
        %1735 = vmatprep.subr.mxu0 %v771
        %1736 = vmatpush1.msra.mxu0 %v770
        %1737 = vmatprep.subr.mxu0 %v767
        %1738 = vmatpush1.msra.mxu0 %v766
        %1739 = vmatprep.subr.mxu0 %v763
        %1740 = vmatpush1.msra.mxu0 %v762
        %1741 = vmatprep.subr.mxu0 %v759
        %1742 = vmatpush1.msra.mxu0 %v758
        %1743 = vmatprep.subr.mxu0 %v755
        %1744 = vmatpush1.msra.mxu0 %v754
        %1745 = vmatprep.subr.mxu0 0.0
        %1746 = vmatpush2.msra.mxu0 0.0
        %1747 = vmatprep.subr.mxu0 0.0
        %1748 = vmatpush2.msra.mxu0 0.0
        %1749 = vmatprep.subr.mxu0 0.0
        %1750 = vmatpush2.msra.mxu0 0.0
        %1751 = vmatprep.subr.mxu0 0.0
        %1752 = vmatpush2.msra.mxu0 0.0
        %1753 = vmatprep.subr.mxu0 0.0
        %1754 = vmatpush2.msra.mxu0 0.0
        %1755 = vmatprep.subr.mxu0 0.0
        %1756 = vmatpush2.msra.mxu0 0.0
        %1757 = vmatprep.subr.mxu0 0.0
        %1758 = vmatpush2.msra.mxu0 0.0
        %1759 = vmatprep.subr.mxu0 0.0
        %1760 = vmatpush2.msra.mxu0 0.0
        %1761 = vmatprep.subr.mxu0 0.0
        %1762 = vmatpush2.msra.mxu0 0.0
        %1763 = vmatprep.subr.mxu0 0.0
        %1764 = vmatpush2.msra.mxu0 0.0
        %1765 = vmatprep.subr.mxu0 0.0
        %1766 = vmatpush2.msra.mxu0 0.0
        %1767 = vmatprep.subr.mxu0 0.0
        %1768 = vmatpush2.msra.mxu0 0.0
        %1769 = vmatprep.subr.mxu0 0.0
        %1770 = vmatpush2.msra.mxu0 0.0
        %1771 = vmatprep.subr.mxu0 0.0
        %1772 = vmatpush2.msra.mxu0 0.0
        %1773 = vmatprep.subr.mxu0 0.0
        %1774 = vmatpush2.msra.mxu0 0.0
        %1775 = vmatprep.subr.mxu0 0.0
        %1776 = vmatpush2.msra.mxu0 0.0
        %1777 = vmatprep.mubr.f32.mxu0 0.0
        %1778 = vmatmul.mubr.f32.gmra.mxu0 %v1706
        %v1779 = vpop.f32.mrf.mxu0
        %v1780 = vadd.f32 0.0, %v1779
        %v1781 = vpop.f32.mrf.mxu0
        %v1782 = vadd.f32 0.0, %v1781
        %1783 = vdwg.mxu0
        %1784 = vmatprep.subr.mxu0 %v817
        %1785 = vmatpush1.msra.mxu0 %v816
        %1786 = vmatprep.subr.mxu0 %v813
        %1787 = vmatpush1.msra.mxu0 %v812
        %1788 = vmatprep.subr.mxu0 %v809
        %1789 = vmatpush1.msra.mxu0 %v808
        %1790 = vmatprep.subr.mxu0 %v805
        %1791 = vmatpush1.msra.mxu0 %v804
        %1792 = vmatprep.subr.mxu0 %v801
        %1793 = vmatpush1.msra.mxu0 %v800
        %1794 = vmatprep.subr.mxu0 %v797
        %1795 = vmatpush1.msra.mxu0 %v796
        %1796 = vmatprep.subr.mxu0 %v793
        %1797 = vmatpush1.msra.mxu0 %v792
        %1798 = vmatprep.subr.mxu0 %v789
        %1799 = vmatpush1.msra.mxu0 %v788
        %1800 = vmatprep.subr.mxu0 %v785
        %1801 = vmatpush1.msra.mxu0 %v784
        %1802 = vmatprep.subr.mxu0 %v781
        %1803 = vmatpush1.msra.mxu0 %v780
        %1804 = vmatprep.subr.mxu0 %v777
        %1805 = vmatpush1.msra.mxu0 %v776
        %1806 = vmatprep.subr.mxu0 %v773
        %1807 = vmatpush1.msra.mxu0 %v772
        %1808 = vmatprep.subr.mxu0 %v769
        %1809 = vmatpush1.msra.mxu0 %v768
        %1810 = vmatprep.subr.mxu0 %v765
        %1811 = vmatpush1.msra.mxu0 %v764
        %1812 = vmatprep.subr.mxu0 %v761
        %1813 = vmatpush1.msra.mxu0 %v760
        %1814 = vmatprep.subr.mxu0 %v757
        %1815 = vmatpush1.msra.mxu0 %v756
        %1816 = vmatprep.subr.mxu0 0.0
        %1817 = vmatpush2.msra.mxu0 0.0
        %1818 = vmatprep.subr.mxu0 0.0
        %1819 = vmatpush2.msra.mxu0 0.0
        %1820 = vmatprep.subr.mxu0 0.0
        %1821 = vmatpush2.msra.mxu0 0.0
        %1822 = vmatprep.subr.mxu0 0.0
        %1823 = vmatpush2.msra.mxu0 0.0
        %1824 = vmatprep.subr.mxu0 0.0
        %1825 = vmatpush2.msra.mxu0 0.0
        %1826 = vmatprep.subr.mxu0 0.0
        %1827 = vmatpush2.msra.mxu0 0.0
        %1828 = vmatprep.subr.mxu0 0.0
        %1829 = vmatpush2.msra.mxu0 0.0
        %1830 = vmatprep.subr.mxu0 0.0
        %1831 = vmatpush2.msra.mxu0 0.0
        %1832 = vmatprep.subr.mxu0 0.0
        %1833 = vmatpush2.msra.mxu0 0.0
        %1834 = vmatprep.subr.mxu0 0.0
        %1835 = vmatpush2.msra.mxu0 0.0
        %1836 = vmatprep.subr.mxu0 0.0
        %1837 = vmatpush2.msra.mxu0 0.0
        %1838 = vmatprep.subr.mxu0 0.0
        %1839 = vmatpush2.msra.mxu0 0.0
        %1840 = vmatprep.subr.mxu0 0.0
        %1841 = vmatpush2.msra.mxu0 0.0
        %1842 = vmatprep.subr.mxu0 0.0
        %1843 = vmatpush2.msra.mxu0 0.0
        %1844 = vmatprep.subr.mxu0 0.0
        %1845 = vmatpush2.msra.mxu0 0.0
        %1846 = vmatprep.subr.mxu0 0.0
        %1847 = vmatpush2.msra.mxu0 0.0
        %1848 = vmatprep.mubr.f32.mxu0 0.0
        %1849 = vmatmul.mubr.f32.gmra.mxu0 %v1706
        %v1850 = vpop.f32.mrf.mxu0
        %v1851 = vadd.f32 0.0, %v1850
        %v1852 = vpop.f32.mrf.mxu0
        %v1853 = vadd.f32 0.0, %v1852
        %1854 = vdwg.mxu0
        %v1855 = vadd.f32 %v1709, %v1780
        %v1856 = vadd.f32 %v1710, %v1782
        %v1857 = vadd.f32 %v1711, %v1851
        %v1858 = vadd.f32 %v1712, %v1853
        %v1859 = vmul.f32 %v1855, 0.5
        %v1860 = vtanh.pop %v1859
        %v1861 = vadd.f32 %v1860, 1.0
        %v1862 = vmul.f32 %v1861, 0.5
        %v1863 = vmul.f32 %v1856, 0.5
        %v1864 = vtanh.pop %v1863
        %v1865 = vadd.f32 %v1864, 1.0
        %v1866 = vmul.f32 %v1865, 0.5
        %v1867 = vtanh.pop %v1857
        %v1868 = vmul.f32 %v1858, 0.5
        %v1869 = vtanh.pop %v1868
        %v1870 = vadd.f32 %v1869, 1.0
        %v1871 = vmul.f32 %v1870, 0.5
        %v1872 = vmul.f32 %v1866, %v1707
        %v1873 = vmul.f32 %v1862, %v1867
        %v1874 = vadd.f32 %v1872, %v1873
        %v1875 = vtanh.pop %v1874
        %v1876 = vmul.f32 %v1871, %v1875
        %s1877 = sadd.s32 %s982, 5
        %v1878 = vstv %s1877
        %vm1879 = vcmp.lt.s32.totalorder %v1878, %v395
        %v1880 = vsel %vm1879, 1, 0
        %1881 = vset.pattern.permute.xlu0 0
        %1882 = vperm.xlu0 %1881, %v1880
        %v1883 = vpop.permute.xlu0 %1882
        %vm1884 = vcmp.eq.s32.totalorder %v1883, 1
        %v1885 = vsel %vm1884, %v1876, %v1706
        %v1886 = vsel %vm1884, %v1874, %v1707
        %s1887 = scalar_lea.vmem [#allocation4], 192
        %v1888 = vld [vmem:[%s1887] sm:$0xff]
        %v1889 = vld [vmem:[%s1887 + $0x8] sm:$0xff]
        %v1890 = vld [vmem:[%s1887 + $0x10] sm:$0xff]
        %v1891 = vld [vmem:[%s1887 + $0x18] sm:$0xff]
        %1892 = vmatprep.subr.mxu0 %v815
        %1893 = vmatpush1.msra.mxu0 %v814
        %1894 = vmatprep.subr.mxu0 %v811
        %1895 = vmatpush1.msra.mxu0 %v810
        %1896 = vmatprep.subr.mxu0 %v807
        %1897 = vmatpush1.msra.mxu0 %v806
        %1898 = vmatprep.subr.mxu0 %v803
        %1899 = vmatpush1.msra.mxu0 %v802
        %1900 = vmatprep.subr.mxu0 %v799
        %1901 = vmatpush1.msra.mxu0 %v798
        %1902 = vmatprep.subr.mxu0 %v795
        %1903 = vmatpush1.msra.mxu0 %v794
        %1904 = vmatprep.subr.mxu0 %v791
        %1905 = vmatpush1.msra.mxu0 %v790
        %1906 = vmatprep.subr.mxu0 %v787
        %1907 = vmatpush1.msra.mxu0 %v786
        %1908 = vmatprep.subr.mxu0 %v783
        %1909 = vmatpush1.msra.mxu0 %v782
        %1910 = vmatprep.subr.mxu0 %v779
        %1911 = vmatpush1.msra.mxu0 %v778
        %1912 = vmatprep.subr.mxu0 %v775
        %1913 = vmatpush1.msra.mxu0 %v774
        %1914 = vmatprep.subr.mxu0 %v771
        %1915 = vmatpush1.msra.mxu0 %v770
        %1916 = vmatprep.subr.mxu0 %v767
        %1917 = vmatpush1.msra.mxu0 %v766
        %1918 = vmatprep.subr.mxu0 %v763
        %1919 = vmatpush1.msra.mxu0 %v762
        %1920 = vmatprep.subr.mxu0 %v759
        %1921 = vmatpush1.msra.mxu0 %v758
        %1922 = vmatprep.subr.mxu0 %v755
        %1923 = vmatpush1.msra.mxu0 %v754
        %1924 = vmatprep.subr.mxu0 0.0
        %1925 = vmatpush2.msra.mxu0 0.0
        %1926 = vmatprep.subr.mxu0 0.0
        %1927 = vmatpush2.msra.mxu0 0.0
        %1928 = vmatprep.subr.mxu0 0.0
        %1929 = vmatpush2.msra.mxu0 0.0
        %1930 = vmatprep.subr.mxu0 0.0
        %1931 = vmatpush2.msra.mxu0 0.0
        %1932 = vmatprep.subr.mxu0 0.0
        %1933 = vmatpush2.msra.mxu0 0.0
        %1934 = vmatprep.subr.mxu0 0.0
        %1935 = vmatpush2.msra.mxu0 0.0
        %1936 = vmatprep.subr.mxu0 0.0
        %1937 = vmatpush2.msra.mxu0 0.0
        %1938 = vmatprep.subr.mxu0 0.0
        %1939 = vmatpush2.msra.mxu0 0.0
        %1940 = vmatprep.subr.mxu0 0.0
        %1941 = vmatpush2.msra.mxu0 0.0
        %1942 = vmatprep.subr.mxu0 0.0
        %1943 = vmatpush2.msra.mxu0 0.0
        %1944 = vmatprep.subr.mxu0 0.0
        %1945 = vmatpush2.msra.mxu0 0.0
        %1946 = vmatprep.subr.mxu0 0.0
        %1947 = vmatpush2.msra.mxu0 0.0
        %1948 = vmatprep.subr.mxu0 0.0
        %1949 = vmatpush2.msra.mxu0 0.0
        %1950 = vmatprep.subr.mxu0 0.0
        %1951 = vmatpush2.msra.mxu0 0.0
        %1952 = vmatprep.subr.mxu0 0.0
        %1953 = vmatpush2.msra.mxu0 0.0
        %1954 = vmatprep.subr.mxu0 0.0
        %1955 = vmatpush2.msra.mxu0 0.0
        %1956 = vmatprep.mubr.f32.mxu0 0.0
        %1957 = vmatmul.mubr.f32.gmra.mxu0 %v1885
        %v1958 = vpop.f32.mrf.mxu0
        %v1959 = vadd.f32 0.0, %v1958
        %v1960 = vpop.f32.mrf.mxu0
        %v1961 = vadd.f32 0.0, %v1960
        %1962 = vdwg.mxu0
        %1963 = vmatprep.subr.mxu0 %v817
        %1964 = vmatpush1.msra.mxu0 %v816
        %1965 = vmatprep.subr.mxu0 %v813
        %1966 = vmatpush1.msra.mxu0 %v812
        %1967 = vmatprep.subr.mxu0 %v809
        %1968 = vmatpush1.msra.mxu0 %v808
        %1969 = vmatprep.subr.mxu0 %v805
        %1970 = vmatpush1.msra.mxu0 %v804
        %1971 = vmatprep.subr.mxu0 %v801
        %1972 = vmatpush1.msra.mxu0 %v800
        %1973 = vmatprep.subr.mxu0 %v797
        %1974 = vmatpush1.msra.mxu0 %v796
        %1975 = vmatprep.subr.mxu0 %v793
        %1976 = vmatpush1.msra.mxu0 %v792
        %1977 = vmatprep.subr.mxu0 %v789
        %1978 = vmatpush1.msra.mxu0 %v788
        %1979 = vmatprep.subr.mxu0 %v785
        %1980 = vmatpush1.msra.mxu0 %v784
        %1981 = vmatprep.subr.mxu0 %v781
        %1982 = vmatpush1.msra.mxu0 %v780
        %1983 = vmatprep.subr.mxu0 %v777
        %1984 = vmatpush1.msra.mxu0 %v776
        %1985 = vmatprep.subr.mxu0 %v773
        %1986 = vmatpush1.msra.mxu0 %v772
        %1987 = vmatprep.subr.mxu0 %v769
        %1988 = vmatpush1.msra.mxu0 %v768
        %1989 = vmatprep.subr.mxu0 %v765
        %1990 = vmatpush1.msra.mxu0 %v764
        %1991 = vmatprep.subr.mxu0 %v761
        %1992 = vmatpush1.msra.mxu0 %v760
        %1993 = vmatprep.subr.mxu0 %v757
        %1994 = vmatpush1.msra.mxu0 %v756
        %1995 = vmatprep.subr.mxu0 0.0
        %1996 = vmatpush2.msra.mxu0 0.0
        %1997 = vmatprep.subr.mxu0 0.0
        %1998 = vmatpush2.msra.mxu0 0.0
        %1999 = vmatprep.subr.mxu0 0.0
        %2000 = vmatpush2.msra.mxu0 0.0
        %2001 = vmatprep.subr.mxu0 0.0
        %2002 = vmatpush2.msra.mxu0 0.0
        %2003 = vmatprep.subr.mxu0 0.0
        %2004 = vmatpush2.msra.mxu0 0.0
        %2005 = vmatprep.subr.mxu0 0.0
        %2006 = vmatpush2.msra.mxu0 0.0
        %2007 = vmatprep.subr.mxu0 0.0
        %2008 = vmatpush2.msra.mxu0 0.0
        %2009 = vmatprep.subr.mxu0 0.0
        %2010 = vmatpush2.msra.mxu0 0.0
        %2011 = vmatprep.subr.mxu0 0.0
        %2012 = vmatpush2.msra.mxu0 0.0
        %2013 = vmatprep.subr.mxu0 0.0
        %2014 = vmatpush2.msra.mxu0 0.0
        %2015 = vmatprep.subr.mxu0 0.0
        %2016 = vmatpush2.msra.mxu0 0.0
        %2017 = vmatprep.subr.mxu0 0.0
        %2018 = vmatpush2.msra.mxu0 0.0
        %2019 = vmatprep.subr.mxu0 0.0
        %2020 = vmatpush2.msra.mxu0 0.0
        %2021 = vmatprep.subr.mxu0 0.0
        %2022 = vmatpush2.msra.mxu0 0.0
        %2023 = vmatprep.subr.mxu0 0.0
        %2024 = vmatpush2.msra.mxu0 0.0
        %2025 = vmatprep.subr.mxu0 0.0
        %2026 = vmatpush2.msra.mxu0 0.0
        %2027 = vmatprep.mubr.f32.mxu0 0.0
        %2028 = vmatmul.mubr.f32.gmra.mxu0 %v1885
        %v2029 = vpop.f32.mrf.mxu0
        %v2030 = vadd.f32 0.0, %v2029
        %v2031 = vpop.f32.mrf.mxu0
        %v2032 = vadd.f32 0.0, %v2031
        %2033 = vdwg.mxu0
        %v2034 = vadd.f32 %v1888, %v1959
        %v2035 = vadd.f32 %v1889, %v1961
        %v2036 = vadd.f32 %v1890, %v2030
        %v2037 = vadd.f32 %v1891, %v2032
        %v2038 = vmul.f32 %v2034, 0.5
        %v2039 = vtanh.pop %v2038
        %v2040 = vadd.f32 %v2039, 1.0
        %v2041 = vmul.f32 %v2040, 0.5
        %v2042 = vmul.f32 %v2035, 0.5
        %v2043 = vtanh.pop %v2042
        %v2044 = vadd.f32 %v2043, 1.0
        %v2045 = vmul.f32 %v2044, 0.5
        %v2046 = vtanh.pop %v2036
        %v2047 = vmul.f32 %v2037, 0.5
        %v2048 = vtanh.pop %v2047
        %v2049 = vadd.f32 %v2048, 1.0
        %v2050 = vmul.f32 %v2049, 0.5
        %v2051 = vmul.f32 %v2045, %v1886
        %v2052 = vmul.f32 %v2041, %v2046
        %v2053 = vadd.f32 %v2051, %v2052
        %v2054 = vtanh.pop %v2053
        %v2055 = vmul.f32 %v2050, %v2054
        %s2056 = sadd.s32 %s982, 6
        %v2057 = vstv %s2056
        %vm2058 = vcmp.lt.s32.totalorder %v2057, %v395
        %v2059 = vsel %vm2058, 1, 0
        %2060 = vset.pattern.permute.xlu0 0
        %2061 = vperm.xlu0 %2060, %v2059
        %v2062 = vpop.permute.xlu0 %2061
        %vm2063 = vcmp.eq.s32.totalorder %v2062, 1
        %v2064 = vsel %vm2063, %v2055, %v1885
        %v2065 = vsel %vm2063, %v2053, %v1886
        %s2066 = scalar_lea.vmem [#allocation4], 224
        %v2067 = vld [vmem:[%s2066] sm:$0xff]
        %v2068 = vld [vmem:[%s2066 + $0x8] sm:$0xff]
        %v2069 = vld [vmem:[%s2066 + $0x10] sm:$0xff]
        %v2070 = vld [vmem:[%s2066 + $0x18] sm:$0xff]
        %2071 = vmatprep.subr.mxu0 %v815
        %2072 = vmatpush1.msra.mxu0 %v814
        %2073 = vmatprep.subr.mxu0 %v811
        %2074 = vmatpush1.msra.mxu0 %v810
        %2075 = vmatprep.subr.mxu0 %v807
        %2076 = vmatpush1.msra.mxu0 %v806
        %2077 = vmatprep.subr.mxu0 %v803
        %2078 = vmatpush1.msra.mxu0 %v802
        %2079 = vmatprep.subr.mxu0 %v799
        %2080 = vmatpush1.msra.mxu0 %v798
        %2081 = vmatprep.subr.mxu0 %v795
        %2082 = vmatpush1.msra.mxu0 %v794
        %2083 = vmatprep.subr.mxu0 %v791
        %2084 = vmatpush1.msra.mxu0 %v790
        %2085 = vmatprep.subr.mxu0 %v787
        %2086 = vmatpush1.msra.mxu0 %v786
        %2087 = vmatprep.subr.mxu0 %v783
        %2088 = vmatpush1.msra.mxu0 %v782
        %2089 = vmatprep.subr.mxu0 %v779
        %2090 = vmatpush1.msra.mxu0 %v778
        %2091 = vmatprep.subr.mxu0 %v775
        %2092 = vmatpush1.msra.mxu0 %v774
        %2093 = vmatprep.subr.mxu0 %v771
        %2094 = vmatpush1.msra.mxu0 %v770
        %2095 = vmatprep.subr.mxu0 %v767
        %2096 = vmatpush1.msra.mxu0 %v766
        %2097 = vmatprep.subr.mxu0 %v763
        %2098 = vmatpush1.msra.mxu0 %v762
        %2099 = vmatprep.subr.mxu0 %v759
        %2100 = vmatpush1.msra.mxu0 %v758
        %2101 = vmatprep.subr.mxu0 %v755
        %2102 = vmatpush1.msra.mxu0 %v754
        %2103 = vmatprep.subr.mxu0 0.0
        %2104 = vmatpush2.msra.mxu0 0.0
        %2105 = vmatprep.subr.mxu0 0.0
        %2106 = vmatpush2.msra.mxu0 0.0
        %2107 = vmatprep.subr.mxu0 0.0
        %2108 = vmatpush2.msra.mxu0 0.0
        %2109 = vmatprep.subr.mxu0 0.0
        %2110 = vmatpush2.msra.mxu0 0.0
        %2111 = vmatprep.subr.mxu0 0.0
        %2112 = vmatpush2.msra.mxu0 0.0
        %2113 = vmatprep.subr.mxu0 0.0
        %2114 = vmatpush2.msra.mxu0 0.0
        %2115 = vmatprep.subr.mxu0 0.0
        %2116 = vmatpush2.msra.mxu0 0.0
        %2117 = vmatprep.subr.mxu0 0.0
        %2118 = vmatpush2.msra.mxu0 0.0
        %2119 = vmatprep.subr.mxu0 0.0
        %2120 = vmatpush2.msra.mxu0 0.0
        %2121 = vmatprep.subr.mxu0 0.0
        %2122 = vmatpush2.msra.mxu0 0.0
        %2123 = vmatprep.subr.mxu0 0.0
        %2124 = vmatpush2.msra.mxu0 0.0
        %2125 = vmatprep.subr.mxu0 0.0
        %2126 = vmatpush2.msra.mxu0 0.0
        %2127 = vmatprep.subr.mxu0 0.0
        %2128 = vmatpush2.msra.mxu0 0.0
        %2129 = vmatprep.subr.mxu0 0.0
        %2130 = vmatpush2.msra.mxu0 0.0
        %2131 = vmatprep.subr.mxu0 0.0
        %2132 = vmatpush2.msra.mxu0 0.0
        %2133 = vmatprep.subr.mxu0 0.0
        %2134 = vmatpush2.msra.mxu0 0.0
        %2135 = vmatprep.mubr.f32.mxu0 0.0
        %2136 = vmatmul.mubr.f32.gmra.mxu0 %v2064
        %v2137 = vpop.f32.mrf.mxu0
        %v2138 = vadd.f32 0.0, %v2137
        %v2139 = vpop.f32.mrf.mxu0
        %v2140 = vadd.f32 0.0, %v2139
        %2141 = vdwg.mxu0
        %2142 = vmatprep.subr.mxu0 %v817
        %2143 = vmatpush1.msra.mxu0 %v816
        %2144 = vmatprep.subr.mxu0 %v813
        %2145 = vmatpush1.msra.mxu0 %v812
        %2146 = vmatprep.subr.mxu0 %v809
        %2147 = vmatpush1.msra.mxu0 %v808
        %2148 = vmatprep.subr.mxu0 %v805
        %2149 = vmatpush1.msra.mxu0 %v804
        %2150 = vmatprep.subr.mxu0 %v801
        %2151 = vmatpush1.msra.mxu0 %v800
        %2152 = vmatprep.subr.mxu0 %v797
        %2153 = vmatpush1.msra.mxu0 %v796
        %2154 = vmatprep.subr.mxu0 %v793
        %2155 = vmatpush1.msra.mxu0 %v792
        %2156 = vmatprep.subr.mxu0 %v789
        %2157 = vmatpush1.msra.mxu0 %v788
        %2158 = vmatprep.subr.mxu0 %v785
        %2159 = vmatpush1.msra.mxu0 %v784
        %2160 = vmatprep.subr.mxu0 %v781
        %2161 = vmatpush1.msra.mxu0 %v780
        %2162 = vmatprep.subr.mxu0 %v777
        %2163 = vmatpush1.msra.mxu0 %v776
        %2164 = vmatprep.subr.mxu0 %v773
        %2165 = vmatpush1.msra.mxu0 %v772
        %2166 = vmatprep.subr.mxu0 %v769
        %2167 = vmatpush1.msra.mxu0 %v768
        %2168 = vmatprep.subr.mxu0 %v765
        %2169 = vmatpush1.msra.mxu0 %v764
        %2170 = vmatprep.subr.mxu0 %v761
        %2171 = vmatpush1.msra.mxu0 %v760
        %2172 = vmatprep.subr.mxu0 %v757
        %2173 = vmatpush1.msra.mxu0 %v756
        %2174 = vmatprep.subr.mxu0 0.0
        %2175 = vmatpush2.msra.mxu0 0.0
        %2176 = vmatprep.subr.mxu0 0.0
        %2177 = vmatpush2.msra.mxu0 0.0
        %2178 = vmatprep.subr.mxu0 0.0
        %2179 = vmatpush2.msra.mxu0 0.0
        %2180 = vmatprep.subr.mxu0 0.0
        %2181 = vmatpush2.msra.mxu0 0.0
        %2182 = vmatprep.subr.mxu0 0.0
        %2183 = vmatpush2.msra.mxu0 0.0
        %2184 = vmatprep.subr.mxu0 0.0
        %2185 = vmatpush2.msra.mxu0 0.0
        %2186 = vmatprep.subr.mxu0 0.0
        %2187 = vmatpush2.msra.mxu0 0.0
        %2188 = vmatprep.subr.mxu0 0.0
        %2189 = vmatpush2.msra.mxu0 0.0
        %2190 = vmatprep.subr.mxu0 0.0
        %2191 = vmatpush2.msra.mxu0 0.0
        %2192 = vmatprep.subr.mxu0 0.0
        %2193 = vmatpush2.msra.mxu0 0.0
        %2194 = vmatprep.subr.mxu0 0.0
        %2195 = vmatpush2.msra.mxu0 0.0
        %2196 = vmatprep.subr.mxu0 0.0
        %2197 = vmatpush2.msra.mxu0 0.0
        %2198 = vmatprep.subr.mxu0 0.0
        %2199 = vmatpush2.msra.mxu0 0.0
        %2200 = vmatprep.subr.mxu0 0.0
        %2201 = vmatpush2.msra.mxu0 0.0
        %2202 = vmatprep.subr.mxu0 0.0
        %2203 = vmatpush2.msra.mxu0 0.0
        %2204 = vmatprep.subr.mxu0 0.0
        %2205 = vmatpush2.msra.mxu0 0.0
        %2206 = vmatprep.mubr.f32.mxu0 0.0
        %2207 = vmatmul.mubr.f32.gmra.mxu0 %v2064
        %v2208 = vpop.f32.mrf.mxu0
        %v2209 = vadd.f32 0.0, %v2208
        %v2210 = vpop.f32.mrf.mxu0
        %v2211 = vadd.f32 0.0, %v2210
        %2212 = vdwg.mxu0
        %v2213 = vadd.f32 %v2067, %v2138
        %v2214 = vadd.f32 %v2068, %v2140
        %v2215 = vadd.f32 %v2069, %v2209
        %v2216 = vadd.f32 %v2070, %v2211
        %v2217 = vmul.f32 %v2213, 0.5
        %v2218 = vtanh.pop %v2217
        %v2219 = vadd.f32 %v2218, 1.0
        %v2220 = vmul.f32 %v2219, 0.5
        %v2221 = vmul.f32 %v2214, 0.5
        %v2222 = vtanh.pop %v2221
        %v2223 = vadd.f32 %v2222, 1.0
        %v2224 = vmul.f32 %v2223, 0.5
        %v2225 = vtanh.pop %v2215
        %v2226 = vmul.f32 %v2216, 0.5
        %v2227 = vtanh.pop %v2226
        %v2228 = vadd.f32 %v2227, 1.0
        %v2229 = vmul.f32 %v2228, 0.5
        %v2230 = vmul.f32 %v2224, %v2065
        %v2231 = vmul.f32 %v2220, %v2225
        %v2232 = vadd.f32 %v2230, %v2231
        %v2233 = vtanh.pop %v2232
        %v2234 = vmul.f32 %v2229, %v2233
        %s2235 = sadd.s32 %s982, 7
        %v2236 = vstv %s2235
        %vm2237 = vcmp.lt.s32.totalorder %v2236, %v395
        %v2238 = vsel %vm2237, 1, 0
        %2239 = vset.pattern.permute.xlu0 0
        %2240 = vperm.xlu0 %2239, %v2238
        %v2241 = vpop.permute.xlu0 %2240
        %vm2242 = vcmp.eq.s32.totalorder %v2241, 1
        %v2243 = vsel %vm2242, %v2234, %v2064
        %v2244 = vsel %vm2242, %v2232, %v2065
        %2245 = vst [vmem:[#allocation2] sm:$0xff] %v2243
        %2246 = vst [vmem:[#allocation3] sm:$0xff] %v2244
        %p2247 = scmp.eq.s32.totalorder %s29, 2
        // Predicated region
        $region73: #{tpu_custom_call.1} parent=47 // pred_check
          %p2248 = pneg %p2247
        $region74: #{tpu_custom_call.1} parent=47 // pred_check_branch
          %2250 = sbr.rel (%p2248) target = $region76
        $region75: #{tpu_custom_call.1} parent=47 // pred_region
          %v2251 = vld [vmem:[#allocation8] sm:$0xff]
          %v2252 = vld [vmem:[#allocation8 + $0x8] sm:$0xff]
          %v2253 = vld [vmem:[#allocation8 + $0x10] sm:$0xff]
          %v2254 = vld [vmem:[#allocation8 + $0x18] sm:$0xff]
          %v2255 = vld [vmem:[#allocation13] sm:$0xff]
          %v2256 = vld [vmem:[#allocation13 + $0x8] sm:$0xff]
          %v2257 = vld [vmem:[#allocation13 + $0x10] sm:$0xff]
          %v2258 = vld [vmem:[#allocation13 + $0x18] sm:$0xff]
          %v2259 = vld [vmem:[#allocation13 + $0x20] sm:$0xff]
          %v2260 = vld [vmem:[#allocation13 + $0x28] sm:$0xff]
          %v2261 = vld [vmem:[#allocation13 + $0x30] sm:$0xff]
          %v2262 = vld [vmem:[#allocation13 + $0x38] sm:$0xff]
          %v2263 = vld [vmem:[#allocation13 + $0x40] sm:$0xff]
          %v2264 = vld [vmem:[#allocation13 + $0x48] sm:$0xff]
          %v2265 = vld [vmem:[#allocation13 + $0x50] sm:$0xff]
          %v2266 = vld [vmem:[#allocation13 + $0x58] sm:$0xff]
          %v2267 = vld [vmem:[#allocation13 + $0x60] sm:$0xff]
          %v2268 = vld [vmem:[#allocation13 + $0x68] sm:$0xff]
          %v2269 = vld [vmem:[#allocation13 + $0x70] sm:$0xff]
          %v2270 = vld [vmem:[#allocation13 + $0x78] sm:$0xff]
          %v2271 = vld [vmem:[#allocation13 + $0x80] sm:$0xff]
          %v2272 = vld [vmem:[#allocation13 + $0x88] sm:$0xff]
          %v2273 = vld [vmem:[#allocation13 + $0x90] sm:$0xff]
          %v2274 = vld [vmem:[#allocation13 + $0x98] sm:$0xff]
          %v2275 = vld [vmem:[#allocation13 + $0xa0] sm:$0xff]
          %v2276 = vld [vmem:[#allocation13 + $0xa8] sm:$0xff]
          %v2277 = vld [vmem:[#allocation13 + $0xb0] sm:$0xff]
          %v2278 = vld [vmem:[#allocation13 + $0xb8] sm:$0xff]
          %v2279 = vld [vmem:[#allocation13 + $0xc0] sm:$0xff]
          %v2280 = vld [vmem:[#allocation13 + $0xc8] sm:$0xff]
          %v2281 = vld [vmem:[#allocation13 + $0xd0] sm:$0xff]
          %v2282 = vld [vmem:[#allocation13 + $0xd8] sm:$0xff]
          %v2283 = vld [vmem:[#allocation13 + $0xe0] sm:$0xff]
          %v2284 = vld [vmem:[#allocation13 + $0xe8] sm:$0xff]
          %v2285 = vld [vmem:[#allocation13 + $0xf0] sm:$0xff]
          %v2286 = vld [vmem:[#allocation13 + $0xf8] sm:$0xff]
          %v2287 = vld [vmem:[#allocation13 + $0x100] sm:$0xff]
          %v2288 = vld [vmem:[#allocation13 + $0x108] sm:$0xff]
          %v2289 = vld [vmem:[#allocation13 + $0x110] sm:$0xff]
          %v2290 = vld [vmem:[#allocation13 + $0x118] sm:$0xff]
          %v2291 = vld [vmem:[#allocation13 + $0x120] sm:$0xff]
          %v2292 = vld [vmem:[#allocation13 + $0x128] sm:$0xff]
          %v2293 = vld [vmem:[#allocation13 + $0x130] sm:$0xff]
          %v2294 = vld [vmem:[#allocation13 + $0x138] sm:$0xff]
          %v2295 = vld [vmem:[#allocation13 + $0x140] sm:$0xff]
          %v2296 = vld [vmem:[#allocation13 + $0x148] sm:$0xff]
          %v2297 = vld [vmem:[#allocation13 + $0x150] sm:$0xff]
          %v2298 = vld [vmem:[#allocation13 + $0x158] sm:$0xff]
          %v2299 = vld [vmem:[#allocation13 + $0x160] sm:$0xff]
          %v2300 = vld [vmem:[#allocation13 + $0x168] sm:$0xff]
          %v2301 = vld [vmem:[#allocation13 + $0x170] sm:$0xff]
          %v2302 = vld [vmem:[#allocation13 + $0x178] sm:$0xff]
          %v2303 = vld [vmem:[#allocation13 + $0x180] sm:$0xff]
          %v2304 = vld [vmem:[#allocation13 + $0x188] sm:$0xff]
          %v2305 = vld [vmem:[#allocation13 + $0x190] sm:$0xff]
          %v2306 = vld [vmem:[#allocation13 + $0x198] sm:$0xff]
          %v2307 = vld [vmem:[#allocation13 + $0x1a0] sm:$0xff]
          %v2308 = vld [vmem:[#allocation13 + $0x1a8] sm:$0xff]
          %v2309 = vld [vmem:[#allocation13 + $0x1b0] sm:$0xff]
          %v2310 = vld [vmem:[#allocation13 + $0x1b8] sm:$0xff]
          %v2311 = vld [vmem:[#allocation13 + $0x1c0] sm:$0xff]
          %v2312 = vld [vmem:[#allocation13 + $0x1c8] sm:$0xff]
          %v2313 = vld [vmem:[#allocation13 + $0x1d0] sm:$0xff]
          %v2314 = vld [vmem:[#allocation13 + $0x1d8] sm:$0xff]
          %v2315 = vld [vmem:[#allocation13 + $0x1e0] sm:$0xff]
          %v2316 = vld [vmem:[#allocation13 + $0x1e8] sm:$0xff]
          %v2317 = vld [vmem:[#allocation13 + $0x1f0] sm:$0xff]
          %v2318 = vld [vmem:[#allocation13 + $0x1f8] sm:$0xff]
          %2319 = vmatprep.subr.mxu0 %v2316
          %2320 = vmatpush1.msra.mxu0 %v2315
          %2321 = vmatprep.subr.mxu0 %v2312
          %2322 = vmatpush1.msra.mxu0 %v2311
          %2323 = vmatprep.subr.mxu0 %v2308
          %2324 = vmatpush1.msra.mxu0 %v2307
          %2325 = vmatprep.subr.mxu0 %v2304
          %2326 = vmatpush1.msra.mxu0 %v2303
          %2327 = vmatprep.subr.mxu0 %v2300
          %2328 = vmatpush1.msra.mxu0 %v2299
          %2329 = vmatprep.subr.mxu0 %v2296
          %2330 = vmatpush1.msra.mxu0 %v2295
          %2331 = vmatprep.subr.mxu0 %v2292
          %2332 = vmatpush1.msra.mxu0 %v2291
          %2333 = vmatprep.subr.mxu0 %v2288
          %2334 = vmatpush1.msra.mxu0 %v2287
          %2335 = vmatprep.subr.mxu0 %v2284
          %2336 = vmatpush1.msra.mxu0 %v2283
          %2337 = vmatprep.subr.mxu0 %v2280
          %2338 = vmatpush1.msra.mxu0 %v2279
          %2339 = vmatprep.subr.mxu0 %v2276
          %2340 = vmatpush1.msra.mxu0 %v2275
          %2341 = vmatprep.subr.mxu0 %v2272
          %2342 = vmatpush1.msra.mxu0 %v2271
          %2343 = vmatprep.subr.mxu0 %v2268
          %2344 = vmatpush1.msra.mxu0 %v2267
          %2345 = vmatprep.subr.mxu0 %v2264
          %2346 = vmatpush1.msra.mxu0 %v2263
          %2347 = vmatprep.subr.mxu0 %v2260
          %2348 = vmatpush1.msra.mxu0 %v2259
          %2349 = vmatprep.subr.mxu0 %v2256
          %2350 = vmatpush1.msra.mxu0 %v2255
          %2351 = vmatprep.subr.mxu0 0.0
          %2352 = vmatpush2.msra.mxu0 0.0
          %2353 = vmatprep.subr.mxu0 0.0
          %2354 = vmatpush2.msra.mxu0 0.0
          %2355 = vmatprep.subr.mxu0 0.0
          %2356 = vmatpush2.msra.mxu0 0.0
          %2357 = vmatprep.subr.mxu0 0.0
          %2358 = vmatpush2.msra.mxu0 0.0
          %2359 = vmatprep.subr.mxu0 0.0
          %2360 = vmatpush2.msra.mxu0 0.0
          %2361 = vmatprep.subr.mxu0 0.0
          %2362 = vmatpush2.msra.mxu0 0.0
          %2363 = vmatprep.subr.mxu0 0.0
          %2364 = vmatpush2.msra.mxu0 0.0
          %2365 = vmatprep.subr.mxu0 0.0
          %2366 = vmatpush2.msra.mxu0 0.0
          %2367 = vmatprep.subr.mxu0 0.0
          %2368 = vmatpush2.msra.mxu0 0.0
          %2369 = vmatprep.subr.mxu0 0.0
          %2370 = vmatpush2.msra.mxu0 0.0
          %2371 = vmatprep.subr.mxu0 0.0
          %2372 = vmatpush2.msra.mxu0 0.0
          %2373 = vmatprep.subr.mxu0 0.0
          %2374 = vmatpush2.msra.mxu0 0.0
          %2375 = vmatprep.subr.mxu0 0.0
          %2376 = vmatpush2.msra.mxu0 0.0
          %2377 = vmatprep.subr.mxu0 0.0
          %2378 = vmatpush2.msra.mxu0 0.0
          %2379 = vmatprep.subr.mxu0 0.0
          %2380 = vmatpush2.msra.mxu0 0.0
          %2381 = vmatprep.subr.mxu0 0.0
          %2382 = vmatpush2.msra.mxu0 0.0
          %2383 = vmatprep.mubr.f32.mxu0 0.0
          %2384 = vmatmul.mubr.f32.gmra.mxu0 %v2243
          %v2385 = vpop.f32.mrf.mxu0
          %v2386 = vadd.f32 0.0, %v2385
          %v2387 = vpop.f32.mrf.mxu0
          %v2388 = vadd.f32 0.0, %v2387
          %2389 = vdwg.mxu0
          %2390 = vmatprep.subr.mxu0 %v2318
          %2391 = vmatpush1.msra.mxu0 %v2317
          %2392 = vmatprep.subr.mxu0 %v2314
          %2393 = vmatpush1.msra.mxu0 %v2313
          %2394 = vmatprep.subr.mxu0 %v2310
          %2395 = vmatpush1.msra.mxu0 %v2309
          %2396 = vmatprep.subr.mxu0 %v2306
          %2397 = vmatpush1.msra.mxu0 %v2305
          %2398 = vmatprep.subr.mxu0 %v2302
          %2399 = vmatpush1.msra.mxu0 %v2301
          %2400 = vmatprep.subr.mxu0 %v2298
          %2401 = vmatpush1.msra.mxu0 %v2297
          %2402 = vmatprep.subr.mxu0 %v2294
          %2403 = vmatpush1.msra.mxu0 %v2293
          %2404 = vmatprep.subr.mxu0 %v2290
          %2405 = vmatpush1.msra.mxu0 %v2289
          %2406 = vmatprep.subr.mxu0 %v2286
          %2407 = vmatpush1.msra.mxu0 %v2285
          %2408 = vmatprep.subr.mxu0 %v2282
          %2409 = vmatpush1.msra.mxu0 %v2281
          %2410 = vmatprep.subr.mxu0 %v2278
          %2411 = vmatpush1.msra.mxu0 %v2277
          %2412 = vmatprep.subr.mxu0 %v2274
          %2413 = vmatpush1.msra.mxu0 %v2273
          %2414 = vmatprep.subr.mxu0 %v2270
          %2415 = vmatpush1.msra.mxu0 %v2269
          %2416 = vmatprep.subr.mxu0 %v2266
          %2417 = vmatpush1.msra.mxu0 %v2265
          %2418 = vmatprep.subr.mxu0 %v2262
          %2419 = vmatpush1.msra.mxu0 %v2261
          %2420 = vmatprep.subr.mxu0 %v2258
          %2421 = vmatpush1.msra.mxu0 %v2257
          %2422 = vmatprep.subr.mxu0 0.0
          %2423 = vmatpush2.msra.mxu0 0.0
          %2424 = vmatprep.subr.mxu0 0.0
          %2425 = vmatpush2.msra.mxu0 0.0
          %2426 = vmatprep.subr.mxu0 0.0
          %2427 = vmatpush2.msra.mxu0 0.0
          %2428 = vmatprep.subr.mxu0 0.0
          %2429 = vmatpush2.msra.mxu0 0.0
          %2430 = vmatprep.subr.mxu0 0.0
          %2431 = vmatpush2.msra.mxu0 0.0
          %2432 = vmatprep.subr.mxu0 0.0
          %2433 = vmatpush2.msra.mxu0 0.0
          %2434 = vmatprep.subr.mxu0 0.0
          %2435 = vmatpush2.msra.mxu0 0.0
          %2436 = vmatprep.subr.mxu0 0.0
          %2437 = vmatpush2.msra.mxu0 0.0
          %2438 = vmatprep.subr.mxu0 0.0
          %2439 = vmatpush2.msra.mxu0 0.0
          %2440 = vmatprep.subr.mxu0 0.0
          %2441 = vmatpush2.msra.mxu0 0.0
          %2442 = vmatprep.subr.mxu0 0.0
          %2443 = vmatpush2.msra.mxu0 0.0
          %2444 = vmatprep.subr.mxu0 0.0
          %2445 = vmatpush2.msra.mxu0 0.0
          %2446 = vmatprep.subr.mxu0 0.0
          %2447 = vmatpush2.msra.mxu0 0.0
          %2448 = vmatprep.subr.mxu0 0.0
          %2449 = vmatpush2.msra.mxu0 0.0
          %2450 = vmatprep.subr.mxu0 0.0
          %2451 = vmatpush2.msra.mxu0 0.0
          %2452 = vmatprep.subr.mxu0 0.0
          %2453 = vmatpush2.msra.mxu0 0.0
          %2454 = vmatprep.mubr.f32.mxu0 0.0
          %2455 = vmatmul.mubr.f32.gmra.mxu0 %v2243
          %v2456 = vpop.f32.mrf.mxu0
          %v2457 = vadd.f32 0.0, %v2456
          %v2458 = vpop.f32.mrf.mxu0
          %v2459 = vadd.f32 0.0, %v2458
          %2460 = vdwg.mxu0
          %v2461 = vadd.f32 %v2251, %v2386
          %v2462 = vadd.f32 %v2252, %v2388
          %v2463 = vadd.f32 %v2253, %v2457
          %v2464 = vadd.f32 %v2254, %v2459
          %v2465 = vmul.f32 %v2461, 0.5
          %v2466 = vtanh.pop %v2465
          %v2467 = vadd.f32 %v2466, 1.0
          %v2468 = vmul.f32 %v2467, 0.5
          %v2469 = vmul.f32 %v2462, 0.5
          %v2470 = vtanh.pop %v2469
          %v2471 = vadd.f32 %v2470, 1.0
          %v2472 = vmul.f32 %v2471, 0.5
          %v2473 = vtanh.pop %v2463
          %v2474 = vmul.f32 %v2464, 0.5
          %v2475 = vtanh.pop %v2474
          %v2476 = vadd.f32 %v2475, 1.0
          %v2477 = vmul.f32 %v2476, 0.5
          %v2478 = vmul.f32 %v2472, %v2244
          %v2479 = vmul.f32 %v2468, %v2473
          %v2480 = vadd.f32 %v2478, %v2479
          %v2481 = vtanh.pop %v2480
          %v2482 = vmul.f32 %v2477, %v2481
          %2483 = vst [vmem:[#allocation14] sm:$0xff] %v2482
          %s2484 = scalar_lea.vmem [#allocation8], 32
          %v2485 = vld [vmem:[%s2484] sm:$0xff]
          %v2486 = vld [vmem:[%s2484 + $0x8] sm:$0xff]
          %v2487 = vld [vmem:[%s2484 + $0x10] sm:$0xff]
          %v2488 = vld [vmem:[%s2484 + $0x18] sm:$0xff]
          %v2489 = vld [vmem:[#allocation13] sm:$0xff]
          %v2490 = vld [vmem:[#allocation13 + $0x8] sm:$0xff]
          %v2491 = vld [vmem:[#allocation13 + $0x10] sm:$0xff]
          %v2492 = vld [vmem:[#allocation13 + $0x18] sm:$0xff]
          %v2493 = vld [vmem:[#allocation13 + $0x20] sm:$0xff]
          %v2494 = vld [vmem:[#allocation13 + $0x28] sm:$0xff]
          %v2495 = vld [vmem:[#allocation13 + $0x30] sm:$0xff]
          %v2496 = vld [vmem:[#allocation13 + $0x38] sm:$0xff]
          %v2497 = vld [vmem:[#allocation13 + $0x40] sm:$0xff]
          %v2498 = vld [vmem:[#allocation13 + $0x48] sm:$0xff]
          %v2499 = vld [vmem:[#allocation13 + $0x50] sm:$0xff]
          %v2500 = vld [vmem:[#allocation13 + $0x58] sm:$0xff]
          %v2501 = vld [vmem:[#allocation13 + $0x60] sm:$0xff]
          %v2502 = vld [vmem:[#allocation13 + $0x68] sm:$0xff]
          %v2503 = vld [vmem:[#allocation13 + $0x70] sm:$0xff]
          %v2504 = vld [vmem:[#allocation13 + $0x78] sm:$0xff]
          %v2505 = vld [vmem:[#allocation13 + $0x80] sm:$0xff]
          %v2506 = vld [vmem:[#allocation13 + $0x88] sm:$0xff]
          %v2507 = vld [vmem:[#allocation13 + $0x90] sm:$0xff]
          %v2508 = vld [vmem:[#allocation13 + $0x98] sm:$0xff]
          %v2509 = vld [vmem:[#allocation13 + $0xa0] sm:$0xff]
          %v2510 = vld [vmem:[#allocation13 + $0xa8] sm:$0xff]
          %v2511 = vld [vmem:[#allocation13 + $0xb0] sm:$0xff]
          %v2512 = vld [vmem:[#allocation13 + $0xb8] sm:$0xff]
          %v2513 = vld [vmem:[#allocation13 + $0xc0] sm:$0xff]
          %v2514 = vld [vmem:[#allocation13 + $0xc8] sm:$0xff]
          %v2515 = vld [vmem:[#allocation13 + $0xd0] sm:$0xff]
          %v2516 = vld [vmem:[#allocation13 + $0xd8] sm:$0xff]
          %v2517 = vld [vmem:[#allocation13 + $0xe0] sm:$0xff]
          %v2518 = vld [vmem:[#allocation13 + $0xe8] sm:$0xff]
          %v2519 = vld [vmem:[#allocation13 + $0xf0] sm:$0xff]
          %v2520 = vld [vmem:[#allocation13 + $0xf8] sm:$0xff]
          %v2521 = vld [vmem:[#allocation13 + $0x100] sm:$0xff]
          %v2522 = vld [vmem:[#allocation13 + $0x108] sm:$0xff]
          %v2523 = vld [vmem:[#allocation13 + $0x110] sm:$0xff]
          %v2524 = vld [vmem:[#allocation13 + $0x118] sm:$0xff]
          %v2525 = vld [vmem:[#allocation13 + $0x120] sm:$0xff]
          %v2526 = vld [vmem:[#allocation13 + $0x128] sm:$0xff]
          %v2527 = vld [vmem:[#allocation13 + $0x130] sm:$0xff]
          %v2528 = vld [vmem:[#allocation13 + $0x138] sm:$0xff]
          %v2529 = vld [vmem:[#allocation13 + $0x140] sm:$0xff]
          %v2530 = vld [vmem:[#allocation13 + $0x148] sm:$0xff]
          %v2531 = vld [vmem:[#allocation13 + $0x150] sm:$0xff]
          %v2532 = vld [vmem:[#allocation13 + $0x158] sm:$0xff]
          %v2533 = vld [vmem:[#allocation13 + $0x160] sm:$0xff]
          %v2534 = vld [vmem:[#allocation13 + $0x168] sm:$0xff]
          %v2535 = vld [vmem:[#allocation13 + $0x170] sm:$0xff]
          %v2536 = vld [vmem:[#allocation13 + $0x178] sm:$0xff]
          %v2537 = vld [vmem:[#allocation13 + $0x180] sm:$0xff]
          %v2538 = vld [vmem:[#allocation13 + $0x188] sm:$0xff]
          %v2539 = vld [vmem:[#allocation13 + $0x190] sm:$0xff]
          %v2540 = vld [vmem:[#allocation13 + $0x198] sm:$0xff]
          %v2541 = vld [vmem:[#allocation13 + $0x1a0] sm:$0xff]
          %v2542 = vld [vmem:[#allocation13 + $0x1a8] sm:$0xff]
          %v2543 = vld [vmem:[#allocation13 + $0x1b0] sm:$0xff]
          %v2544 = vld [vmem:[#allocation13 + $0x1b8] sm:$0xff]
          %v2545 = vld [vmem:[#allocation13 + $0x1c0] sm:$0xff]
          %v2546 = vld [vmem:[#allocation13 + $0x1c8] sm:$0xff]
          %v2547 = vld [vmem:[#allocation13 + $0x1d0] sm:$0xff]
          %v2548 = vld [vmem:[#allocation13 + $0x1d8] sm:$0xff]
          %v2549 = vld [vmem:[#allocation13 + $0x1e0] sm:$0xff]
          %v2550 = vld [vmem:[#allocation13 + $0x1e8] sm:$0xff]
          %v2551 = vld [vmem:[#allocation13 + $0x1f0] sm:$0xff]
          %v2552 = vld [vmem:[#allocation13 + $0x1f8] sm:$0xff]
          %2553 = vmatprep.subr.mxu0 %v2550
          %2554 = vmatpush1.msra.mxu0 %v2549
          %2555 = vmatprep.subr.mxu0 %v2546
          %2556 = vmatpush1.msra.mxu0 %v2545
          %2557 = vmatprep.subr.mxu0 %v2542
          %2558 = vmatpush1.msra.mxu0 %v2541
          %2559 = vmatprep.subr.mxu0 %v2538
          %2560 = vmatpush1.msra.mxu0 %v2537
          %2561 = vmatprep.subr.mxu0 %v2534
          %2562 = vmatpush1.msra.mxu0 %v2533
          %2563 = vmatprep.subr.mxu0 %v2530
          %2564 = vmatpush1.msra.mxu0 %v2529
          %2565 = vmatprep.subr.mxu0 %v2526
          %2566 = vmatpush1.msra.mxu0 %v2525
          %2567 = vmatprep.subr.mxu0 %v2522
          %2568 = vmatpush1.msra.mxu0 %v2521
          %2569 = vmatprep.subr.mxu0 %v2518
          %2570 = vmatpush1.msra.mxu0 %v2517
          %2571 = vmatprep.subr.mxu0 %v2514
          %2572 = vmatpush1.msra.mxu0 %v2513
          %2573 = vmatprep.subr.mxu0 %v2510
          %2574 = vmatpush1.msra.mxu0 %v2509
          %2575 = vmatprep.subr.mxu0 %v2506
          %2576 = vmatpush1.msra.mxu0 %v2505
          %2577 = vmatprep.subr.mxu0 %v2502
          %2578 = vmatpush1.msra.mxu0 %v2501
          %2579 = vmatprep.subr.mxu0 %v2498
          %2580 = vmatpush1.msra.mxu0 %v2497
          %2581 = vmatprep.subr.mxu0 %v2494
          %2582 = vmatpush1.msra.mxu0 %v2493
          %2583 = vmatprep.subr.mxu0 %v2490
          %2584 = vmatpush1.msra.mxu0 %v2489
          %2585 = vmatprep.subr.mxu0 0.0
          %2586 = vmatpush2.msra.mxu0 0.0
          %2587 = vmatprep.subr.mxu0 0.0
          %2588 = vmatpush2.msra.mxu0 0.0
          %2589 = vmatprep.subr.mxu0 0.0
          %2590 = vmatpush2.msra.mxu0 0.0
          %2591 = vmatprep.subr.mxu0 0.0
          %2592 = vmatpush2.msra.mxu0 0.0
          %2593 = vmatprep.subr.mxu0 0.0
          %2594 = vmatpush2.msra.mxu0 0.0
          %2595 = vmatprep.subr.mxu0 0.0
          %2596 = vmatpush2.msra.mxu0 0.0
          %2597 = vmatprep.subr.mxu0 0.0
          %2598 = vmatpush2.msra.mxu0 0.0
          %2599 = vmatprep.subr.mxu0 0.0
          %2600 = vmatpush2.msra.mxu0 0.0
          %2601 = vmatprep.subr.mxu0 0.0
          %2602 = vmatpush2.msra.mxu0 0.0
          %2603 = vmatprep.subr.mxu0 0.0
          %2604 = vmatpush2.msra.mxu0 0.0
          %2605 = vmatprep.subr.mxu0 0.0
          %2606 = vmatpush2.msra.mxu0 0.0
          %2607 = vmatprep.subr.mxu0 0.0
          %2608 = vmatpush2.msra.mxu0 0.0
          %2609 = vmatprep.subr.mxu0 0.0
          %2610 = vmatpush2.msra.mxu0 0.0
          %2611 = vmatprep.subr.mxu0 0.0
          %2612 = vmatpush2.msra.mxu0 0.0
          %2613 = vmatprep.subr.mxu0 0.0
          %2614 = vmatpush2.msra.mxu0 0.0
          %2615 = vmatprep.subr.mxu0 0.0
          %2616 = vmatpush2.msra.mxu0 0.0
          %2617 = vmatprep.mubr.f32.mxu0 0.0
          %2618 = vmatmul.mubr.f32.gmra.mxu0 %v2482
          %v2619 = vpop.f32.mrf.mxu0
          %v2620 = vadd.f32 0.0, %v2619
          %v2621 = vpop.f32.mrf.mxu0
          %v2622 = vadd.f32 0.0, %v2621
          %2623 = vdwg.mxu0
          %2624 = vmatprep.subr.mxu0 %v2552
          %2625 = vmatpush1.msra.mxu0 %v2551
          %2626 = vmatprep.subr.mxu0 %v2548
          %2627 = vmatpush1.msra.mxu0 %v2547
          %2628 = vmatprep.subr.mxu0 %v2544
          %2629 = vmatpush1.msra.mxu0 %v2543
          %2630 = vmatprep.subr.mxu0 %v2540
          %2631 = vmatpush1.msra.mxu0 %v2539
          %2632 = vmatprep.subr.mxu0 %v2536
          %2633 = vmatpush1.msra.mxu0 %v2535
          %2634 = vmatprep.subr.mxu0 %v2532
          %2635 = vmatpush1.msra.mxu0 %v2531
          %2636 = vmatprep.subr.mxu0 %v2528
          %2637 = vmatpush1.msra.mxu0 %v2527
          %2638 = vmatprep.subr.mxu0 %v2524
          %2639 = vmatpush1.msra.mxu0 %v2523
          %2640 = vmatprep.subr.mxu0 %v2520
          %2641 = vmatpush1.msra.mxu0 %v2519
          %2642 = vmatprep.subr.mxu0 %v2516
          %2643 = vmatpush1.msra.mxu0 %v2515
          %2644 = vmatprep.subr.mxu0 %v2512
          %2645 = vmatpush1.msra.mxu0 %v2511
          %2646 = vmatprep.subr.mxu0 %v2508
          %2647 = vmatpush1.msra.mxu0 %v2507
          %2648 = vmatprep.subr.mxu0 %v2504
          %2649 = vmatpush1.msra.mxu0 %v2503
          %2650 = vmatprep.subr.mxu0 %v2500
          %2651 = vmatpush1.msra.mxu0 %v2499
          %2652 = vmatprep.subr.mxu0 %v2496
          %2653 = vmatpush1.msra.mxu0 %v2495
          %2654 = vmatprep.subr.mxu0 %v2492
          %2655 = vmatpush1.msra.mxu0 %v2491
          %2656 = vmatprep.subr.mxu0 0.0
          %2657 = vmatpush2.msra.mxu0 0.0
          %2658 = vmatprep.subr.mxu0 0.0
          %2659 = vmatpush2.msra.mxu0 0.0
          %2660 = vmatprep.subr.mxu0 0.0
          %2661 = vmatpush2.msra.mxu0 0.0
          %2662 = vmatprep.subr.mxu0 0.0
          %2663 = vmatpush2.msra.mxu0 0.0
          %2664 = vmatprep.subr.mxu0 0.0
          %2665 = vmatpush2.msra.mxu0 0.0
          %2666 = vmatprep.subr.mxu0 0.0
          %2667 = vmatpush2.msra.mxu0 0.0
          %2668 = vmatprep.subr.mxu0 0.0
          %2669 = vmatpush2.msra.mxu0 0.0
          %2670 = vmatprep.subr.mxu0 0.0
          %2671 = vmatpush2.msra.mxu0 0.0
          %2672 = vmatprep.subr.mxu0 0.0
          %2673 = vmatpush2.msra.mxu0 0.0
          %2674 = vmatprep.subr.mxu0 0.0
          %2675 = vmatpush2.msra.mxu0 0.0
          %2676 = vmatprep.subr.mxu0 0.0
          %2677 = vmatpush2.msra.mxu0 0.0
          %2678 = vmatprep.subr.mxu0 0.0
          %2679 = vmatpush2.msra.mxu0 0.0
          %2680 = vmatprep.subr.mxu0 0.0
          %2681 = vmatpush2.msra.mxu0 0.0
          %2682 = vmatprep.subr.mxu0 0.0
          %2683 = vmatpush2.msra.mxu0 0.0
          %2684 = vmatprep.subr.mxu0 0.0
          %2685 = vmatpush2.msra.mxu0 0.0
          %2686 = vmatprep.subr.mxu0 0.0
          %2687 = vmatpush2.msra.mxu0 0.0
          %2688 = vmatprep.mubr.f32.mxu0 0.0
          %2689 = vmatmul.mubr.f32.gmra.mxu0 %v2482
          %v2690 = vpop.f32.mrf.mxu0
          %v2691 = vadd.f32 0.0, %v2690
          %v2692 = vpop.f32.mrf.mxu0
          %v2693 = vadd.f32 0.0, %v2692
          %2694 = vdwg.mxu0
          %v2695 = vadd.f32 %v2485, %v2620
          %v2696 = vadd.f32 %v2486, %v2622
          %v2697 = vadd.f32 %v2487, %v2691
          %v2698 = vadd.f32 %v2488, %v2693
          %v2699 = vmul.f32 %v2695, 0.5
          %v2700 = vtanh.pop %v2699
          %v2701 = vadd.f32 %v2700, 1.0
          %v2702 = vmul.f32 %v2701, 0.5
          %v2703 = vmul.f32 %v2696, 0.5
          %v2704 = vtanh.pop %v2703
          %v2705 = vadd.f32 %v2704, 1.0
          %v2706 = vmul.f32 %v2705, 0.5
          %v2707 = vtanh.pop %v2697
          %v2708 = vmul.f32 %v2698, 0.5
          %v2709 = vtanh.pop %v2708
          %v2710 = vadd.f32 %v2709, 1.0
          %v2711 = vmul.f32 %v2710, 0.5
          %v2712 = vmul.f32 %v2706, %v2480
          %v2713 = vmul.f32 %v2702, %v2707
          %v2714 = vadd.f32 %v2712, %v2713
          %v2715 = vtanh.pop %v2714
          %v2716 = vmul.f32 %v2711, %v2715
          %s2717 = scalar_lea.vmem [#allocation14], 8
          %2718 = vst [vmem:[%s2717] sm:$0xff] %v2716
          %s2719 = scalar_lea.vmem [#allocation8], 64
          %v2720 = vld [vmem:[%s2719] sm:$0xff]
          %v2721 = vld [vmem:[%s2719 + $0x8] sm:$0xff]
          %v2722 = vld [vmem:[%s2719 + $0x10] sm:$0xff]
          %v2723 = vld [vmem:[%s2719 + $0x18] sm:$0xff]
          %v2724 = vld [vmem:[#allocation13] sm:$0xff]
          %v2725 = vld [vmem:[#allocation13 + $0x8] sm:$0xff]
          %v2726 = vld [vmem:[#allocation13 + $0x10] sm:$0xff]
          %v2727 = vld [vmem:[#allocation13 + $0x18] sm:$0xff]
          %v2728 = vld [vmem:[#allocation13 + $0x20] sm:$0xff]
          %v2729 = vld [vmem:[#allocation13 + $0x28] sm:$0xff]
          %v2730 = vld [vmem:[#allocation13 + $0x30] sm:$0xff]
          %v2731 = vld [vmem:[#allocation13 + $0x38] sm:$0xff]
          %v2732 = vld [vmem:[#allocation13 + $0x40] sm:$0xff]
          %v2733 = vld [vmem:[#allocation13 + $0x48] sm:$0xff]
          %v2734 = vld [vmem:[#allocation13 + $0x50] sm:$0xff]
          %v2735 = vld [vmem:[#allocation13 + $0x58] sm:$0xff]
          %v2736 = vld [vmem:[#allocation13 + $0x60] sm:$0xff]
          %v2737 = vld [vmem:[#allocation13 + $0x68] sm:$0xff]
          %v2738 = vld [vmem:[#allocation13 + $0x70] sm:$0xff]
          %v2739 = vld [vmem:[#allocation13 + $0x78] sm:$0xff]
          %v2740 = vld [vmem:[#allocation13 + $0x80] sm:$0xff]
          %v2741 = vld [vmem:[#allocation13 + $0x88] sm:$0xff]
          %v2742 = vld [vmem:[#allocation13 + $0x90] sm:$0xff]
          %v2743 = vld [vmem:[#allocation13 + $0x98] sm:$0xff]
          %v2744 = vld [vmem:[#allocation13 + $0xa0] sm:$0xff]
          %v2745 = vld [vmem:[#allocation13 + $0xa8] sm:$0xff]
          %v2746 = vld [vmem:[#allocation13 + $0xb0] sm:$0xff]
          %v2747 = vld [vmem:[#allocation13 + $0xb8] sm:$0xff]
          %v2748 = vld [vmem:[#allocation13 + $0xc0] sm:$0xff]
          %v2749 = vld [vmem:[#allocation13 + $0xc8] sm:$0xff]
          %v2750 = vld [vmem:[#allocation13 + $0xd0] sm:$0xff]
          %v2751 = vld [vmem:[#allocation13 + $0xd8] sm:$0xff]
          %v2752 = vld [vmem:[#allocation13 + $0xe0] sm:$0xff]
          %v2753 = vld [vmem:[#allocation13 + $0xe8] sm:$0xff]
          %v2754 = vld [vmem:[#allocation13 + $0xf0] sm:$0xff]
          %v2755 = vld [vmem:[#allocation13 + $0xf8] sm:$0xff]
          %v2756 = vld [vmem:[#allocation13 + $0x100] sm:$0xff]
          %v2757 = vld [vmem:[#allocation13 + $0x108] sm:$0xff]
          %v2758 = vld [vmem:[#allocation13 + $0x110] sm:$0xff]
          %v2759 = vld [vmem:[#allocation13 + $0x118] sm:$0xff]
          %v2760 = vld [vmem:[#allocation13 + $0x120] sm:$0xff]
          %v2761 = vld [vmem:[#allocation13 + $0x128] sm:$0xff]
          %v2762 = vld [vmem:[#allocation13 + $0x130] sm:$0xff]
          %v2763 = vld [vmem:[#allocation13 + $0x138] sm:$0xff]
          %v2764 = vld [vmem:[#allocation13 + $0x140] sm:$0xff]
          %v2765 = vld [vmem:[#allocation13 + $0x148] sm:$0xff]
          %v2766 = vld [vmem:[#allocation13 + $0x150] sm:$0xff]
          %v2767 = vld [vmem:[#allocation13 + $0x158] sm:$0xff]
          %v2768 = vld [vmem:[#allocation13 + $0x160] sm:$0xff]
          %v2769 = vld [vmem:[#allocation13 + $0x168] sm:$0xff]
          %v2770 = vld [vmem:[#allocation13 + $0x170] sm:$0xff]
          %v2771 = vld [vmem:[#allocation13 + $0x178] sm:$0xff]
          %v2772 = vld [vmem:[#allocation13 + $0x180] sm:$0xff]
          %v2773 = vld [vmem:[#allocation13 + $0x188] sm:$0xff]
          %v2774 = vld [vmem:[#allocation13 + $0x190] sm:$0xff]
          %v2775 = vld [vmem:[#allocation13 + $0x198] sm:$0xff]
          %v2776 = vld [vmem:[#allocation13 + $0x1a0] sm:$0xff]
          %v2777 = vld [vmem:[#allocation13 + $0x1a8] sm:$0xff]
          %v2778 = vld [vmem:[#allocation13 + $0x1b0] sm:$0xff]
          %v2779 = vld [vmem:[#allocation13 + $0x1b8] sm:$0xff]
          %v2780 = vld [vmem:[#allocation13 + $0x1c0] sm:$0xff]
          %v2781 = vld [vmem:[#allocation13 + $0x1c8] sm:$0xff]
          %v2782 = vld [vmem:[#allocation13 + $0x1d0] sm:$0xff]
          %v2783 = vld [vmem:[#allocation13 + $0x1d8] sm:$0xff]
          %v2784 = vld [vmem:[#allocation13 + $0x1e0] sm:$0xff]
          %v2785 = vld [vmem:[#allocation13 + $0x1e8] sm:$0xff]
          %v2786 = vld [vmem:[#allocation13 + $0x1f0] sm:$0xff]
          %v2787 = vld [vmem:[#allocation13 + $0x1f8] sm:$0xff]
          %2788 = vmatprep.subr.mxu0 %v2785
          %2789 = vmatpush1.msra.mxu0 %v2784
          %2790 = vmatprep.subr.mxu0 %v2781
          %2791 = vmatpush1.msra.mxu0 %v2780
          %2792 = vmatprep.subr.mxu0 %v2777
          %2793 = vmatpush1.msra.mxu0 %v2776
          %2794 = vmatprep.subr.mxu0 %v2773
          %2795 = vmatpush1.msra.mxu0 %v2772
          %2796 = vmatprep.subr.mxu0 %v2769
          %2797 = vmatpush1.msra.mxu0 %v2768
          %2798 = vmatprep.subr.mxu0 %v2765
          %2799 = vmatpush1.msra.mxu0 %v2764
          %2800 = vmatprep.subr.mxu0 %v2761
          %2801 = vmatpush1.msra.mxu0 %v2760
          %2802 = vmatprep.subr.mxu0 %v2757
          %2803 = vmatpush1.msra.mxu0 %v2756
          %2804 = vmatprep.subr.mxu0 %v2753
          %2805 = vmatpush1.msra.mxu0 %v2752
          %2806 = vmatprep.subr.mxu0 %v2749
          %2807 = vmatpush1.msra.mxu0 %v2748
          %2808 = vmatprep.subr.mxu0 %v2745
          %2809 = vmatpush1.msra.mxu0 %v2744
          %2810 = vmatprep.subr.mxu0 %v2741
          %2811 = vmatpush1.msra.mxu0 %v2740
          %2812 = vmatprep.subr.mxu0 %v2737
          %2813 = vmatpush1.msra.mxu0 %v2736
          %2814 = vmatprep.subr.mxu0 %v2733
          %2815 = vmatpush1.msra.mxu0 %v2732
          %2816 = vmatprep.subr.mxu0 %v2729
          %2817 = vmatpush1.msra.mxu0 %v2728
          %2818 = vmatprep.subr.mxu0 %v2725
          %2819 = vmatpush1.msra.mxu0 %v2724
          %2820 = vmatprep.subr.mxu0 0.0
          %2821 = vmatpush2.msra.mxu0 0.0
          %2822 = vmatprep.subr.mxu0 0.0
          %2823 = vmatpush2.msra.mxu0 0.0
          %2824 = vmatprep.subr.mxu0 0.0
          %2825 = vmatpush2.msra.mxu0 0.0
          %2826 = vmatprep.subr.mxu0 0.0
          %2827 = vmatpush2.msra.mxu0 0.0
          %2828 = vmatprep.subr.mxu0 0.0
          %2829 = vmatpush2.msra.mxu0 0.0
          %2830 = vmatprep.subr.mxu0 0.0
          %2831 = vmatpush2.msra.mxu0 0.0
          %2832 = vmatprep.subr.mxu0 0.0
          %2833 = vmatpush2.msra.mxu0 0.0
          %2834 = vmatprep.subr.mxu0 0.0
          %2835 = vmatpush2.msra.mxu0 0.0
          %2836 = vmatprep.subr.mxu0 0.0
          %2837 = vmatpush2.msra.mxu0 0.0
          %2838 = vmatprep.subr.mxu0 0.0
          %2839 = vmatpush2.msra.mxu0 0.0
          %2840 = vmatprep.subr.mxu0 0.0
          %2841 = vmatpush2.msra.mxu0 0.0
          %2842 = vmatprep.subr.mxu0 0.0
          %2843 = vmatpush2.msra.mxu0 0.0
          %2844 = vmatprep.subr.mxu0 0.0
          %2845 = vmatpush2.msra.mxu0 0.0
          %2846 = vmatprep.subr.mxu0 0.0
          %2847 = vmatpush2.msra.mxu0 0.0
          %2848 = vmatprep.subr.mxu0 0.0
          %2849 = vmatpush2.msra.mxu0 0.0
          %2850 = vmatprep.subr.mxu0 0.0
          %2851 = vmatpush2.msra.mxu0 0.0
          %2852 = vmatprep.mubr.f32.mxu0 0.0
          %2853 = vmatmul.mubr.f32.gmra.mxu0 %v2716
          %v2854 = vpop.f32.mrf.mxu0
          %v2855 = vadd.f32 0.0, %v2854
          %v2856 = vpop.f32.mrf.mxu0
          %v2857 = vadd.f32 0.0, %v2856
          %2858 = vdwg.mxu0
          %2859 = vmatprep.subr.mxu0 %v2787
          %2860 = vmatpush1.msra.mxu0 %v2786
          %2861 = vmatprep.subr.mxu0 %v2783
          %2862 = vmatpush1.msra.mxu0 %v2782
          %2863 = vmatprep.subr.mxu0 %v2779
          %2864 = vmatpush1.msra.mxu0 %v2778
          %2865 = vmatprep.subr.mxu0 %v2775
          %2866 = vmatpush1.msra.mxu0 %v2774
          %2867 = vmatprep.subr.mxu0 %v2771
          %2868 = vmatpush1.msra.mxu0 %v2770
          %2869 = vmatprep.subr.mxu0 %v2767
          %2870 = vmatpush1.msra.mxu0 %v2766
          %2871 = vmatprep.subr.mxu0 %v2763
          %2872 = vmatpush1.msra.mxu0 %v2762
          %2873 = vmatprep.subr.mxu0 %v2759
          %2874 = vmatpush1.msra.mxu0 %v2758
          %2875 = vmatprep.subr.mxu0 %v2755
          %2876 = vmatpush1.msra.mxu0 %v2754
          %2877 = vmatprep.subr.mxu0 %v2751
          %2878 = vmatpush1.msra.mxu0 %v2750
          %2879 = vmatprep.subr.mxu0 %v2747
          %2880 = vmatpush1.msra.mxu0 %v2746
          %2881 = vmatprep.subr.mxu0 %v2743
          %2882 = vmatpush1.msra.mxu0 %v2742
          %2883 = vmatprep.subr.mxu0 %v2739
          %2884 = vmatpush1.msra.mxu0 %v2738
          %2885 = vmatprep.subr.mxu0 %v2735
          %2886 = vmatpush1.msra.mxu0 %v2734
          %2887 = vmatprep.subr.mxu0 %v2731
          %2888 = vmatpush1.msra.mxu0 %v2730
          %2889 = vmatprep.subr.mxu0 %v2727
          %2890 = vmatpush1.msra.mxu0 %v2726
          %2891 = vmatprep.subr.mxu0 0.0
          %2892 = vmatpush2.msra.mxu0 0.0
          %2893 = vmatprep.subr.mxu0 0.0
          %2894 = vmatpush2.msra.mxu0 0.0
          %2895 = vmatprep.subr.mxu0 0.0
          %2896 = vmatpush2.msra.mxu0 0.0
          %2897 = vmatprep.subr.mxu0 0.0
          %2898 = vmatpush2.msra.mxu0 0.0
          %2899 = vmatprep.subr.mxu0 0.0
          %2900 = vmatpush2.msra.mxu0 0.0
          %2901 = vmatprep.subr.mxu0 0.0
          %2902 = vmatpush2.msra.mxu0 0.0
          %2903 = vmatprep.subr.mxu0 0.0
          %2904 = vmatpush2.msra.mxu0 0.0
          %2905 = vmatprep.subr.mxu0 0.0
          %2906 = vmatpush2.msra.mxu0 0.0
          %2907 = vmatprep.subr.mxu0 0.0
          %2908 = vmatpush2.msra.mxu0 0.0
          %2909 = vmatprep.subr.mxu0 0.0
          %2910 = vmatpush2.msra.mxu0 0.0
          %2911 = vmatprep.subr.mxu0 0.0
          %2912 = vmatpush2.msra.mxu0 0.0
          %2913 = vmatprep.subr.mxu0 0.0
          %2914 = vmatpush2.msra.mxu0 0.0
          %2915 = vmatprep.subr.mxu0 0.0
          %2916 = vmatpush2.msra.mxu0 0.0
          %2917 = vmatprep.subr.mxu0 0.0
          %2918 = vmatpush2.msra.mxu0 0.0
          %2919 = vmatprep.subr.mxu0 0.0
          %2920 = vmatpush2.msra.mxu0 0.0
          %2921 = vmatprep.subr.mxu0 0.0
          %2922 = vmatpush2.msra.mxu0 0.0
          %2923 = vmatprep.mubr.f32.mxu0 0.0
          %2924 = vmatmul.mubr.f32.gmra.mxu0 %v2716
          %v2925 = vpop.f32.mrf.mxu0
          %v2926 = vadd.f32 0.0, %v2925
          %v2927 = vpop.f32.mrf.mxu0
          %v2928 = vadd.f32 0.0, %v2927
          %2929 = vdwg.mxu0
          %v2930 = vadd.f32 %v2720, %v2855
          %v2931 = vadd.f32 %v2721, %v2857
          %v2932 = vadd.f32 %v2722, %v2926
          %v2933 = vadd.f32 %v2723, %v2928
          %v2934 = vmul.f32 %v2930, 0.5
          %v2935 = vtanh.pop %v2934
          %v2936 = vadd.f32 %v2935, 1.0
          %v2937 = vmul.f32 %v2936, 0.5
          %v2938 = vmul.f32 %v2931, 0.5
          %v2939 = vtanh.pop %v2938
          %v2940 = vadd.f32 %v2939, 1.0
          %v2941 = vmul.f32 %v2940, 0.5
          %v2942 = vtanh.pop %v2932
          %v2943 = vmul.f32 %v2933, 0.5
          %v2944 = vtanh.pop %v2943
          %v2945 = vadd.f32 %v2944, 1.0
          %v2946 = vmul.f32 %v2945, 0.5
          %v2947 = vmul.f32 %v2941, %v2714
          %v2948 = vmul.f32 %v2937, %v2942
          %v2949 = vadd.f32 %v2947, %v2948
          %v2950 = vtanh.pop %v2949
          %v2951 = vmul.f32 %v2946, %v2950
          %s2952 = scalar_lea.vmem [#allocation14], 16
          %2953 = vst [vmem:[%s2952] sm:$0xff] %v2951
          %s2954 = scalar_lea.vmem [#allocation8], 96
          %v2955 = vld [vmem:[%s2954] sm:$0xff]
          %v2956 = vld [vmem:[%s2954 + $0x8] sm:$0xff]
          %v2957 = vld [vmem:[%s2954 + $0x10] sm:$0xff]
          %v2958 = vld [vmem:[%s2954 + $0x18] sm:$0xff]
          %v2959 = vld [vmem:[#allocation13] sm:$0xff]
          %v2960 = vld [vmem:[#allocation13 + $0x8] sm:$0xff]
          %v2961 = vld [vmem:[#allocation13 + $0x10] sm:$0xff]
          %v2962 = vld [vmem:[#allocation13 + $0x18] sm:$0xff]
          %v2963 = vld [vmem:[#allocation13 + $0x20] sm:$0xff]
          %v2964 = vld [vmem:[#allocation13 + $0x28] sm:$0xff]
          %v2965 = vld [vmem:[#allocation13 + $0x30] sm:$0xff]
          %v2966 = vld [vmem:[#allocation13 + $0x38] sm:$0xff]
          %v2967 = vld [vmem:[#allocation13 + $0x40] sm:$0xff]
          %v2968 = vld [vmem:[#allocation13 + $0x48] sm:$0xff]
          %v2969 = vld [vmem:[#allocation13 + $0x50] sm:$0xff]
          %v2970 = vld [vmem:[#allocation13 + $0x58] sm:$0xff]
          %v2971 = vld [vmem:[#allocation13 + $0x60] sm:$0xff]
          %v2972 = vld [vmem:[#allocation13 + $0x68] sm:$0xff]
          %v2973 = vld [vmem:[#allocation13 + $0x70] sm:$0xff]
          %v2974 = vld [vmem:[#allocation13 + $0x78] sm:$0xff]
          %v2975 = vld [vmem:[#allocation13 + $0x80] sm:$0xff]
          %v2976 = vld [vmem:[#allocation13 + $0x88] sm:$0xff]
          %v2977 = vld [vmem:[#allocation13 + $0x90] sm:$0xff]
          %v2978 = vld [vmem:[#allocation13 + $0x98] sm:$0xff]
          %v2979 = vld [vmem:[#allocation13 + $0xa0] sm:$0xff]
          %v2980 = vld [vmem:[#allocation13 + $0xa8] sm:$0xff]
          %v2981 = vld [vmem:[#allocation13 + $0xb0] sm:$0xff]
          %v2982 = vld [vmem:[#allocation13 + $0xb8] sm:$0xff]
          %v2983 = vld [vmem:[#allocation13 + $0xc0] sm:$0xff]
          %v2984 = vld [vmem:[#allocation13 + $0xc8] sm:$0xff]
          %v2985 = vld [vmem:[#allocation13 + $0xd0] sm:$0xff]
          %v2986 = vld [vmem:[#allocation13 + $0xd8] sm:$0xff]
          %v2987 = vld [vmem:[#allocation13 + $0xe0] sm:$0xff]
          %v2988 = vld [vmem:[#allocation13 + $0xe8] sm:$0xff]
          %v2989 = vld [vmem:[#allocation13 + $0xf0] sm:$0xff]
          %v2990 = vld [vmem:[#allocation13 + $0xf8] sm:$0xff]
          %v2991 = vld [vmem:[#allocation13 + $0x100] sm:$0xff]
          %v2992 = vld [vmem:[#allocation13 + $0x108] sm:$0xff]
          %v2993 = vld [vmem:[#allocation13 + $0x110] sm:$0xff]
          %v2994 = vld [vmem:[#allocation13 + $0x118] sm:$0xff]
          %v2995 = vld [vmem:[#allocation13 + $0x120] sm:$0xff]
          %v2996 = vld [vmem:[#allocation13 + $0x128] sm:$0xff]
          %v2997 = vld [vmem:[#allocation13 + $0x130] sm:$0xff]
          %v2998 = vld [vmem:[#allocation13 + $0x138] sm:$0xff]
          %v2999 = vld [vmem:[#allocation13 + $0x140] sm:$0xff]
          %v3000 = vld [vmem:[#allocation13 + $0x148] sm:$0xff]
          %v3001 = vld [vmem:[#allocation13 + $0x150] sm:$0xff]
          %v3002 = vld [vmem:[#allocation13 + $0x158] sm:$0xff]
          %v3003 = vld [vmem:[#allocation13 + $0x160] sm:$0xff]
          %v3004 = vld [vmem:[#allocation13 + $0x168] sm:$0xff]
          %v3005 = vld [vmem:[#allocation13 + $0x170] sm:$0xff]
          %v3006 = vld [vmem:[#allocation13 + $0x178] sm:$0xff]
          %v3007 = vld [vmem:[#allocation13 + $0x180] sm:$0xff]
          %v3008 = vld [vmem:[#allocation13 + $0x188] sm:$0xff]
          %v3009 = vld [vmem:[#allocation13 + $0x190] sm:$0xff]
          %v3010 = vld [vmem:[#allocation13 + $0x198] sm:$0xff]
          %v3011 = vld [vmem:[#allocation13 + $0x1a0] sm:$0xff]
          %v3012 = vld [vmem:[#allocation13 + $0x1a8] sm:$0xff]
          %v3013 = vld [vmem:[#allocation13 + $0x1b0] sm:$0xff]
          %v3014 = vld [vmem:[#allocation13 + $0x1b8] sm:$0xff]
          %v3015 = vld [vmem:[#allocation13 + $0x1c0] sm:$0xff]
          %v3016 = vld [vmem:[#allocation13 + $0x1c8] sm:$0xff]
          %v3017 = vld [vmem:[#allocation13 + $0x1d0] sm:$0xff]
          %v3018 = vld [vmem:[#allocation13 + $0x1d8] sm:$0xff]
          %v3019 = vld [vmem:[#allocation13 + $0x1e0] sm:$0xff]
          %v3020 = vld [vmem:[#allocation13 + $0x1e8] sm:$0xff]
          %v3021 = vld [vmem:[#allocation13 + $0x1f0] sm:$0xff]
          %v3022 = vld [vmem:[#allocation13 + $0x1f8] sm:$0xff]
          %3023 = vmatprep.subr.mxu0 %v3020
          %3024 = vmatpush1.msra.mxu0 %v3019
          %3025 = vmatprep.subr.mxu0 %v3016
          %3026 = vmatpush1.msra.mxu0 %v3015
          %3027 = vmatprep.subr.mxu0 %v3012
          %3028 = vmatpush1.msra.mxu0 %v3011
          %3029 = vmatprep.subr.mxu0 %v3008
          %3030 = vmatpush1.msra.mxu0 %v3007
          %3031 = vmatprep.subr.mxu0 %v3004
          %3032 = vmatpush1.msra.mxu0 %v3003
          %3033 = vmatprep.subr.mxu0 %v3000
          %3034 = vmatpush1.msra.mxu0 %v2999
          %3035 = vmatprep.subr.mxu0 %v2996
          %3036 = vmatpush1.msra.mxu0 %v2995
          %3037 = vmatprep.subr.mxu0 %v2992
          %3038 = vmatpush1.msra.mxu0 %v2991
          %3039 = vmatprep.subr.mxu0 %v2988
          %3040 = vmatpush1.msra.mxu0 %v2987
          %3041 = vmatprep.subr.mxu0 %v2984
          %3042 = vmatpush1.msra.mxu0 %v2983
          %3043 = vmatprep.subr.mxu0 %v2980
          %3044 = vmatpush1.msra.mxu0 %v2979
          %3045 = vmatprep.subr.mxu0 %v2976
          %3046 = vmatpush1.msra.mxu0 %v2975
          %3047 = vmatprep.subr.mxu0 %v2972
          %3048 = vmatpush1.msra.mxu0 %v2971
          %3049 = vmatprep.subr.mxu0 %v2968
          %3050 = vmatpush1.msra.mxu0 %v2967
          %3051 = vmatprep.subr.mxu0 %v2964
          %3052 = vmatpush1.msra.mxu0 %v2963
          %3053 = vmatprep.subr.mxu0 %v2960
          %3054 = vmatpush1.msra.mxu0 %v2959
          %3055 = vmatprep.subr.mxu0 0.0
          %3056 = vmatpush2.msra.mxu0 0.0
          %3057 = vmatprep.subr.mxu0 0.0
          %3058 = vmatpush2.msra.mxu0 0.0
          %3059 = vmatprep.subr.mxu0 0.0
          %3060 = vmatpush2.msra.mxu0 0.0
          %3061 = vmatprep.subr.mxu0 0.0
          %3062 = vmatpush2.msra.mxu0 0.0
          %3063 = vmatprep.subr.mxu0 0.0
          %3064 = vmatpush2.msra.mxu0 0.0
          %3065 = vmatprep.subr.mxu0 0.0
          %3066 = vmatpush2.msra.mxu0 0.0
          %3067 = vmatprep.subr.mxu0 0.0
          %3068 = vmatpush2.msra.mxu0 0.0
          %3069 = vmatprep.subr.mxu0 0.0
          %3070 = vmatpush2.msra.mxu0 0.0
          %3071 = vmatprep.subr.mxu0 0.0
          %3072 = vmatpush2.msra.mxu0 0.0
          %3073 = vmatprep.subr.mxu0 0.0
          %3074 = vmatpush2.msra.mxu0 0.0
          %3075 = vmatprep.subr.mxu0 0.0
          %3076 = vmatpush2.msra.mxu0 0.0
          %3077 = vmatprep.subr.mxu0 0.0
          %3078 = vmatpush2.msra.mxu0 0.0
          %3079 = vmatprep.subr.mxu0 0.0
          %3080 = vmatpush2.msra.mxu0 0.0
          %3081 = vmatprep.subr.mxu0 0.0
          %3082 = vmatpush2.msra.mxu0 0.0
          %3083 = vmatprep.subr.mxu0 0.0
          %3084 = vmatpush2.msra.mxu0 0.0
          %3085 = vmatprep.subr.mxu0 0.0
          %3086 = vmatpush2.msra.mxu0 0.0
          %3087 = vmatprep.mubr.f32.mxu0 0.0
          %3088 = vmatmul.mubr.f32.gmra.mxu0 %v2951
          %v3089 = vpop.f32.mrf.mxu0
          %v3090 = vadd.f32 0.0, %v3089
          %v3091 = vpop.f32.mrf.mxu0
          %v3092 = vadd.f32 0.0, %v3091
          %3093 = vdwg.mxu0
          %3094 = vmatprep.subr.mxu0 %v3022
          %3095 = vmatpush1.msra.mxu0 %v3021
          %3096 = vmatprep.subr.mxu0 %v3018
          %3097 = vmatpush1.msra.mxu0 %v3017
          %3098 = vmatprep.subr.mxu0 %v3014
          %3099 = vmatpush1.msra.mxu0 %v3013
          %3100 = vmatprep.subr.mxu0 %v3010
          %3101 = vmatpush1.msra.mxu0 %v3009
          %3102 = vmatprep.subr.mxu0 %v3006
          %3103 = vmatpush1.msra.mxu0 %v3005
          %3104 = vmatprep.subr.mxu0 %v3002
          %3105 = vmatpush1.msra.mxu0 %v3001
          %3106 = vmatprep.subr.mxu0 %v2998
          %3107 = vmatpush1.msra.mxu0 %v2997
          %3108 = vmatprep.subr.mxu0 %v2994
          %3109 = vmatpush1.msra.mxu0 %v2993
          %3110 = vmatprep.subr.mxu0 %v2990
          %3111 = vmatpush1.msra.mxu0 %v2989
          %3112 = vmatprep.subr.mxu0 %v2986
          %3113 = vmatpush1.msra.mxu0 %v2985
          %3114 = vmatprep.subr.mxu0 %v2982
          %3115 = vmatpush1.msra.mxu0 %v2981
          %3116 = vmatprep.subr.mxu0 %v2978
          %3117 = vmatpush1.msra.mxu0 %v2977
          %3118 = vmatprep.subr.mxu0 %v2974
          %3119 = vmatpush1.msra.mxu0 %v2973
          %3120 = vmatprep.subr.mxu0 %v2970
          %3121 = vmatpush1.msra.mxu0 %v2969
          %3122 = vmatprep.subr.mxu0 %v2966
          %3123 = vmatpush1.msra.mxu0 %v2965
          %3124 = vmatprep.subr.mxu0 %v2962
          %3125 = vmatpush1.msra.mxu0 %v2961
          %3126 = vmatprep.subr.mxu0 0.0
          %3127 = vmatpush2.msra.mxu0 0.0
          %3128 = vmatprep.subr.mxu0 0.0
          %3129 = vmatpush2.msra.mxu0 0.0
          %3130 = vmatprep.subr.mxu0 0.0
          %3131 = vmatpush2.msra.mxu0 0.0
          %3132 = vmatprep.subr.mxu0 0.0
          %3133 = vmatpush2.msra.mxu0 0.0
          %3134 = vmatprep.subr.mxu0 0.0
          %3135 = vmatpush2.msra.mxu0 0.0
          %3136 = vmatprep.subr.mxu0 0.0
          %3137 = vmatpush2.msra.mxu0 0.0
          %3138 = vmatprep.subr.mxu0 0.0
          %3139 = vmatpush2.msra.mxu0 0.0
          %3140 = vmatprep.subr.mxu0 0.0
          %3141 = vmatpush2.msra.mxu0 0.0
          %3142 = vmatprep.subr.mxu0 0.0
          %3143 = vmatpush2.msra.mxu0 0.0
          %3144 = vmatprep.subr.mxu0 0.0
          %3145 = vmatpush2.msra.mxu0 0.0
          %3146 = vmatprep.subr.mxu0 0.0
          %3147 = vmatpush2.msra.mxu0 0.0
          %3148 = vmatprep.subr.mxu0 0.0
          %3149 = vmatpush2.msra.mxu0 0.0
          %3150 = vmatprep.subr.mxu0 0.0
          %3151 = vmatpush2.msra.mxu0 0.0
          %3152 = vmatprep.subr.mxu0 0.0
          %3153 = vmatpush2.msra.mxu0 0.0
          %3154 = vmatprep.subr.mxu0 0.0
          %3155 = vmatpush2.msra.mxu0 0.0
          %3156 = vmatprep.subr.mxu0 0.0
          %3157 = vmatpush2.msra.mxu0 0.0
          %3158 = vmatprep.mubr.f32.mxu0 0.0
          %3159 = vmatmul.mubr.f32.gmra.mxu0 %v2951
          %v3160 = vpop.f32.mrf.mxu0
          %v3161 = vadd.f32 0.0, %v3160
          %v3162 = vpop.f32.mrf.mxu0
          %v3163 = vadd.f32 0.0, %v3162
          %3164 = vdwg.mxu0
          %v3165 = vadd.f32 %v2955, %v3090
          %v3166 = vadd.f32 %v2956, %v3092
          %v3167 = vadd.f32 %v2957, %v3161
          %v3168 = vadd.f32 %v2958, %v3163
          %v3169 = vmul.f32 %v3165, 0.5
          %v3170 = vtanh.pop %v3169
          %v3171 = vadd.f32 %v3170, 1.0
          %v3172 = vmul.f32 %v3171, 0.5
          %v3173 = vmul.f32 %v3166, 0.5
          %v3174 = vtanh.pop %v3173
          %v3175 = vadd.f32 %v3174, 1.0
          %v3176 = vmul.f32 %v3175, 0.5
          %v3177 = vtanh.pop %v3167
          %v3178 = vmul.f32 %v3168, 0.5
          %v3179 = vtanh.pop %v3178
          %v3180 = vadd.f32 %v3179, 1.0
          %v3181 = vmul.f32 %v3180, 0.5
          %v3182 = vmul.f32 %v3176, %v2949
          %v3183 = vmul.f32 %v3172, %v3177
          %v3184 = vadd.f32 %v3182, %v3183
          %v3185 = vtanh.pop %v3184
          %v3186 = vmul.f32 %v3181, %v3185
          %s3187 = scalar_lea.vmem [#allocation14], 24
          %3188 = vst [vmem:[%s3187] sm:$0xff] %v3186
        $region76: #{tpu_custom_call.1} parent=47 // pred_fallthru
          _
        // Predicated region
        $region77: #{tpu_custom_call.1} parent=47 // pred_check
          %p3189 = pneg %p218
        $region78: #{tpu_custom_call.1} parent=47 // pred_check_branch
          %3191 = sbr.rel (%p3189) target = $region80
        $region79: #{tpu_custom_call.1} parent=47 // pred_region
          %s3193 = ssub.s32 512, 512
          %3194 = vsyncadd [#allocation7], %s3193
          %s3195 = smul.addr %s28, 128
          %s3196 = scalar_lea.hbm %s7, %s3195
          %s3197 = sshll.u32 [#allocation14], 4
          %s3198 = int_to_ptr.vmem [resolvable:$true] %s3197
          %3203 = dma.vmem_to_hbm [thread:$0]  %s3198, 512, %s3196, [#allocation7], 128, 128, 8
        $region80: #{tpu_custom_call.1} parent=47 // pred_fallthru
          _
        // Predicated region
        $region81: #{tpu_custom_call.1} parent=47 // pred_check
          %p3204 = pneg %p218
        $region82: #{tpu_custom_call.1} parent=47 // pred_check_branch
          %3206 = sbr.rel (%p3204) target = $region84
        $region83: #{tpu_custom_call.1} parent=47 // pred_region
          %3207 = dma.done [#allocation7], 512
        $region84: #{tpu_custom_call.1} parent=47 // pred_fallthru
          _
      $region48: #{tpu_custom_call.1} parent=5 // pred_fallthru
        _
      %p3208 = scmp.le.s32.totalorder 2, %s19
      // Predicated region
      $region85: #{tpu_custom_call.1} parent=5 // pred_check
        %p3209 = pneg %p3208
      $region86: #{tpu_custom_call.1} parent=5 // pred_check_branch
        %3211 = sbr.rel (%p3209) target = $region88
      $region87: #{tpu_custom_call.1} parent=5 // pred_region
        %s3212 = ssub.s32 %s19, 2
      $region88: #{tpu_custom_call.1} parent=5 // pred_fallthru
        _
    $region6: #{tpu_custom_call.1} parent=1 // loop_footer
      %s23 = sadd.s32 1, %s19
    $region7: #{tpu_custom_call.1} parent=1 // loop_footer_branch
      %18 = sbr.rel target = $region3
    $region8: #{tpu_custom_call.1} parent=1 // loop_exit
      _
    %3213 = vsyncpa [#allocation6], 1
    %s3214 = scalar_lea.sflag [#allocation6], 1
    %3215 = vsyncpa %s3214, 1
    %3216 = vsyncpa [#allocation9], 1
    %3217 = vsyncpa [#allocation12], 1
    %3218 = vsyncpa [#allocation7], 1
    %s3219 = scalar_lea.sflag [#allocation7], 1
    %3220 = vsyncpa %s3219, 1

</llo_original>
